<compile_context>
chip_gen: v6e
topology: v6e:2x2x1
jax: 0.10.0
libtpu: 0.0.40
codegen_flags: <defaults>
</compile_context>

<pallas_src>
import functools

import jax
import jax.numpy as jnp
from jax.experimental import pallas as pl
from jax.experimental.pallas import tpu as pltpu

EPS = 1e-12
MASK_BIAS = 1e30        # large-but-safe additive mask value (scores stay f32)
VMEM_LIMIT = 48 * 1024 * 1024   # fits v7x (64 MiB physical) with headroom


# ---------------------------------------------------------------------------
# in-kernel helpers (traced inside the Pallas kernels)
# ---------------------------------------------------------------------------
def _layernorm(v, g, b):
    mu = jnp.mean(v, axis=-1, keepdims=True)
    var = jnp.mean((v - mu) ** 2, axis=-1, keepdims=True)
    return (v - mu) * jax.lax.rsqrt(var + EPS) * g + b


def _mha(q_b, kv_b, w_ref, b, bias, mask, n_heads):
    """Multi-headed attention, batched over the (folded) batch dim.

    q_b:   (TB, Tq, D) bf16       kv_b: (TB, Tk, D) bf16
    w_ref: Ref (1, 4, D, D) bf16  order [q, k, v, out]
    b:     (4, D) f32
    bias:  (TB, 1, Tk) f32        additive mask bias (0 valid / -1e30 masked)
    mask:  (TB, 1, Tk) f32        1.0 = valid (post-softmax zeroing)
    """
    TB, Tq, D = q_b.shape
    Tk = kv_b.shape[1]
    dk = D // n_heads
    scale = 1.0 / (float(dk) ** 0.5)

    q2 = q_b.reshape(TB * Tq, D)
    kv2 = kv_b.reshape(TB * Tk, D)

    # Full-D projections on the MXU (bf16 in, f32 accumulate), M = TB*T.
    q = (jnp.dot(q2, w_ref[0, 0], preferred_element_type=jnp.float32)
         + b[0:1]).astype(jnp.bfloat16)
    k = (jnp.dot(kv2, w_ref[0, 1], preferred_element_type=jnp.float32)
         + b[1:2]).astype(jnp.bfloat16)
    v = (jnp.dot(kv2, w_ref[0, 2], preferred_element_type=jnp.float32)
         + b[2:3]).astype(jnp.bfloat16)

    # Per-head lane-aligned slices (keep dk a multiple of 128 for best MXU
    # utilization), score/context matmuls batched over the folded batch dim.
    ctx_heads = []
    for h in range(n_heads):
        lo = h * dk
        qh = q[:, lo:lo + dk].reshape(TB, Tq, dk)
        kh = k[:, lo:lo + dk].reshape(TB, Tk, dk)
        vh = v[:, lo:lo + dk].reshape(TB, Tk, dk)

        s = jnp.einsum("bqd,bkd->bqk", qh, kh,
                       preferred_element_type=jnp.float32) * scale
        s = s + bias                                  # additive key mask (f32)
        m = jnp.max(s, axis=-1, keepdims=True)
        e = jnp.exp(s - m)
        a = e * pl.reciprocal(jnp.sum(e, axis=-1, keepdims=True), approx=True)
        a = a * mask                                  # fully-masked rows -> 0

        c = jnp.einsum("bqk,bkd->bqd", a.astype(jnp.bfloat16), vh,
                       preferred_element_type=jnp.float32)
        ctx_heads.append(c.reshape(TB * Tq, dk).astype(jnp.bfloat16))

    # Lane-aligned head re-concat -> one full-D output projection.
    ctx = jnp.concatenate(ctx_heads, axis=-1)          # (TB*Tq, D) bf16
    out = jnp.dot(ctx, w_ref[0, 3], preferred_element_type=jnp.float32) + b[3:4]
    return out.reshape(TB, Tq, D)


# ---------------------------------------------------------------------------
# Pallas kernels
# ---------------------------------------------------------------------------
def _decoder_stack_kernel(n_heads,
                          x_ref, mem_ref, tmask_ref, tbias_ref,
                          mmask_ref, mbias_ref,
                          ln_ref, sw_ref, sb_ref, cw_ref, cb_ref,
                          w1_ref, b1_ref, w2_ref, b2_ref,
                          fg_ref, fb_ref,
                          out_ref, x_scr):
    """One (batch-tile, layer) grid point.  x lives in VMEM scratch across L;
    the bf16 after_norm(x) is emitted once at the last layer."""
    l = pl.program_id(1)
    n_layers = pl.num_programs(1)

    @pl.when(l == 0)
    def _():
        x_scr[...] = x_ref[...]

    x = x_scr[...]                 # (TB, T_out, D) f32, carried across layers
    mem = mem_ref[...]             # (TB, T_in,  D) bf16 (cast once in wrapper)
    tmask = tmask_ref[...]         # (TB, 1, T_out) f32, 1.0 = valid
    tbias = tbias_ref[...]         # (TB, 1, T_out) f32, 0 / -1e30
    mmask = mmask_ref[...]         # (TB, 1, T_in)  f32
    mbias = mbias_ref[...]         # (TB, 1, T_in)  f32

    TB, T_out, D = x.shape

    ln = ln_ref[0]                 # (3, 2, D)  [norm_idx, gamma/beta, D]  f32
    sb = sb_ref[0]                 # (4, D)  f32
    cb = cb_ref[0]
    b1 = b1_ref[0]                 # (1, F)  f32
    b2 = b2_ref[0]                 # (1, D)  f32

    # --- self-attention block (pre-norm, concat_after=False) ---
    res = x
    xn = _layernorm(x, ln[0, 0:1, :], ln[0, 1:2, :]).astype(jnp.bfloat16)
    x = res + _mha(xn, xn, sw_ref, sb, tbias, tmask, n_heads)

    # --- source (cross) attention block ---
    res = x
    xn = _layernorm(x, ln[1, 0:1, :], ln[1, 1:2, :]).astype(jnp.bfloat16)
    x = res + _mha(xn, mem, cw_ref, cb, mbias, mmask, n_heads)

    # --- position-wise feed forward (M = TB*T_out) ---
    res = x
    xn = _layernorm(x, ln[2, 0:1, :], ln[2, 1:2, :])
    xn2 = xn.astype(jnp.bfloat16).reshape(TB * T_out, D)
    h = jnp.maximum(
        jnp.dot(xn2, w1_ref[0], preferred_element_type=jnp.float32) + b1, 0.0)
    y = jnp.dot(h.astype(jnp.bfloat16), w2_ref[0],
                preferred_element_type=jnp.float32) + b2
    x = res + y.reshape(TB, T_out, D)

    x_scr[...] = x

    # Final after_norm hoisted here (computed once, not per vocab tile).
    @pl.when(l == n_layers - 1)
    def _():
        out_ref[...] = _layernorm(x, fg_ref[...], fb_ref[...]).astype(jnp.bfloat16)


def _output_head_kernel(x_ref, w_ref, b_ref, out_ref):
    """One (B*T_out, vocab_tile) tile of the vocab projection (x is already
    after_norm'ed bf16 and stays VMEM-resident across vocab tiles)."""
    out_ref[...] = (jnp.dot(x_ref[...], w_ref[...],
                            preferred_element_type=jnp.float32) + b_ref[...])


# ---------------------------------------------------------------------------
# wrappers (pallas_call setup)
# ---------------------------------------------------------------------------
def decoder_stack(x, memory_bf16, tmask, tbias, mmask, mbias,
                  layer_params, after_g, after_b, n_heads,
                  *, batch_tile=None, vmem_limit_bytes=VMEM_LIMIT):
    B, T_out, D = x.shape
    T_in = memory_bf16.shape[1]
    ln, sw, sb, cw, cb, w1, b1, w2, b2 = layer_params
    L = ln.shape[0]
    F = w1.shape[-1]
    assert D % n_heads == 0
    TB = B if batch_tile is None else batch_tile
    assert B % TB == 0
    nb = B // TB

    return pl.pallas_call(
        functools.partial(_decoder_stack_kernel, n_heads),
        out_shape=jax.ShapeDtypeStruct((B, T_out, D), jnp.bfloat16),
        grid=(nb, L),
        in_specs=[
            # activations / masks: block index constant over l -> DMA'd once
            # per batch tile and kept VMEM-resident across all layers.
            pl.BlockSpec((TB, T_out, D), lambda b, l: (b, 0, 0)),   # x (f32)
            pl.BlockSpec((TB, T_in, D), lambda b, l: (b, 0, 0)),    # memory (bf16)
            pl.BlockSpec((TB, 1, T_out), lambda b, l: (b, 0, 0)),   # tgt mask
            pl.BlockSpec((TB, 1, T_out), lambda b, l: (b, 0, 0)),   # tgt bias
            pl.BlockSpec((TB, 1, T_in), lambda b, l: (b, 0, 0)),    # mem mask
            pl.BlockSpec((TB, 1, T_in), lambda b, l: (b, 0, 0)),    # mem bias
            # per-layer weights: streamed once per layer along the inner axis.
            pl.BlockSpec((1, 3, 2, D), lambda b, l: (l, 0, 0, 0)),  # LN params
            pl.BlockSpec((1, 4, D, D), lambda b, l: (l, 0, 0, 0)),  # self-attn W (bf16)
            pl.BlockSpec((1, 4, D), lambda b, l: (l, 0, 0)),        # self-attn b
            pl.BlockSpec((1, 4, D, D), lambda b, l: (l, 0, 0, 0)),  # cross-attn W (bf16)
            pl.BlockSpec((1, 4, D), lambda b, l: (l, 0, 0)),        # cross-attn b
            pl.BlockSpec((1, D, F), lambda b, l: (l, 0, 0)),        # FFN W1 (bf16)
            pl.BlockSpec((1, 1, F), lambda b, l: (l, 0, 0)),        # FFN b1
            pl.BlockSpec((1, F, D), lambda b, l: (l, 0, 0)),        # FFN W2 (bf16)
            pl.BlockSpec((1, 1, D), lambda b, l: (l, 0, 0)),        # FFN b2
            # final after_norm params (used at the last layer only).
            pl.BlockSpec((1, D), lambda b, l: (0, 0)),
            pl.BlockSpec((1, D), lambda b, l: (0, 0)),
        ],
        out_specs=pl.BlockSpec((TB, T_out, D), lambda b, l: (b, 0, 0)),
        scratch_shapes=[pltpu.VMEM((TB, T_out, D), jnp.float32)],
        compiler_params=pltpu.CompilerParams(
            dimension_semantics=("parallel", "arbitrary"),
            vmem_limit_bytes=vmem_limit_bytes),
    )(x, memory_bf16, tmask, tbias, mmask, mbias,
      ln, sw, sb, cw, cb, w1, b1, w2, b2, after_g, after_b)


def output_head(x2d_bf16, w_out, b_out, *, vocab_tile=1024,
                vmem_limit_bytes=VMEM_LIMIT):
    """x2d_bf16: (B*T_out, D) already after_norm'ed.  w_out: (D, Vp) bf16,
    b_out: (1, Vp) f32 with Vp a multiple of vocab_tile (padded at init)."""
    M, D = x2d_bf16.shape
    Vp = w_out.shape[1]
    vocab_tile = min(vocab_tile, Vp)
    assert Vp % vocab_tile == 0, "pad w_out/b_out to a vocab_tile multiple at init"
    nv = Vp // vocab_tile

    return pl.pallas_call(
        _output_head_kernel,
        out_shape=jax.ShapeDtypeStruct((M, Vp), jnp.float32),
        grid=(nv,),
        in_specs=[
            pl.BlockSpec((M, D), lambda j: (0, 0)),           # x resident (DMA once)
            pl.BlockSpec((D, vocab_tile), lambda j: (0, j)),  # w_out tile (bf16), once each
            pl.BlockSpec((1, vocab_tile), lambda j: (0, j)),
        ],
        out_specs=pl.BlockSpec((M, vocab_tile), lambda j: (0, j)),  # lane-dense
        compiler_params=pltpu.CompilerParams(
            dimension_semantics=("parallel",),
            vmem_limit_bytes=vmem_limit_bytes),
    )(x2d_bf16, w_out, b_out)


def paraformer_decoder_san_forward(hs_pad, hlens, ys_in_pad, ys_in_lens,
                                   layer_params, head_params, n_heads,
                                   *, vocab_size, vocab_tile=1024):
    """Matches ParaformerDecoderSAN.forward (embeds_id=-1 -> returns (x, olens))."""
    B, T_out, D = ys_in_pad.shape
    T_in = hs_pad.shape[1]
    after_g, after_b, w_out, b_out = head_params
    Vp = w_out.shape[1]

    # ~make_pad_mask -> True for valid positions (no subsequent mask: non-AR).
    tgt_valid = (jnp.arange(T_out)[None, :] < ys_in_lens[:, None])   # (B, T_out)
    mem_valid = (jnp.arange(T_in)[None, :] < hlens[:, None])         # (B, T_in)
    tmask = tgt_valid[:, None, :].astype(jnp.float32)                # (B, 1, T_out)
    mmask = mem_valid[:, None, :].astype(jnp.float32)                # (B, 1, T_in)
    tbias = (tmask - 1.0) * MASK_BIAS                                # 0 / -1e30
    mbias = (mmask - 1.0) * MASK_BIAS

    mem_bf16 = hs_pad.astype(jnp.bfloat16)     # cast once; halves memory DMA

    xn = decoder_stack(ys_in_pad, mem_bf16, tmask, tbias, mmask, mbias,
                       layer_params, after_g, after_b, n_heads)      # bf16, normed

    logits = output_head(xn.reshape(B * T_out, D), w_out, b_out,
                         vocab_tile=vocab_tile)
    logits = logits.reshape(B, T_out, Vp)[..., :vocab_size]

    # olens = tgt_mask.sum(1) with tgt_mask (B, 1, T_out) -> (B, T_out)
    olens = tmask.astype(jnp.int32).sum(axis=1)
    return logits, olens


# ---------------------------------------------------------------------------
# deterministic parameter init (shapes from the module's __init__);
# weights bf16, biases / LN params f32, per-layer tensors stacked along L,
# vocab projection padded to a vocab_tile multiple ONCE here.
# ---------------------------------------------------------------------------
def init_params(key, vocab_size, D, F, num_blocks, *, vocab_tile=1024):
    L = num_blocks

    def nrm(k, shape, scale=0.05):
        return (scale * jax.random.normal(k, shape)).astype(jnp.float32)

    keys = jax.random.split(key, 10)
    ln = jnp.stack([jnp.ones((L, 3, D), jnp.float32),
                    jnp.zeros((L, 3, D), jnp.float32)], axis=2)       # (L, 3, 2, D)
    sw = nrm(keys[0], (L, 4, D, D)).astype(jnp.bfloat16)
    sb = nrm(keys[1], (L, 4, D))
    cw = nrm(keys[2], (L, 4, D, D)).astype(jnp.bfloat16)
    cb = nrm(keys[3], (L, 4, D))
    w1 = nrm(keys[4], (L, D, F)).astype(jnp.bfloat16)
    b1 = nrm(keys[5], (L, 1, F))
    w2 = nrm(keys[6], (L, F, D)).astype(jnp.bfloat16)
    b2 = nrm(keys[7], (L, 1, D))
    layer_params = (ln, sw, sb, cw, cb, w1, b1, w2, b2)

    after_g = jnp.ones((1, D), jnp.float32)
    after_b = jnp.zeros((1, D), jnp.float32)
    w_out = nrm(keys[8], (D, vocab_size)).astype(jnp.bfloat16)
    b_out = nrm(keys[9], (1, vocab_size))
    Vp = ((vocab_size + vocab_tile - 1) // vocab_tile) * vocab_tile
    if Vp != vocab_size:                      # pad once here, not per forward
        w_out = jnp.pad(w_out, ((0, 0), (0, Vp - vocab_size)))
        b_out = jnp.pad(b_out, ((0, 0), (0, Vp - vocab_size)))
    head_params = (after_g, after_b, w_out, b_out)
    return layer_params, head_params


# ---------------------------------------------------------------------------
if __name__ == "__main__":
    # Small demo dims consistent with the module; chosen so dk = D / H = 128
    # (lane-aligned head slices) and the vocab pads to a vocab_tile multiple.
    B, T_in, T_out = 2, 16, 8
    D, H, F = 256, 2, 512          # attention_dim, attention_heads, linear_units
    V, L = 1000, 2                 # vocab_size, num_blocks
    VT = 512                       # vocab_tile (use 1024-2048 for real vocabs)

    key = jax.random.PRNGKey(0)
    k_mem, k_tgt, k_par = jax.random.split(key, 3)

    hs_pad = jax.random.normal(k_mem, (B, T_in, D), jnp.float32)      # encoder memory
    ys_in_pad = jax.random.normal(k_tgt, (B, T_out, D), jnp.float32)  # acoustic embeddings
    hlens = jnp.array([16, 12], jnp.int32)
    ys_in_lens = jnp.array([8, 5], jnp.int32)

    layer_params, head_params = init_params(k_par, V, D, F, L, vocab_tile=VT)

    logits, olens = paraformer_decoder_san_forward(
        hs_pad, hlens, ys_in_pad, ys_in_lens, layer_params, head_params, H,
        vocab_size=V, vocab_tile=VT)
    jax.block_until_ready((logits, olens))

    assert logits.shape == (B, T_out, V), logits.shape
    assert olens.shape == (B, T_out), olens.shape
    assert bool(jnp.all(jnp.isfinite(logits)))
    print("KERNEL_OK")
</pallas_src>

<mosaic_0001>
module attributes {stable_mosaic.version = 11 : i64} {
  func.func @_decoder_stack_kernel(%arg0: i32, %arg1: i32, %arg2: memref<2x8x256xf32, #tpu.memory_space<vmem>>, %arg3: memref<2x16x256xbf16, #tpu.memory_space<vmem>>, %arg4: memref<2x1x8xf32, #tpu.memory_space<vmem>>, %arg5: memref<2x1x8xf32, #tpu.memory_space<vmem>>, %arg6: memref<2x1x16xf32, #tpu.memory_space<vmem>>, %arg7: memref<2x1x16xf32, #tpu.memory_space<vmem>>, %arg8: memref<1x3x2x256xf32, #tpu.memory_space<vmem>>, %arg9: memref<1x4x256x256xbf16, #tpu.memory_space<vmem>>, %arg10: memref<1x4x256xf32, #tpu.memory_space<vmem>>, %arg11: memref<1x4x256x256xbf16, #tpu.memory_space<vmem>>, %arg12: memref<1x4x256xf32, #tpu.memory_space<vmem>>, %arg13: memref<1x256x512xbf16, #tpu.memory_space<vmem>>, %arg14: memref<1x1x512xf32, #tpu.memory_space<vmem>>, %arg15: memref<1x512x256xbf16, #tpu.memory_space<vmem>>, %arg16: memref<1x1x256xf32, #tpu.memory_space<vmem>>, %arg17: memref<1x256xf32, #tpu.memory_space<vmem>>, %arg18: memref<1x256xf32, #tpu.memory_space<vmem>>, %arg19: memref<2x8x256xbf16, #tpu.memory_space<vmem>>, %arg20: memref<2x8x256xf32, #tpu.memory_space<vmem>>) attributes {dimension_semantics = [#tpu.dimension_semantics<parallel>, #tpu.dimension_semantics<arbitrary>], iteration_bounds = array<i64: 1, 2>, scalar_prefetch = 0 : i64, scratch_operands = 1 : i64, tpu.core_type = #tpu.core_type<tc>, window_params = [{transform_indices = @transform_0, window_bounds = array<i64: 2, 8, 256>}, {transform_indices = @transform_1, window_bounds = array<i64: 2, 16, 256>}, {transform_indices = @transform_2, window_bounds = array<i64: 2, 1, 8>}, {transform_indices = @transform_3, window_bounds = array<i64: 2, 1, 8>}, {transform_indices = @transform_4, window_bounds = array<i64: 2, 1, 16>}, {transform_indices = @transform_5, window_bounds = array<i64: 2, 1, 16>}, {transform_indices = @transform_6, window_bounds = array<i64: 1, 3, 2, 256>}, {transform_indices = @transform_7, window_bounds = array<i64: 1, 4, 256, 256>}, {transform_indices = @transform_8, window_bounds = array<i64: 1, 4, 256>}, {transform_indices = @transform_9, window_bounds = array<i64: 1, 4, 256, 256>}, {transform_indices = @transform_10, window_bounds = array<i64: 1, 4, 256>}, {transform_indices = @transform_11, window_bounds = array<i64: 1, 256, 512>}, {transform_indices = @transform_12, window_bounds = array<i64: 1, 1, 512>}, {transform_indices = @transform_13, window_bounds = array<i64: 1, 512, 256>}, {transform_indices = @transform_14, window_bounds = array<i64: 1, 1, 256>}, {pipeline_mode = #tpu.pipeline_mode<synchronous>, transform_indices = @transform_15, window_bounds = array<i64: 1, 256>}, {pipeline_mode = #tpu.pipeline_mode<synchronous>, transform_indices = @transform_16, window_bounds = array<i64: 1, 256>}, {transform_indices = @transform_17, window_bounds = array<i64: 2, 8, 256>}]} {
    %c0_i32 = arith.constant 0 : i32
    %0 = arith.cmpi eq, %arg1, %c0_i32 : i32
    %1 = arith.extui %0 : i1 to i32
    %c0_i32_0 = arith.constant 0 : i32
    %2 = arith.cmpi ne, %1, %c0_i32_0 : i32
    scf.if %2 {
      %c0_118 = arith.constant 0 : index
      %c0_119 = arith.constant 0 : index
      %c0_120 = arith.constant 0 : index
      %298 = vector.load %arg2[%c0_118, %c0_119, %c0_120] : memref<2x8x256xf32, #tpu.memory_space<vmem>>, vector<2x8x256xf32>
      %c0_121 = arith.constant 0 : index
      %c0_122 = arith.constant 0 : index
      %c0_123 = arith.constant 0 : index
      %299 = vector.load %arg20[%c0_121, %c0_122, %c0_123] : memref<2x8x256xf32, #tpu.memory_space<vmem>>, vector<2x8x256xf32>
      tpu.vector_store %arg20[%c0_121, %c0_122, %c0_123], %298 {strides = array<i32>} : memref<2x8x256xf32, #tpu.memory_space<vmem>>, vector<2x8x256xf32>,
    } else {
    }
    %c0 = arith.constant 0 : index
    %c0_1 = arith.constant 0 : index
    %c0_2 = arith.constant 0 : index
    %3 = vector.load %arg20[%c0, %c0_1, %c0_2] : memref<2x8x256xf32, #tpu.memory_space<vmem>>, vector<2x8x256xf32>
    %c0_3 = arith.constant 0 : index
    %c0_4 = arith.constant 0 : index
    %c0_5 = arith.constant 0 : index
    %4 = vector.load %arg3[%c0_3, %c0_4, %c0_5] : memref<2x16x256xbf16, #tpu.memory_space<vmem>>, vector<2x16x256xbf16>
    %c0_6 = arith.constant 0 : index
    %c0_7 = arith.constant 0 : index
    %c0_8 = arith.constant 0 : index
    %5 = vector.load %arg4[%c0_6, %c0_7, %c0_8] : memref<2x1x8xf32, #tpu.memory_space<vmem>>, vector<2x1x8xf32>
    %c0_9 = arith.constant 0 : index
    %c0_10 = arith.constant 0 : index
    %c0_11 = arith.constant 0 : index
    %6 = vector.load %arg5[%c0_9, %c0_10, %c0_11] : memref<2x1x8xf32, #tpu.memory_space<vmem>>, vector<2x1x8xf32>
    %c0_12 = arith.constant 0 : index
    %c0_13 = arith.constant 0 : index
    %c0_14 = arith.constant 0 : index
    %7 = vector.load %arg6[%c0_12, %c0_13, %c0_14] : memref<2x1x16xf32, #tpu.memory_space<vmem>>, vector<2x1x16xf32>
    %c0_15 = arith.constant 0 : index
    %c0_16 = arith.constant 0 : index
    %c0_17 = arith.constant 0 : index
    %8 = vector.load %arg7[%c0_15, %c0_16, %c0_17] : memref<2x1x16xf32, #tpu.memory_space<vmem>>, vector<2x1x16xf32>
    %c0_18 = arith.constant 0 : index
    %c0_19 = arith.constant 0 : index
    %c0_20 = arith.constant 0 : index
    %c0_21 = arith.constant 0 : index
    %9 = vector.load %arg8[%c0_18, %c0_19, %c0_20, %c0_21] : memref<1x3x2x256xf32, #tpu.memory_space<vmem>>, vector<1x3x2x256xf32>
    %10 = vector.shape_cast %9 : vector<1x3x2x256xf32> to vector<3x2x256xf32>
    %c0_22 = arith.constant 0 : index
    %c0_23 = arith.constant 0 : index
    %c0_24 = arith.constant 0 : index
    %11 = vector.load %arg10[%c0_22, %c0_23, %c0_24] : memref<1x4x256xf32, #tpu.memory_space<vmem>>, vector<1x4x256xf32>
    %12 = vector.shape_cast %11 : vector<1x4x256xf32> to vector<4x256xf32>
    %c0_25 = arith.constant 0 : index
    %c0_26 = arith.constant 0 : index
    %c0_27 = arith.constant 0 : index
    %13 = vector.load %arg12[%c0_25, %c0_26, %c0_27] : memref<1x4x256xf32, #tpu.memory_space<vmem>>, vector<1x4x256xf32>
    %14 = vector.shape_cast %13 : vector<1x4x256xf32> to vector<4x256xf32>
    %c0_28 = arith.constant 0 : index
    %c0_29 = arith.constant 0 : index
    %c0_30 = arith.constant 0 : index
    %15 = vector.load %arg14[%c0_28, %c0_29, %c0_30] : memref<1x1x512xf32, #tpu.memory_space<vmem>>, vector<1x1x512xf32>
    %16 = vector.shape_cast %15 : vector<1x1x512xf32> to vector<1x512xf32>
    %c0_31 = arith.constant 0 : index
    %c0_32 = arith.constant 0 : index
    %c0_33 = arith.constant 0 : index
    %17 = vector.load %arg16[%c0_31, %c0_32, %c0_33] : memref<1x1x256xf32, #tpu.memory_space<vmem>>, vector<1x1x256xf32>
    %18 = vector.shape_cast %17 : vector<1x1x256xf32> to vector<1x256xf32>
    %19 = vector.extract_strided_slice %10 {offsets = [0, 0, 0], sizes = [1, 1, 256], strides = [1, 1, 1]} : vector<3x2x256xf32> to vector<1x1x256xf32>
    %20 = vector.shape_cast %19 : vector<1x1x256xf32> to vector<1x256xf32>
    %21 = vector.extract_strided_slice %10 {offsets = [0, 1, 0], sizes = [1, 1, 256], strides = [1, 1, 1]} : vector<3x2x256xf32> to vector<1x1x256xf32>
    %22 = vector.shape_cast %21 : vector<1x1x256xf32> to vector<1x256xf32>
    %cst = arith.constant dense<0.000000e+00> : vector<2x8xf32>
    %23 = vector.multi_reduction <add>, %3, %cst [2] : vector<2x8x256xf32> to vector<2x8xf32>
    %24 = vector.shape_cast %23 : vector<2x8xf32> to vector<2x8x1xf32>
    %cst_34 = arith.constant 2.560000e+02 : f32
    %25 = vector.broadcast %cst_34 : f32 to vector<2x8x1xf32>
    %26 = arith.divf %24, %25 : vector<2x8x1xf32>
    %27 = vector.broadcast %26 : vector<2x8x1xf32> to vector<2x8x256xf32>
    %28 = arith.subf %3, %27 : vector<2x8x256xf32>
    %29 = arith.mulf %28, %28 : vector<2x8x256xf32>
    %cst_35 = arith.constant dense<0.000000e+00> : vector<2x8xf32>
    %30 = vector.multi_reduction <add>, %29, %cst_35 [2] : vector<2x8x256xf32> to vector<2x8xf32>
    %31 = vector.shape_cast %30 : vector<2x8xf32> to vector<2x8x1xf32>
    %cst_36 = arith.constant 2.560000e+02 : f32
    %32 = vector.broadcast %cst_36 : f32 to vector<2x8x1xf32>
    %33 = arith.divf %31, %32 : vector<2x8x1xf32>
    %34 = vector.broadcast %26 : vector<2x8x1xf32> to vector<2x8x256xf32>
    %35 = arith.subf %3, %34 : vector<2x8x256xf32>
    %cst_37 = arith.constant 9.99999996E-13 : f32
    %36 = vector.broadcast %cst_37 : f32 to vector<2x8x1xf32>
    %37 = arith.addf %33, %36 : vector<2x8x1xf32>
    %38 = math.rsqrt %37 : vector<2x8x1xf32>
    %39 = vector.broadcast %38 : vector<2x8x1xf32> to vector<2x8x256xf32>
    %40 = arith.mulf %35, %39 : vector<2x8x256xf32>
    %41 = vector.shape_cast %20 : vector<1x256xf32> to vector<1x1x256xf32>
    %42 = vector.broadcast %41 : vector<1x1x256xf32> to vector<2x8x256xf32>
    %43 = arith.mulf %40, %42 : vector<2x8x256xf32>
    %44 = vector.shape_cast %22 : vector<1x256xf32> to vector<1x1x256xf32>
    %45 = vector.broadcast %44 : vector<1x1x256xf32> to vector<2x8x256xf32>
    %46 = arith.addf %43, %45 : vector<2x8x256xf32>
    %47 = arith.truncf %46 : vector<2x8x256xf32> to vector<2x8x256xbf16>
    %48 = vector.shape_cast %47 : vector<2x8x256xbf16> to vector<16x256xbf16>
    %49 = vector.shape_cast %47 : vector<2x8x256xbf16> to vector<16x256xbf16>
    %c0_38 = arith.constant 0 : index
    %c0_39 = arith.constant 0 : index
    %c0_40 = arith.constant 0 : index
    %c0_41 = arith.constant 0 : index
    %50 = vector.load %arg9[%c0_38, %c0_39, %c0_40, %c0_41] : memref<1x4x256x256xbf16, #tpu.memory_space<vmem>>, vector<1x1x256x256xbf16>
    %51 = vector.shape_cast %50 : vector<1x1x256x256xbf16> to vector<256x256xbf16>
    %cst_42 = arith.constant dense<0.000000e+00> : vector<16x256xf32>
    %52 = tpu.matmul %48, %51, %cst_42 {dimension_numbers = #tpu.dot_dimension_numbers<[1], [0], [0], [1], [0, 0, 1, 1], [], []>} : vector<16x256xbf16>, vector<256x256xbf16>, vector<16x256xf32> -> vector<16x256xf32>
    %53 = vector.extract_strided_slice %12 {offsets = [0, 0], sizes = [1, 256], strides = [1, 1]} : vector<4x256xf32> to vector<1x256xf32>
    %54 = vector.broadcast %53 : vector<1x256xf32> to vector<16x256xf32>
    %55 = arith.addf %52, %54 : vector<16x256xf32>
    %56 = arith.truncf %55 : vector<16x256xf32> to vector<16x256xbf16>
    %c0_43 = arith.constant 0 : index
    %c1 = arith.constant 1 : index
    %c0_44 = arith.constant 0 : index
    %c0_45 = arith.constant 0 : index
    %57 = vector.load %arg9[%c0_43, %c1, %c0_44, %c0_45] : memref<1x4x256x256xbf16, #tpu.memory_space<vmem>>, vector<1x1x256x256xbf16>
    %58 = vector.shape_cast %57 : vector<1x1x256x256xbf16> to vector<256x256xbf16>
    %cst_46 = arith.constant dense<0.000000e+00> : vector<16x256xf32>
    %59 = tpu.matmul %49, %58, %cst_46 {dimension_numbers = #tpu.dot_dimension_numbers<[1], [0], [0], [1], [0, 0, 1, 1], [], []>} : vector<16x256xbf16>, vector<256x256xbf16>, vector<16x256xf32> -> vector<16x256xf32>
    %60 = vector.extract_strided_slice %12 {offsets = [1, 0], sizes = [1, 256], strides = [1, 1]} : vector<4x256xf32> to vector<1x256xf32>
    %61 = vector.broadcast %60 : vector<1x256xf32> to vector<16x256xf32>
    %62 = arith.addf %59, %61 : vector<16x256xf32>
    %63 = arith.truncf %62 : vector<16x256xf32> to vector<16x256xbf16>
    %c0_47 = arith.constant 0 : index
    %c2 = arith.constant 2 : index
    %c0_48 = arith.constant 0 : index
    %c0_49 = arith.constant 0 : index
    %64 = vector.load %arg9[%c0_47, %c2, %c0_48, %c0_49] : memref<1x4x256x256xbf16, #tpu.memory_space<vmem>>, vector<1x1x256x256xbf16>
    %65 = vector.shape_cast %64 : vector<1x1x256x256xbf16> to vector<256x256xbf16>
    %cst_50 = arith.constant dense<0.000000e+00> : vector<16x256xf32>
    %66 = tpu.matmul %49, %65, %cst_50 {dimension_numbers = #tpu.dot_dimension_numbers<[1], [0], [0], [1], [0, 0, 1, 1], [], []>} : vector<16x256xbf16>, vector<256x256xbf16>, vector<16x256xf32> -> vector<16x256xf32>
    %67 = vector.extract_strided_slice %12 {offsets = [2, 0], sizes = [1, 256], strides = [1, 1]} : vector<4x256xf32> to vector<1x256xf32>
    %68 = vector.broadcast %67 : vector<1x256xf32> to vector<16x256xf32>
    %69 = arith.addf %66, %68 : vector<16x256xf32>
    %70 = arith.truncf %69 : vector<16x256xf32> to vector<16x256xbf16>
    %71 = vector.extract_strided_slice %56 {offsets = [0, 0], sizes = [16, 128], strides = [1, 1]} : vector<16x256xbf16> to vector<16x128xbf16>
    %72 = vector.shape_cast %71 : vector<16x128xbf16> to vector<2x8x128xbf16>
    %73 = vector.extract_strided_slice %63 {offsets = [0, 0], sizes = [16, 128], strides = [1, 1]} : vector<16x256xbf16> to vector<16x128xbf16>
    %74 = vector.shape_cast %73 : vector<16x128xbf16> to vector<2x8x128xbf16>
    %75 = vector.extract_strided_slice %70 {offsets = [0, 0], sizes = [16, 128], strides = [1, 1]} : vector<16x256xbf16> to vector<16x128xbf16>
    %76 = vector.shape_cast %75 : vector<16x128xbf16> to vector<2x8x128xbf16>
    "tpu.trace_start"() <{level = 10 : i32, message = "bqd,bkd->bqk"}> : () -> ()
    %cst_51 = arith.constant dense<0.000000e+00> : vector<2x8x8xf32>
    %77 = tpu.matmul %72, %74, %cst_51 {dimension_numbers = #tpu.dot_dimension_numbers<[2], [2], [1], [1], [0, 0, 0, 1, 1, 1], [0], [0]>} : vector<2x8x128xbf16>, vector<2x8x128xbf16>, vector<2x8x8xf32> -> vector<2x8x8xf32>
    "tpu.trace_stop"() : () -> ()
    %cst_52 = arith.constant 0.0883883461 : f32
    %78 = vector.broadcast %cst_52 : f32 to vector<2x8x8xf32>
    %79 = arith.mulf %77, %78 : vector<2x8x8xf32>
    %80 = vector.broadcast %6 : vector<2x1x8xf32> to vector<2x8x8xf32>
    %81 = arith.addf %79, %80 : vector<2x8x8xf32>
    %cst_53 = arith.constant dense<0xFF800000> : vector<2x8xf32>
    %82 = vector.multi_reduction <maximumf>, %81, %cst_53 [2] : vector<2x8x8xf32> to vector<2x8xf32>
    %83 = vector.shape_cast %82 : vector<2x8xf32> to vector<2x8x1xf32>
    %84 = vector.broadcast %83 : vector<2x8x1xf32> to vector<2x8x8xf32>
    %85 = arith.subf %81, %84 : vector<2x8x8xf32>
    %86 = math.exp %85 : vector<2x8x8xf32>
    %cst_54 = arith.constant dense<0.000000e+00> : vector<2x8xf32>
    %87 = vector.multi_reduction <add>, %86, %cst_54 [2] : vector<2x8x8xf32> to vector<2x8xf32>
    %88 = vector.shape_cast %87 : vector<2x8xf32> to vector<2x8x1xf32>
    %89 = tpu.reciprocal %88 {approx = true} : vector<2x8x1xf32> -> vector<2x8x1xf32>
    %90 = vector.broadcast %89 : vector<2x8x1xf32> to vector<2x8x8xf32>
    %91 = arith.mulf %86, %90 : vector<2x8x8xf32>
    %92 = vector.broadcast %5 : vector<2x1x8xf32> to vector<2x8x8xf32>
    %93 = arith.mulf %91, %92 : vector<2x8x8xf32>
    %94 = arith.truncf %93 : vector<2x8x8xf32> to vector<2x8x8xbf16>
    "tpu.trace_start"() <{level = 10 : i32, message = "bqk,bkd->bqd"}> : () -> ()
    %cst_55 = arith.constant dense<0.000000e+00> : vector<2x8x128xf32>
    %95 = tpu.matmul %94, %76, %cst_55 {dimension_numbers = #tpu.dot_dimension_numbers<[2], [1], [1], [2], [0, 0, 0, 1, 1, 2], [0], [0]>} : vector<2x8x8xbf16>, vector<2x8x128xbf16>, vector<2x8x128xf32> -> vector<2x8x128xf32>
    "tpu.trace_stop"() : () -> ()
    %96 = vector.shape_cast %95 : vector<2x8x128xf32> to vector<16x128xf32>
    %97 = arith.truncf %96 : vector<16x128xf32> to vector<16x128xbf16>
    %98 = vector.extract_strided_slice %56 {offsets = [0, 128], sizes = [16, 128], strides = [1, 1]} : vector<16x256xbf16> to vector<16x128xbf16>
    %99 = vector.shape_cast %98 : vector<16x128xbf16> to vector<2x8x128xbf16>
    %100 = vector.extract_strided_slice %63 {offsets = [0, 128], sizes = [16, 128], strides = [1, 1]} : vector<16x256xbf16> to vector<16x128xbf16>
    %101 = vector.shape_cast %100 : vector<16x128xbf16> to vector<2x8x128xbf16>
    %102 = vector.extract_strided_slice %70 {offsets = [0, 128], sizes = [16, 128], strides = [1, 1]} : vector<16x256xbf16> to vector<16x128xbf16>
    %103 = vector.shape_cast %102 : vector<16x128xbf16> to vector<2x8x128xbf16>
    "tpu.trace_start"() <{level = 10 : i32, message = "bqd,bkd->bqk"}> : () -> ()
    %cst_56 = arith.constant dense<0.000000e+00> : vector<2x8x8xf32>
    %104 = tpu.matmul %99, %101, %cst_56 {dimension_numbers = #tpu.dot_dimension_numbers<[2], [2], [1], [1], [0, 0, 0, 1, 1, 1], [0], [0]>} : vector<2x8x128xbf16>, vector<2x8x128xbf16>, vector<2x8x8xf32> -> vector<2x8x8xf32>
    "tpu.trace_stop"() : () -> ()
    %cst_57 = arith.constant 0.0883883461 : f32
    %105 = vector.broadcast %cst_57 : f32 to vector<2x8x8xf32>
    %106 = arith.mulf %104, %105 : vector<2x8x8xf32>
    %107 = vector.broadcast %6 : vector<2x1x8xf32> to vector<2x8x8xf32>
    %108 = arith.addf %106, %107 : vector<2x8x8xf32>
    %cst_58 = arith.constant dense<0xFF800000> : vector<2x8xf32>
    %109 = vector.multi_reduction <maximumf>, %108, %cst_58 [2] : vector<2x8x8xf32> to vector<2x8xf32>
    %110 = vector.shape_cast %109 : vector<2x8xf32> to vector<2x8x1xf32>
    %111 = vector.broadcast %110 : vector<2x8x1xf32> to vector<2x8x8xf32>
    %112 = arith.subf %108, %111 : vector<2x8x8xf32>
    %113 = math.exp %112 : vector<2x8x8xf32>
    %cst_59 = arith.constant dense<0.000000e+00> : vector<2x8xf32>
    %114 = vector.multi_reduction <add>, %113, %cst_59 [2] : vector<2x8x8xf32> to vector<2x8xf32>
    %115 = vector.shape_cast %114 : vector<2x8xf32> to vector<2x8x1xf32>
    %116 = tpu.reciprocal %115 {approx = true} : vector<2x8x1xf32> -> vector<2x8x1xf32>
    %117 = vector.broadcast %116 : vector<2x8x1xf32> to vector<2x8x8xf32>
    %118 = arith.mulf %113, %117 : vector<2x8x8xf32>
    %119 = vector.broadcast %5 : vector<2x1x8xf32> to vector<2x8x8xf32>
    %120 = arith.mulf %118, %119 : vector<2x8x8xf32>
    %121 = arith.truncf %120 : vector<2x8x8xf32> to vector<2x8x8xbf16>
    "tpu.trace_start"() <{level = 10 : i32, message = "bqk,bkd->bqd"}> : () -> ()
    %cst_60 = arith.constant dense<0.000000e+00> : vector<2x8x128xf32>
    %122 = tpu.matmul %121, %103, %cst_60 {dimension_numbers = #tpu.dot_dimension_numbers<[2], [1], [1], [2], [0, 0, 0, 1, 1, 2], [0], [0]>} : vector<2x8x8xbf16>, vector<2x8x128xbf16>, vector<2x8x128xf32> -> vector<2x8x128xf32>
    "tpu.trace_stop"() : () -> ()
    %123 = vector.shape_cast %122 : vector<2x8x128xf32> to vector<16x128xf32>
    %124 = arith.truncf %123 : vector<16x128xf32> to vector<16x128xbf16>
    %125 = tpu.concatenate %97, %124 in 1 : vector<16x128xbf16>, vector<16x128xbf16> -> vector<16x256xbf16>
    %c0_61 = arith.constant 0 : index
    %c3 = arith.constant 3 : index
    %c0_62 = arith.constant 0 : index
    %c0_63 = arith.constant 0 : index
    %126 = vector.load %arg9[%c0_61, %c3, %c0_62, %c0_63] : memref<1x4x256x256xbf16, #tpu.memory_space<vmem>>, vector<1x1x256x256xbf16>
    %127 = vector.shape_cast %126 : vector<1x1x256x256xbf16> to vector<256x256xbf16>
    %cst_64 = arith.constant dense<0.000000e+00> : vector<16x256xf32>
    %128 = tpu.matmul %125, %127, %cst_64 {dimension_numbers = #tpu.dot_dimension_numbers<[1], [0], [0], [1], [0, 0, 1, 1], [], []>} : vector<16x256xbf16>, vector<256x256xbf16>, vector<16x256xf32> -> vector<16x256xf32>
    %129 = vector.extract_strided_slice %12 {offsets = [3, 0], sizes = [1, 256], strides = [1, 1]} : vector<4x256xf32> to vector<1x256xf32>
    %130 = vector.broadcast %129 : vector<1x256xf32> to vector<16x256xf32>
    %131 = arith.addf %128, %130 : vector<16x256xf32>
    %132 = vector.shape_cast %131 : vector<16x256xf32> to vector<2x8x256xf32>
    %133 = arith.addf %3, %132 : vector<2x8x256xf32>
    %134 = vector.extract_strided_slice %10 {offsets = [1, 0, 0], sizes = [1, 1, 256], strides = [1, 1, 1]} : vector<3x2x256xf32> to vector<1x1x256xf32>
    %135 = vector.shape_cast %134 : vector<1x1x256xf32> to vector<1x256xf32>
    %136 = vector.extract_strided_slice %10 {offsets = [1, 1, 0], sizes = [1, 1, 256], strides = [1, 1, 1]} : vector<3x2x256xf32> to vector<1x1x256xf32>
    %137 = vector.shape_cast %136 : vector<1x1x256xf32> to vector<1x256xf32>
    %cst_65 = arith.constant dense<0.000000e+00> : vector<2x8xf32>
    %138 = vector.multi_reduction <add>, %133, %cst_65 [2] : vector<2x8x256xf32> to vector<2x8xf32>
    %139 = vector.shape_cast %138 : vector<2x8xf32> to vector<2x8x1xf32>
    %cst_66 = arith.constant 2.560000e+02 : f32
    %140 = vector.broadcast %cst_66 : f32 to vector<2x8x1xf32>
    %141 = arith.divf %139, %140 : vector<2x8x1xf32>
    %142 = vector.broadcast %141 : vector<2x8x1xf32> to vector<2x8x256xf32>
    %143 = arith.subf %133, %142 : vector<2x8x256xf32>
    %144 = arith.mulf %143, %143 : vector<2x8x256xf32>
    %cst_67 = arith.constant dense<0.000000e+00> : vector<2x8xf32>
    %145 = vector.multi_reduction <add>, %144, %cst_67 [2] : vector<2x8x256xf32> to vector<2x8xf32>
    %146 = vector.shape_cast %145 : vector<2x8xf32> to vector<2x8x1xf32>
    %cst_68 = arith.constant 2.560000e+02 : f32
    %147 = vector.broadcast %cst_68 : f32 to vector<2x8x1xf32>
    %148 = arith.divf %146, %147 : vector<2x8x1xf32>
    %149 = vector.broadcast %141 : vector<2x8x1xf32> to vector<2x8x256xf32>
    %150 = arith.subf %133, %149 : vector<2x8x256xf32>
    %cst_69 = arith.constant 9.99999996E-13 : f32
    %151 = vector.broadcast %cst_69 : f32 to vector<2x8x1xf32>
    %152 = arith.addf %148, %151 : vector<2x8x1xf32>
    %153 = math.rsqrt %152 : vector<2x8x1xf32>
    %154 = vector.broadcast %153 : vector<2x8x1xf32> to vector<2x8x256xf32>
    %155 = arith.mulf %150, %154 : vector<2x8x256xf32>
    %156 = vector.shape_cast %135 : vector<1x256xf32> to vector<1x1x256xf32>
    %157 = vector.broadcast %156 : vector<1x1x256xf32> to vector<2x8x256xf32>
    %158 = arith.mulf %155, %157 : vector<2x8x256xf32>
    %159 = vector.shape_cast %137 : vector<1x256xf32> to vector<1x1x256xf32>
    %160 = vector.broadcast %159 : vector<1x1x256xf32> to vector<2x8x256xf32>
    %161 = arith.addf %158, %160 : vector<2x8x256xf32>
    %162 = arith.truncf %161 : vector<2x8x256xf32> to vector<2x8x256xbf16>
    %163 = vector.shape_cast %162 : vector<2x8x256xbf16> to vector<16x256xbf16>
    %164 = vector.shape_cast %4 : vector<2x16x256xbf16> to vector<32x256xbf16>
    %c0_70 = arith.constant 0 : index
    %c0_71 = arith.constant 0 : index
    %c0_72 = arith.constant 0 : index
    %c0_73 = arith.constant 0 : index
    %165 = vector.load %arg11[%c0_70, %c0_71, %c0_72, %c0_73] : memref<1x4x256x256xbf16, #tpu.memory_space<vmem>>, vector<1x1x256x256xbf16>
    %166 = vector.shape_cast %165 : vector<1x1x256x256xbf16> to vector<256x256xbf16>
    %cst_74 = arith.constant dense<0.000000e+00> : vector<16x256xf32>
    %167 = tpu.matmul %163, %166, %cst_74 {dimension_numbers = #tpu.dot_dimension_numbers<[1], [0], [0], [1], [0, 0, 1, 1], [], []>} : vector<16x256xbf16>, vector<256x256xbf16>, vector<16x256xf32> -> vector<16x256xf32>
    %168 = vector.extract_strided_slice %14 {offsets = [0, 0], sizes = [1, 256], strides = [1, 1]} : vector<4x256xf32> to vector<1x256xf32>
    %169 = vector.broadcast %168 : vector<1x256xf32> to vector<16x256xf32>
    %170 = arith.addf %167, %169 : vector<16x256xf32>
    %171 = arith.truncf %170 : vector<16x256xf32> to vector<16x256xbf16>
    %c0_75 = arith.constant 0 : index
    %c1_76 = arith.constant 1 : index
    %c0_77 = arith.constant 0 : index
    %c0_78 = arith.constant 0 : index
    %172 = vector.load %arg11[%c0_75, %c1_76, %c0_77, %c0_78] : memref<1x4x256x256xbf16, #tpu.memory_space<vmem>>, vector<1x1x256x256xbf16>
    %173 = vector.shape_cast %172 : vector<1x1x256x256xbf16> to vector<256x256xbf16>
    %cst_79 = arith.constant dense<0.000000e+00> : vector<32x256xf32>
    %174 = tpu.matmul %164, %173, %cst_79 {dimension_numbers = #tpu.dot_dimension_numbers<[1], [0], [0], [1], [0, 0, 1, 1], [], []>} : vector<32x256xbf16>, vector<256x256xbf16>, vector<32x256xf32> -> vector<32x256xf32>
    %175 = vector.extract_strided_slice %14 {offsets = [1, 0], sizes = [1, 256], strides = [1, 1]} : vector<4x256xf32> to vector<1x256xf32>
    %176 = vector.broadcast %175 : vector<1x256xf32> to vector<32x256xf32>
    %177 = arith.addf %174, %176 : vector<32x256xf32>
    %178 = arith.truncf %177 : vector<32x256xf32> to vector<32x256xbf16>
    %c0_80 = arith.constant 0 : index
    %c2_81 = arith.constant 2 : index
    %c0_82 = arith.constant 0 : index
    %c0_83 = arith.constant 0 : index
    %179 = vector.load %arg11[%c0_80, %c2_81, %c0_82, %c0_83] : memref<1x4x256x256xbf16, #tpu.memory_space<vmem>>, vector<1x1x256x256xbf16>
    %180 = vector.shape_cast %179 : vector<1x1x256x256xbf16> to vector<256x256xbf16>
    %cst_84 = arith.constant dense<0.000000e+00> : vector<32x256xf32>
    %181 = tpu.matmul %164, %180, %cst_84 {dimension_numbers = #tpu.dot_dimension_numbers<[1], [0], [0], [1], [0, 0, 1, 1], [], []>} : vector<32x256xbf16>, vector<256x256xbf16>, vector<32x256xf32> -> vector<32x256xf32>
    %182 = vector.extract_strided_slice %14 {offsets = [2, 0], sizes = [1, 256], strides = [1, 1]} : vector<4x256xf32> to vector<1x256xf32>
    %183 = vector.broadcast %182 : vector<1x256xf32> to vector<32x256xf32>
    %184 = arith.addf %181, %183 : vector<32x256xf32>
    %185 = arith.truncf %184 : vector<32x256xf32> to vector<32x256xbf16>
    %186 = vector.extract_strided_slice %171 {offsets = [0, 0], sizes = [16, 128], strides = [1, 1]} : vector<16x256xbf16> to vector<16x128xbf16>
    %187 = vector.shape_cast %186 : vector<16x128xbf16> to vector<2x8x128xbf16>
    %188 = vector.extract_strided_slice %178 {offsets = [0, 0], sizes = [32, 128], strides = [1, 1]} : vector<32x256xbf16> to vector<32x128xbf16>
    %189 = vector.shape_cast %188 : vector<32x128xbf16> to vector<2x16x128xbf16>
    %190 = vector.extract_strided_slice %185 {offsets = [0, 0], sizes = [32, 128], strides = [1, 1]} : vector<32x256xbf16> to vector<32x128xbf16>
    %191 = vector.shape_cast %190 : vector<32x128xbf16> to vector<2x16x128xbf16>
    "tpu.trace_start"() <{level = 10 : i32, message = "bqd,bkd->bqk"}> : () -> ()
    %cst_85 = arith.constant dense<0.000000e+00> : vector<2x8x16xf32>
    %192 = tpu.matmul %187, %189, %cst_85 {dimension_numbers = #tpu.dot_dimension_numbers<[2], [2], [1], [1], [0, 0, 0, 1, 1, 1], [0], [0]>} : vector<2x8x128xbf16>, vector<2x16x128xbf16>, vector<2x8x16xf32> -> vector<2x8x16xf32>
    "tpu.trace_stop"() : () -> ()
    %cst_86 = arith.constant 0.0883883461 : f32
    %193 = vector.broadcast %cst_86 : f32 to vector<2x8x16xf32>
    %194 = arith.mulf %192, %193 : vector<2x8x16xf32>
    %195 = vector.broadcast %8 : vector<2x1x16xf32> to vector<2x8x16xf32>
    %196 = arith.addf %194, %195 : vector<2x8x16xf32>
    %cst_87 = arith.constant dense<0xFF800000> : vector<2x8xf32>
    %197 = vector.multi_reduction <maximumf>, %196, %cst_87 [2] : vector<2x8x16xf32> to vector<2x8xf32>
    %198 = vector.shape_cast %197 : vector<2x8xf32> to vector<2x8x1xf32>
    %199 = vector.broadcast %198 : vector<2x8x1xf32> to vector<2x8x16xf32>
    %200 = arith.subf %196, %199 : vector<2x8x16xf32>
    %201 = math.exp %200 : vector<2x8x16xf32>
    %cst_88 = arith.constant dense<0.000000e+00> : vector<2x8xf32>
    %202 = vector.multi_reduction <add>, %201, %cst_88 [2] : vector<2x8x16xf32> to vector<2x8xf32>
    %203 = vector.shape_cast %202 : vector<2x8xf32> to vector<2x8x1xf32>
    %204 = tpu.reciprocal %203 {approx = true} : vector<2x8x1xf32> -> vector<2x8x1xf32>
    %205 = vector.broadcast %204 : vector<2x8x1xf32> to vector<2x8x16xf32>
    %206 = arith.mulf %201, %205 : vector<2x8x16xf32>
    %207 = vector.broadcast %7 : vector<2x1x16xf32> to vector<2x8x16xf32>
    %208 = arith.mulf %206, %207 : vector<2x8x16xf32>
    %209 = arith.truncf %208 : vector<2x8x16xf32> to vector<2x8x16xbf16>
    "tpu.trace_start"() <{level = 10 : i32, message = "bqk,bkd->bqd"}> : () -> ()
    %cst_89 = arith.constant dense<0.000000e+00> : vector<2x8x128xf32>
    %210 = tpu.matmul %209, %191, %cst_89 {dimension_numbers = #tpu.dot_dimension_numbers<[2], [1], [1], [2], [0, 0, 0, 1, 1, 2], [0], [0]>} : vector<2x8x16xbf16>, vector<2x16x128xbf16>, vector<2x8x128xf32> -> vector<2x8x128xf32>
    "tpu.trace_stop"() : () -> ()
    %211 = vector.shape_cast %210 : vector<2x8x128xf32> to vector<16x128xf32>
    %212 = arith.truncf %211 : vector<16x128xf32> to vector<16x128xbf16>
    %213 = vector.extract_strided_slice %171 {offsets = [0, 128], sizes = [16, 128], strides = [1, 1]} : vector<16x256xbf16> to vector<16x128xbf16>
    %214 = vector.shape_cast %213 : vector<16x128xbf16> to vector<2x8x128xbf16>
    %215 = vector.extract_strided_slice %178 {offsets = [0, 128], sizes = [32, 128], strides = [1, 1]} : vector<32x256xbf16> to vector<32x128xbf16>
    %216 = vector.shape_cast %215 : vector<32x128xbf16> to vector<2x16x128xbf16>
    %217 = vector.extract_strided_slice %185 {offsets = [0, 128], sizes = [32, 128], strides = [1, 1]} : vector<32x256xbf16> to vector<32x128xbf16>
    %218 = vector.shape_cast %217 : vector<32x128xbf16> to vector<2x16x128xbf16>
    "tpu.trace_start"() <{level = 10 : i32, message = "bqd,bkd->bqk"}> : () -> ()
    %cst_90 = arith.constant dense<0.000000e+00> : vector<2x8x16xf32>
    %219 = tpu.matmul %214, %216, %cst_90 {dimension_numbers = #tpu.dot_dimension_numbers<[2], [2], [1], [1], [0, 0, 0, 1, 1, 1], [0], [0]>} : vector<2x8x128xbf16>, vector<2x16x128xbf16>, vector<2x8x16xf32> -> vector<2x8x16xf32>
    "tpu.trace_stop"() : () -> ()
    %cst_91 = arith.constant 0.0883883461 : f32
    %220 = vector.broadcast %cst_91 : f32 to vector<2x8x16xf32>
    %221 = arith.mulf %219, %220 : vector<2x8x16xf32>
    %222 = vector.broadcast %8 : vector<2x1x16xf32> to vector<2x8x16xf32>
    %223 = arith.addf %221, %222 : vector<2x8x16xf32>
    %cst_92 = arith.constant dense<0xFF800000> : vector<2x8xf32>
    %224 = vector.multi_reduction <maximumf>, %223, %cst_92 [2] : vector<2x8x16xf32> to vector<2x8xf32>
    %225 = vector.shape_cast %224 : vector<2x8xf32> to vector<2x8x1xf32>
    %226 = vector.broadcast %225 : vector<2x8x1xf32> to vector<2x8x16xf32>
    %227 = arith.subf %223, %226 : vector<2x8x16xf32>
    %228 = math.exp %227 : vector<2x8x16xf32>
    %cst_93 = arith.constant dense<0.000000e+00> : vector<2x8xf32>
    %229 = vector.multi_reduction <add>, %228, %cst_93 [2] : vector<2x8x16xf32> to vector<2x8xf32>
    %230 = vector.shape_cast %229 : vector<2x8xf32> to vector<2x8x1xf32>
    %231 = tpu.reciprocal %230 {approx = true} : vector<2x8x1xf32> -> vector<2x8x1xf32>
    %232 = vector.broadcast %231 : vector<2x8x1xf32> to vector<2x8x16xf32>
    %233 = arith.mulf %228, %232 : vector<2x8x16xf32>
    %234 = vector.broadcast %7 : vector<2x1x16xf32> to vector<2x8x16xf32>
    %235 = arith.mulf %233, %234 : vector<2x8x16xf32>
    %236 = arith.truncf %235 : vector<2x8x16xf32> to vector<2x8x16xbf16>
    "tpu.trace_start"() <{level = 10 : i32, message = "bqk,bkd->bqd"}> : () -> ()
    %cst_94 = arith.constant dense<0.000000e+00> : vector<2x8x128xf32>
    %237 = tpu.matmul %236, %218, %cst_94 {dimension_numbers = #tpu.dot_dimension_numbers<[2], [1], [1], [2], [0, 0, 0, 1, 1, 2], [0], [0]>} : vector<2x8x16xbf16>, vector<2x16x128xbf16>, vector<2x8x128xf32> -> vector<2x8x128xf32>
    "tpu.trace_stop"() : () -> ()
    %238 = vector.shape_cast %237 : vector<2x8x128xf32> to vector<16x128xf32>
    %239 = arith.truncf %238 : vector<16x128xf32> to vector<16x128xbf16>
    %240 = tpu.concatenate %212, %239 in 1 : vector<16x128xbf16>, vector<16x128xbf16> -> vector<16x256xbf16>
    %c0_95 = arith.constant 0 : index
    %c3_96 = arith.constant 3 : index
    %c0_97 = arith.constant 0 : index
    %c0_98 = arith.constant 0 : index
    %241 = vector.load %arg11[%c0_95, %c3_96, %c0_97, %c0_98] : memref<1x4x256x256xbf16, #tpu.memory_space<vmem>>, vector<1x1x256x256xbf16>
    %242 = vector.shape_cast %241 : vector<1x1x256x256xbf16> to vector<256x256xbf16>
    %cst_99 = arith.constant dense<0.000000e+00> : vector<16x256xf32>
    %243 = tpu.matmul %240, %242, %cst_99 {dimension_numbers = #tpu.dot_dimension_numbers<[1], [0], [0], [1], [0, 0, 1, 1], [], []>} : vector<16x256xbf16>, vector<256x256xbf16>, vector<16x256xf32> -> vector<16x256xf32>
    %244 = vector.extract_strided_slice %14 {offsets = [3, 0], sizes = [1, 256], strides = [1, 1]} : vector<4x256xf32> to vector<1x256xf32>
    %245 = vector.broadcast %244 : vector<1x256xf32> to vector<16x256xf32>
    %246 = arith.addf %243, %245 : vector<16x256xf32>
    %247 = vector.shape_cast %246 : vector<16x256xf32> to vector<2x8x256xf32>
    %248 = arith.addf %133, %247 : vector<2x8x256xf32>
    %249 = vector.extract_strided_slice %10 {offsets = [2, 0, 0], sizes = [1, 1, 256], strides = [1, 1, 1]} : vector<3x2x256xf32> to vector<1x1x256xf32>
    %250 = vector.shape_cast %249 : vector<1x1x256xf32> to vector<1x256xf32>
    %251 = vector.extract_strided_slice %10 {offsets = [2, 1, 0], sizes = [1, 1, 256], strides = [1, 1, 1]} : vector<3x2x256xf32> to vector<1x1x256xf32>
    %252 = vector.shape_cast %251 : vector<1x1x256xf32> to vector<1x256xf32>
    %cst_100 = arith.constant dense<0.000000e+00> : vector<2x8xf32>
    %253 = vector.multi_reduction <add>, %248, %cst_100 [2] : vector<2x8x256xf32> to vector<2x8xf32>
    %254 = vector.shape_cast %253 : vector<2x8xf32> to vector<2x8x1xf32>
    %cst_101 = arith.constant 2.560000e+02 : f32
    %255 = vector.broadcast %cst_101 : f32 to vector<2x8x1xf32>
    %256 = arith.divf %254, %255 : vector<2x8x1xf32>
    %257 = vector.broadcast %256 : vector<2x8x1xf32> to vector<2x8x256xf32>
    %258 = arith.subf %248, %257 : vector<2x8x256xf32>
    %259 = arith.mulf %258, %258 : vector<2x8x256xf32>
    %cst_102 = arith.constant dense<0.000000e+00> : vector<2x8xf32>
    %260 = vector.multi_reduction <add>, %259, %cst_102 [2] : vector<2x8x256xf32> to vector<2x8xf32>
    %261 = vector.shape_cast %260 : vector<2x8xf32> to vector<2x8x1xf32>
    %cst_103 = arith.constant 2.560000e+02 : f32
    %262 = vector.broadcast %cst_103 : f32 to vector<2x8x1xf32>
    %263 = arith.divf %261, %262 : vector<2x8x1xf32>
    %264 = vector.broadcast %256 : vector<2x8x1xf32> to vector<2x8x256xf32>
    %265 = arith.subf %248, %264 : vector<2x8x256xf32>
    %cst_104 = arith.constant 9.99999996E-13 : f32
    %266 = vector.broadcast %cst_104 : f32 to vector<2x8x1xf32>
    %267 = arith.addf %263, %266 : vector<2x8x1xf32>
    %268 = math.rsqrt %267 : vector<2x8x1xf32>
    %269 = vector.broadcast %268 : vector<2x8x1xf32> to vector<2x8x256xf32>
    %270 = arith.mulf %265, %269 : vector<2x8x256xf32>
    %271 = vector.shape_cast %250 : vector<1x256xf32> to vector<1x1x256xf32>
    %272 = vector.broadcast %271 : vector<1x1x256xf32> to vector<2x8x256xf32>
    %273 = arith.mulf %270, %272 : vector<2x8x256xf32>
    %274 = vector.shape_cast %252 : vector<1x256xf32> to vector<1x1x256xf32>
    %275 = vector.broadcast %274 : vector<1x1x256xf32> to vector<2x8x256xf32>
    %276 = arith.addf %273, %275 : vector<2x8x256xf32>
    %277 = arith.truncf %276 : vector<2x8x256xf32> to vector<2x8x256xbf16>
    %278 = vector.shape_cast %277 : vector<2x8x256xbf16> to vector<16x256xbf16>
    %c0_105 = arith.constant 0 : index
    %c0_106 = arith.constant 0 : index
    %c0_107 = arith.constant 0 : index
    %279 = vector.load %arg13[%c0_105, %c0_106, %c0_107] : memref<1x256x512xbf16, #tpu.memory_space<vmem>>, vector<1x256x512xbf16>
    %280 = vector.shape_cast %279 : vector<1x256x512xbf16> to vector<256x512xbf16>
    %cst_108 = arith.constant dense<0.000000e+00> : vector<16x512xf32>
    %281 = tpu.matmul %278, %280, %cst_108 {dimension_numbers = #tpu.dot_dimension_numbers<[1], [0], [0], [1], [0, 0, 1, 1], [], []>} : vector<16x256xbf16>, vector<256x512xbf16>, vector<16x512xf32> -> vector<16x512xf32>
    %282 = vector.broadcast %16 : vector<1x512xf32> to vector<16x512xf32>
    %283 = arith.addf %281, %282 : vector<16x512xf32>
    %cst_109 = arith.constant 0.000000e+00 : f32
    %284 = vector.broadcast %cst_109 : f32 to vector<16x512xf32>
    %285 = arith.maximumf %283, %284 : vector<16x512xf32>
    %286 = arith.truncf %285 : vector<16x512xf32> to vector<16x512xbf16>
    %c0_110 = arith.constant 0 : index
    %c0_111 = arith.constant 0 : index
    %c0_112 = arith.constant 0 : index
    %287 = vector.load %arg15[%c0_110, %c0_111, %c0_112] : memref<1x512x256xbf16, #tpu.memory_space<vmem>>, vector<1x512x256xbf16>
    %288 = vector.shape_cast %287 : vector<1x512x256xbf16> to vector<512x256xbf16>
    %cst_113 = arith.constant dense<0.000000e+00> : vector<16x256xf32>
    %289 = tpu.matmul %286, %288, %cst_113 {dimension_numbers = #tpu.dot_dimension_numbers<[1], [0], [0], [1], [0, 0, 1, 1], [], []>} : vector<16x512xbf16>, vector<512x256xbf16>, vector<16x256xf32> -> vector<16x256xf32>
    %290 = vector.broadcast %18 : vector<1x256xf32> to vector<16x256xf32>
    %291 = arith.addf %289, %290 : vector<16x256xf32>
    %292 = vector.shape_cast %291 : vector<16x256xf32> to vector<2x8x256xf32>
    %293 = arith.addf %248, %292 : vector<2x8x256xf32>
    %c0_114 = arith.constant 0 : index
    %c0_115 = arith.constant 0 : index
    %c0_116 = arith.constant 0 : index
    %294 = vector.load %arg20[%c0_114, %c0_115, %c0_116] : memref<2x8x256xf32, #tpu.memory_space<vmem>>, vector<2x8x256xf32>
    tpu.vector_store %arg20[%c0_114, %c0_115, %c0_116], %293 {strides = array<i32>} : memref<2x8x256xf32, #tpu.memory_space<vmem>>, vector<2x8x256xf32>,
    %c1_i32 = arith.constant 1 : i32
    %295 = arith.cmpi eq, %arg1, %c1_i32 : i32
    %296 = arith.extui %295 : i1 to i32
    %c0_i32_117 = arith.constant 0 : i32
    %297 = arith.cmpi ne, %296, %c0_i32_117 : i32
    scf.if %297 {
      %c0_118 = arith.constant 0 : index
      %c0_119 = arith.constant 0 : index
      %298 = vector.load %arg17[%c0_118, %c0_119] : memref<1x256xf32, #tpu.memory_space<vmem>>, vector<1x256xf32>
      %c0_120 = arith.constant 0 : index
      %c0_121 = arith.constant 0 : index
      %299 = vector.load %arg18[%c0_120, %c0_121] : memref<1x256xf32, #tpu.memory_space<vmem>>, vector<1x256xf32>
      %cst_122 = arith.constant dense<0.000000e+00> : vector<2x8xf32>
      %300 = vector.multi_reduction <add>, %293, %cst_122 [2] : vector<2x8x256xf32> to vector<2x8xf32>
      %301 = vector.shape_cast %300 : vector<2x8xf32> to vector<2x8x1xf32>
      %cst_123 = arith.constant 2.560000e+02 : f32
      %302 = vector.broadcast %cst_123 : f32 to vector<2x8x1xf32>
      %303 = arith.divf %301, %302 : vector<2x8x1xf32>
      %304 = vector.broadcast %303 : vector<2x8x1xf32> to vector<2x8x256xf32>
      %305 = arith.subf %293, %304 : vector<2x8x256xf32>
      %306 = arith.mulf %305, %305 : vector<2x8x256xf32>
      %cst_124 = arith.constant dense<0.000000e+00> : vector<2x8xf32>
      %307 = vector.multi_reduction <add>, %306, %cst_124 [2] : vector<2x8x256xf32> to vector<2x8xf32>
      %308 = vector.shape_cast %307 : vector<2x8xf32> to vector<2x8x1xf32>
      %cst_125 = arith.constant 2.560000e+02 : f32
      %309 = vector.broadcast %cst_125 : f32 to vector<2x8x1xf32>
      %310 = arith.divf %308, %309 : vector<2x8x1xf32>
      %311 = vector.broadcast %303 : vector<2x8x1xf32> to vector<2x8x256xf32>
      %312 = arith.subf %293, %311 : vector<2x8x256xf32>
      %cst_126 = arith.constant 9.99999996E-13 : f32
      %313 = vector.broadcast %cst_126 : f32 to vector<2x8x1xf32>
      %314 = arith.addf %310, %313 : vector<2x8x1xf32>
      %315 = math.rsqrt %314 : vector<2x8x1xf32>
      %316 = vector.broadcast %315 : vector<2x8x1xf32> to vector<2x8x256xf32>
      %317 = arith.mulf %312, %316 : vector<2x8x256xf32>
      %318 = vector.shape_cast %298 : vector<1x256xf32> to vector<1x1x256xf32>
      %319 = vector.broadcast %318 : vector<1x1x256xf32> to vector<2x8x256xf32>
      %320 = arith.mulf %317, %319 : vector<2x8x256xf32>
      %321 = vector.shape_cast %299 : vector<1x256xf32> to vector<1x1x256xf32>
      %322 = vector.broadcast %321 : vector<1x1x256xf32> to vector<2x8x256xf32>
      %323 = arith.addf %320, %322 : vector<2x8x256xf32>
      %324 = arith.truncf %323 : vector<2x8x256xf32> to vector<2x8x256xbf16>
      %c0_127 = arith.constant 0 : index
      %c0_128 = arith.constant 0 : index
      %c0_129 = arith.constant 0 : index
      %325 = vector.load %arg19[%c0_127, %c0_128, %c0_129] : memref<2x8x256xbf16, #tpu.memory_space<vmem>>, vector<2x8x256xbf16>
      tpu.vector_store %arg19[%c0_127, %c0_128, %c0_129], %324 {strides = array<i32>} : memref<2x8x256xbf16, #tpu.memory_space<vmem>>, vector<2x8x256xbf16>,
    } else {
    }
    return
  }
  func.func @transform_0(%arg0: i32, %arg1: i32) -> (i32, i32, i32) {
    %c0_i32 = arith.constant 0 : i32
    %c0_i32_0 = arith.constant 0 : i32
    %c0_i32_1 = arith.constant 0 : i32
    return %arg0, %c0_i32, %c0_i32_0 : i32, i32, i32
  }
  func.func @transform_1(%arg0: i32, %arg1: i32) -> (i32, i32, i32) {
    %c0_i32 = arith.constant 0 : i32
    %c0_i32_0 = arith.constant 0 : i32
    %c0_i32_1 = arith.constant 0 : i32
    return %arg0, %c0_i32, %c0_i32_0 : i32, i32, i32
  }
  func.func @transform_2(%arg0: i32, %arg1: i32) -> (i32, i32, i32) {
    %c0_i32 = arith.constant 0 : i32
    %c0_i32_0 = arith.constant 0 : i32
    %c0_i32_1 = arith.constant 0 : i32
    return %arg0, %c0_i32, %c0_i32_0 : i32, i32, i32
  }
  func.func @transform_3(%arg0: i32, %arg1: i32) -> (i32, i32, i32) {
    %c0_i32 = arith.constant 0 : i32
    %c0_i32_0 = arith.constant 0 : i32
    %c0_i32_1 = arith.constant 0 : i32
    return %arg0, %c0_i32, %c0_i32_0 : i32, i32, i32
  }
  func.func @transform_4(%arg0: i32, %arg1: i32) -> (i32, i32, i32) {
    %c0_i32 = arith.constant 0 : i32
    %c0_i32_0 = arith.constant 0 : i32
    %c0_i32_1 = arith.constant 0 : i32
    return %arg0, %c0_i32, %c0_i32_0 : i32, i32, i32
  }
  func.func @transform_5(%arg0: i32, %arg1: i32) -> (i32, i32, i32) {
    %c0_i32 = arith.constant 0 : i32
    %c0_i32_0 = arith.constant 0 : i32
    %c0_i32_1 = arith.constant 0 : i32
    return %arg0, %c0_i32, %c0_i32_0 : i32, i32, i32
  }
  func.func @transform_6(%arg0: i32, %arg1: i32) -> (i32, i32, i32, i32) {
    %c0_i32 = arith.constant 0 : i32
    %c0_i32_0 = arith.constant 0 : i32
    %c0_i32_1 = arith.constant 0 : i32
    %c0_i32_2 = arith.constant 0 : i32
    return %arg1, %c0_i32, %c0_i32_0, %c0_i32_1 : i32, i32, i32, i32
  }
  func.func @transform_7(%arg0: i32, %arg1: i32) -> (i32, i32, i32, i32) {
    %c0_i32 = arith.constant 0 : i32
    %c0_i32_0 = arith.constant 0 : i32
    %c0_i32_1 = arith.constant 0 : i32
    %c0_i32_2 = arith.constant 0 : i32
    return %arg1, %c0_i32, %c0_i32_0, %c0_i32_1 : i32, i32, i32, i32
  }
  func.func @transform_8(%arg0: i32, %arg1: i32) -> (i32, i32, i32) {
    %c0_i32 = arith.constant 0 : i32
    %c0_i32_0 = arith.constant 0 : i32
    %c0_i32_1 = arith.constant 0 : i32
    return %arg1, %c0_i32, %c0_i32_0 : i32, i32, i32
  }
  func.func @transform_9(%arg0: i32, %arg1: i32) -> (i32, i32, i32, i32) {
    %c0_i32 = arith.constant 0 : i32
    %c0_i32_0 = arith.constant 0 : i32
    %c0_i32_1 = arith.constant 0 : i32
    %c0_i32_2 = arith.constant 0 : i32
    return %arg1, %c0_i32, %c0_i32_0, %c0_i32_1 : i32, i32, i32, i32
  }
  func.func @transform_10(%arg0: i32, %arg1: i32) -> (i32, i32, i32) {
    %c0_i32 = arith.constant 0 : i32
    %c0_i32_0 = arith.constant 0 : i32
    %c0_i32_1 = arith.constant 0 : i32
    return %arg1, %c0_i32, %c0_i32_0 : i32, i32, i32
  }
  func.func @transform_11(%arg0: i32, %arg1: i32) -> (i32, i32, i32) {
    %c0_i32 = arith.constant 0 : i32
    %c0_i32_0 = arith.constant 0 : i32
    %c0_i32_1 = arith.constant 0 : i32
    return %arg1, %c0_i32, %c0_i32_0 : i32, i32, i32
  }
  func.func @transform_12(%arg0: i32, %arg1: i32) -> (i32, i32, i32) {
    %c0_i32 = arith.constant 0 : i32
    %c0_i32_0 = arith.constant 0 : i32
    %c0_i32_1 = arith.constant 0 : i32
    return %arg1, %c0_i32, %c0_i32_0 : i32, i32, i32
  }
  func.func @transform_13(%arg0: i32, %arg1: i32) -> (i32, i32, i32) {
    %c0_i32 = arith.constant 0 : i32
    %c0_i32_0 = arith.constant 0 : i32
    %c0_i32_1 = arith.constant 0 : i32
    return %arg1, %c0_i32, %c0_i32_0 : i32, i32, i32
  }
  func.func @transform_14(%arg0: i32, %arg1: i32) -> (i32, i32, i32) {
    %c0_i32 = arith.constant 0 : i32
    %c0_i32_0 = arith.constant 0 : i32
    %c0_i32_1 = arith.constant 0 : i32
    return %arg1, %c0_i32, %c0_i32_0 : i32, i32, i32
  }
  func.func @transform_15(%arg0: i32, %arg1: i32) -> (i32, i32) {
    %c0_i32 = arith.constant 0 : i32
    %c0_i32_0 = arith.constant 0 : i32
    %c0_i32_1 = arith.constant 0 : i32
    return %c0_i32, %c0_i32_0 : i32, i32
  }
  func.func @transform_16(%arg0: i32, %arg1: i32) -> (i32, i32) {
    %c0_i32 = arith.constant 0 : i32
    %c0_i32_0 = arith.constant 0 : i32
    %c0_i32_1 = arith.constant 0 : i32
    return %c0_i32, %c0_i32_0 : i32, i32
  }
  func.func @transform_17(%arg0: i32, %arg1: i32) -> (i32, i32, i32) {
    %c0_i32 = arith.constant 0 : i32
    %c0_i32_0 = arith.constant 0 : i32
    %c0_i32_1 = arith.constant 0 : i32
    return %arg0, %c0_i32, %c0_i32_0 : i32, i32, i32
  }
}

</mosaic_0001>

<llo_original>
// kernel: tpu_custom_call.1
$region0: #{tpu_custom_call.1}
  #allocation0 [shape = 'u32[]', space=smem, size = 0x4, offset = 0x4, fixed_abs, tag = 'smem constant byte address 0x4 - core index']
  #allocation1 [shape = 'u32[144,128]{1,0:T(1,128)}', space=vmem, size = 0x12000, scoped, tag = 'internal scratch']
  #allocation2 [shape = 'f32[2,8,256]{2,1,0:T(8,128)}', space=vmem, size = 0x4000, scoped, tag = 'scratch operand']
  %s0 = inlined_call_operand.hbm [shape: f32[2,8,256], index: 0, kind: input, shape index: {}]
  %s1 = inlined_call_operand.hbm [shape: bf16[2,16,256], index: 1, kind: input, shape index: {}]
  %s2 = inlined_call_operand.hbm [shape: f32[2,1,8], index: 2, kind: input, shape index: {}]
  %s3 = inlined_call_operand.hbm [shape: f32[2,1,8], index: 3, kind: input, shape index: {}]
  %s4 = inlined_call_operand.hbm [shape: f32[2,1,16], index: 4, kind: input, shape index: {}]
  %s5 = inlined_call_operand.hbm [shape: f32[2,1,16], index: 5, kind: input, shape index: {}]
  %s6 = inlined_call_operand.hbm [shape: f32[2,3,2,256], index: 6, kind: input, shape index: {}]
  %s7 = inlined_call_operand.hbm [shape: bf16[2,4,256,256], index: 7, kind: input, shape index: {}]
  %s8 = inlined_call_operand.hbm [shape: f32[2,4,256], index: 8, kind: input, shape index: {}]
  %s9 = inlined_call_operand.hbm [shape: bf16[2,4,256,256], index: 9, kind: input, shape index: {}]
  %s10 = inlined_call_operand.vmem [shape: f32[2,4,256], index: 10, kind: input, shape index: {}]
  %s11 = inlined_call_operand.hbm [shape: bf16[2,256,512], index: 11, kind: input, shape index: {}]
  %s12 = inlined_call_operand.hbm [shape: f32[2,1,512], index: 12, kind: input, shape index: {}]
  %s13 = inlined_call_operand.hbm [shape: bf16[2,512,256], index: 13, kind: input, shape index: {}]
  %s14 = inlined_call_operand.vmem [shape: f32[2,1,256], index: 14, kind: input, shape index: {}]
  %s15 = inlined_call_operand.vmem [shape: f32[1,256], index: 15, kind: input, shape index: {}]
  %s16 = inlined_call_operand.vmem [shape: f32[1,256], index: 16, kind: input, shape index: {}]
  %s17 = inlined_call_operand.hbm [shape: bf16[2,8,256], index: 17, kind: output, shape index: {}]
  %s18 = sld [smem:[#allocation0]]
  $region161: #{tpu_custom_call.1} parent=0
    _
  %s20 = ssub.s32 1, %s18
  %s21 = scalar_select 0, %s20, %s18
  $region1: #{tpu_custom_call.1} parent=0
    #allocation3 [shape = 'u8[16384]{0}', space=vmem, size = 0x4000, scoped, tag = 'input window, operand 0, single buffered']
    #allocation4 [shape = 's32[2]{0}', space=sflag, size = 0x8, scoped, tag = 'scoped memory for tpu_custom_call.1']
    #allocation5 [shape = 's32[2]{0}', space=sflag, size = 0x8, scoped, tag = 'scoped memory for tpu_custom_call.1']
    #allocation6 [shape = 'u8[16384]{0}', space=vmem, size = 0x4000, scoped, tag = 'input window, operand 1, single buffered']
    #allocation7 [shape = 's32[1]{0}', space=sflag, size = 0x4, scoped, tag = 'scoped memory for tpu_custom_call.1']
    #allocation8 [shape = 'u8[1024]{0}', space=vmem, size = 0x400, scoped, tag = 'input window, operand 2, single buffered']
    #allocation9 [shape = 'u8[1024]{0}', space=vmem, size = 0x400, scoped, tag = 'input window, operand 3, single buffered']
    #allocation10 [shape = 's32[1]{0}', space=sflag, size = 0x4, scoped, tag = 'scoped memory for tpu_custom_call.1']
    #allocation11 [shape = 'u8[1024]{0}', space=vmem, size = 0x400, scoped, tag = 'input window, operand 4, single buffered']
    #allocation12 [shape = 'u8[1024]{0}', space=vmem, size = 0x400, scoped, tag = 'input window, operand 5, single buffered']
    #allocation13 [shape = 's32[1]{0}', space=sflag, size = 0x4, scoped, tag = 'scoped memory for tpu_custom_call.1']
    #allocation14 [shape = 'u8[12288]{0}', space=vmem, size = 0x3000, scoped, tag = 'input window, operand 6']
    #allocation15 [shape = 'u8[1048576]{0}', space=vmem, size = 0x100000, scoped, tag = 'input window, operand 7']
    #allocation16 [shape = 'u8[8192]{0}', space=vmem, size = 0x2000, scoped, tag = 'input window, operand 8']
    #allocation17 [shape = 'u8[1048576]{0}', space=vmem, size = 0x100000, scoped, tag = 'input window, operand 9']
    #allocation18 [shape = 'u8[524288]{0}', space=vmem, size = 0x80000, scoped, tag = 'input window, operand 11']
    #allocation19 [shape = 'u8[4096]{0}', space=vmem, size = 0x1000, scoped, tag = 'input window, operand 12']
    #allocation20 [shape = 'u8[524288]{0}', space=vmem, size = 0x80000, scoped, tag = 'input window, operand 13']
    #allocation21 [shape = 'u8[8192]{0}', space=vmem, size = 0x2000, scoped, tag = 'output window, operand 0, single buffered']
    %22 = vsyncpa [#allocation4], 0
    %23 = vsyncpa [#allocation7], 0
    %24 = vsyncpa [#allocation10], 0
    %25 = vsyncpa [#allocation13], 0
    %26 = vsyncpa [#allocation5], 0
    loop: start=0, step=1, limit=4
    $region2: #{tpu_custom_call.1} parent=1 // loop_pre_header
      _
    $region3: #{tpu_custom_call.1} parent=1 // loop_header
      %s28 = sphi 0, %s32
      %p29 = scmp.ge.s32.totalorder %s28, 4
      %s35 = sphi 0, %s47
      %s36 = sphi 0, %s43
      %s37 = sphi 0, %s35
      %s38 = sphi 0, %s36
      %s39 = sphi 0, %s37
      %s40 = sphi 0, %s38
      %s50 = sphi 0, %s52
      %s53 = sphi 0, %s50
      %s54 = sphi 0, %s53
      %s70 = sphi 0, %s54
      %s76 = sphi 0, %s78
      %s79 = sphi 0, %s76
      %s80 = sphi 0, %s79
      %s96 = sphi 0, %s80
      %s102 = sphi 0, %s104
      %s105 = sphi 0, %s102
      %s106 = sphi 0, %s105
      %s122 = sphi 0, %s106
      %s128 = sphi 0, %s130
      %s131 = sphi 0, %s128
      %s132 = sphi 0, %s131
      %s148 = sphi 0, %s132
      %s154 = sphi 0, %s156
      %s157 = sphi 0, %s154
      %s158 = sphi 0, %s157
      %s174 = sphi 0, %s158
      %s180 = sphi 0, %s182
      %s183 = sphi 0, %s180
      %s184 = sphi 0, %s183
      %s200 = sphi 0, %s184
      %s206 = sphi 0, %s208
      %s209 = sphi 0, %s206
      %s210 = sphi 0, %s209
      %s226 = sphi 0, %s210
      %s232 = sphi 0, %s234
      %s235 = sphi 0, %s232
      %s236 = sphi 0, %s235
      %s252 = sphi 0, %s236
      %s258 = sphi 0, %s260
      %s261 = sphi 0, %s258
      %s262 = sphi 0, %s261
      %s278 = sphi 0, %s262
      %s284 = sphi 0, %s286
      %s287 = sphi 0, %s284
      %s288 = sphi 0, %s287
      %s304 = sphi 0, %s288
      %s310 = sphi 0, %s312
      %s313 = sphi 0, %s310
      %s314 = sphi 0, %s313
      %s330 = sphi 0, %s314
      %s336 = sphi 0, %s338
      %s339 = sphi 0, %s336
      %s340 = sphi 0, %s339
      %s356 = sphi 0, %s340
      %s362 = sphi 0, %s364
      %s365 = sphi 0, %s362
      %s366 = sphi 0, %s365
      %s382 = sphi 0, %s366
      %s388 = sphi 0, %s390
      %s391 = sphi 0, %s388
      %s392 = sphi 0, %s391
      %s408 = sphi 0, %s392
      %s414 = sphi 0, %s416
      %s417 = sphi 0, %s414
      %s418 = sphi 0, %s417
      %s434 = sphi 0, %s418
      %s438 = sphi 0, %s438
      %s440 = sphi 0, %s438
      %s441 = sphi 0, %s440
      %s455 = sphi 0, %s441
      %s459 = sphi 0, %s459
      %s461 = sphi 0, %s459
      %s462 = sphi 0, %s461
      %s476 = sphi 0, %s462
      %s482 = sphi 0, %s484
      %s485 = sphi 0, %s482
      %s486 = sphi 0, %s485
      %s502 = sphi 0, %s486
    $region4: #{tpu_custom_call.1} parent=1 // loop_header_branch
      %31 = sbr.rel (%p29) target = $region8
    $region5: #{tpu_custom_call.1} parent=1 // loop_body
      %s33 = ssub.s32 %s28, 1
      %s34 = ssub.s32 %s28, 2
      %s41 = sadd.s32 1, %s36
      %p42 = scmp.ge.s32.totalorder %s41, 2
      %s43 = scalar_select %p42, 0, %s41
      %s44 = sadd.s32 1, %s35
      %s45 = scalar_select %p42, %s44, %s35
      %p46 = scmp.ge.s32.totalorder %s45, 1
      %s47 = scalar_select %p46, 0, %s45
      %s48 = ssub.s32 %s35, %s47
      %p49 = scmp.eq.s32.totalorder %s48, 0
      %s51 = sadd.s32 %s50, 1
      %s52 = scalar_select %p49, %s50, %s51
      %p55 = pneg %p49
      %p56 = scmp.eq.s32.totalorder %s28, 1
      %p57 = por %p55, %p56
      %p58 = scmp.ne.s32.totalorder %s50, %s53
      %p59 = scmp.eq.s32.totalorder %s28, 0
      %p60 = por %p58, %p59
      %p61 = scmp.ne.s32.totalorder %s50, %s53
      %p62 = scmp.eq.s32.totalorder %s33, 1
      %p63 = por %p61, %p62
      %p64 = scmp.ne.s32.totalorder %s53, %s54
      %p65 = scmp.eq.s32.totalorder %s33, 0
      %p66 = por %p64, %p65
      %p67 = scmp.ne.s32.totalorder %s53, %s54
      %p68 = scmp.eq.s32.totalorder %s34, 1
      %p69 = por %p67, %p68
      %p71 = scmp.ne.s32.totalorder %s54, %s70
      %p72 = scmp.eq.s32.totalorder %s34, 0
      %p73 = por %p71, %p72
      %s74 = ssub.s32 %s35, %s47
      %p75 = scmp.eq.s32.totalorder %s74, 0
      %s77 = sadd.s32 %s76, 1
      %s78 = scalar_select %p75, %s76, %s77
      %p81 = pneg %p75
      %p82 = scmp.eq.s32.totalorder %s28, 1
      %p83 = por %p81, %p82
      %p84 = scmp.ne.s32.totalorder %s76, %s79
      %p85 = scmp.eq.s32.totalorder %s28, 0
      %p86 = por %p84, %p85
      %p87 = scmp.ne.s32.totalorder %s76, %s79
      %p88 = scmp.eq.s32.totalorder %s33, 1
      %p89 = por %p87, %p88
      %p90 = scmp.ne.s32.totalorder %s79, %s80
      %p91 = scmp.eq.s32.totalorder %s33, 0
      %p92 = por %p90, %p91
      %p93 = scmp.ne.s32.totalorder %s79, %s80
      %p94 = scmp.eq.s32.totalorder %s34, 1
      %p95 = por %p93, %p94
      %p97 = scmp.ne.s32.totalorder %s80, %s96
      %p98 = scmp.eq.s32.totalorder %s34, 0
      %p99 = por %p97, %p98
      %s100 = ssub.s32 %s35, %s47
      %p101 = scmp.eq.s32.totalorder %s100, 0
      %s103 = sadd.s32 %s102, 1
      %s104 = scalar_select %p101, %s102, %s103
      %p107 = pneg %p101
      %p108 = scmp.eq.s32.totalorder %s28, 1
      %p109 = por %p107, %p108
      %p110 = scmp.ne.s32.totalorder %s102, %s105
      %p111 = scmp.eq.s32.totalorder %s28, 0
      %p112 = por %p110, %p111
      %p113 = scmp.ne.s32.totalorder %s102, %s105
      %p114 = scmp.eq.s32.totalorder %s33, 1
      %p115 = por %p113, %p114
      %p116 = scmp.ne.s32.totalorder %s105, %s106
      %p117 = scmp.eq.s32.totalorder %s33, 0
      %p118 = por %p116, %p117
      %p119 = scmp.ne.s32.totalorder %s105, %s106
      %p120 = scmp.eq.s32.totalorder %s34, 1
      %p121 = por %p119, %p120
      %p123 = scmp.ne.s32.totalorder %s106, %s122
      %p124 = scmp.eq.s32.totalorder %s34, 0
      %p125 = por %p123, %p124
      %s126 = ssub.s32 %s35, %s47
      %p127 = scmp.eq.s32.totalorder %s126, 0
      %s129 = sadd.s32 %s128, 1
      %s130 = scalar_select %p127, %s128, %s129
      %p133 = pneg %p127
      %p134 = scmp.eq.s32.totalorder %s28, 1
      %p135 = por %p133, %p134
      %p136 = scmp.ne.s32.totalorder %s128, %s131
      %p137 = scmp.eq.s32.totalorder %s28, 0
      %p138 = por %p136, %p137
      %p139 = scmp.ne.s32.totalorder %s128, %s131
      %p140 = scmp.eq.s32.totalorder %s33, 1
      %p141 = por %p139, %p140
      %p142 = scmp.ne.s32.totalorder %s131, %s132
      %p143 = scmp.eq.s32.totalorder %s33, 0
      %p144 = por %p142, %p143
      %p145 = scmp.ne.s32.totalorder %s131, %s132
      %p146 = scmp.eq.s32.totalorder %s34, 1
      %p147 = por %p145, %p146
      %p149 = scmp.ne.s32.totalorder %s132, %s148
      %p150 = scmp.eq.s32.totalorder %s34, 0
      %p151 = por %p149, %p150
      %s152 = ssub.s32 %s35, %s47
      %p153 = scmp.eq.s32.totalorder %s152, 0
      %s155 = sadd.s32 %s154, 1
      %s156 = scalar_select %p153, %s154, %s155
      %p159 = pneg %p153
      %p160 = scmp.eq.s32.totalorder %s28, 1
      %p161 = por %p159, %p160
      %p162 = scmp.ne.s32.totalorder %s154, %s157
      %p163 = scmp.eq.s32.totalorder %s28, 0
      %p164 = por %p162, %p163
      %p165 = scmp.ne.s32.totalorder %s154, %s157
      %p166 = scmp.eq.s32.totalorder %s33, 1
      %p167 = por %p165, %p166
      %p168 = scmp.ne.s32.totalorder %s157, %s158
      %p169 = scmp.eq.s32.totalorder %s33, 0
      %p170 = por %p168, %p169
      %p171 = scmp.ne.s32.totalorder %s157, %s158
      %p172 = scmp.eq.s32.totalorder %s34, 1
      %p173 = por %p171, %p172
      %p175 = scmp.ne.s32.totalorder %s158, %s174
      %p176 = scmp.eq.s32.totalorder %s34, 0
      %p177 = por %p175, %p176
      %s178 = ssub.s32 %s35, %s47
      %p179 = scmp.eq.s32.totalorder %s178, 0
      %s181 = sadd.s32 %s180, 1
      %s182 = scalar_select %p179, %s180, %s181
      %p185 = pneg %p179
      %p186 = scmp.eq.s32.totalorder %s28, 1
      %p187 = por %p185, %p186
      %p188 = scmp.ne.s32.totalorder %s180, %s183
      %p189 = scmp.eq.s32.totalorder %s28, 0
      %p190 = por %p188, %p189
      %p191 = scmp.ne.s32.totalorder %s180, %s183
      %p192 = scmp.eq.s32.totalorder %s33, 1
      %p193 = por %p191, %p192
      %p194 = scmp.ne.s32.totalorder %s183, %s184
      %p195 = scmp.eq.s32.totalorder %s33, 0
      %p196 = por %p194, %p195
      %p197 = scmp.ne.s32.totalorder %s183, %s184
      %p198 = scmp.eq.s32.totalorder %s34, 1
      %p199 = por %p197, %p198
      %p201 = scmp.ne.s32.totalorder %s184, %s200
      %p202 = scmp.eq.s32.totalorder %s34, 0
      %p203 = por %p201, %p202
      %s204 = ssub.s32 %s36, %s43
      %p205 = scmp.eq.s32.totalorder %s204, 0
      %s207 = sadd.s32 %s206, 1
      %s208 = scalar_select %p205, %s206, %s207
      %p211 = pneg %p205
      %p212 = scmp.eq.s32.totalorder %s28, 1
      %p213 = por %p211, %p212
      %p214 = scmp.ne.s32.totalorder %s206, %s209
      %p215 = scmp.eq.s32.totalorder %s28, 0
      %p216 = por %p214, %p215
      %p217 = scmp.ne.s32.totalorder %s206, %s209
      %p218 = scmp.eq.s32.totalorder %s33, 1
      %p219 = por %p217, %p218
      %p220 = scmp.ne.s32.totalorder %s209, %s210
      %p221 = scmp.eq.s32.totalorder %s33, 0
      %p222 = por %p220, %p221
      %p223 = scmp.ne.s32.totalorder %s209, %s210
      %p224 = scmp.eq.s32.totalorder %s34, 1
      %p225 = por %p223, %p224
      %p227 = scmp.ne.s32.totalorder %s210, %s226
      %p228 = scmp.eq.s32.totalorder %s34, 0
      %p229 = por %p227, %p228
      %s230 = ssub.s32 %s36, %s43
      %p231 = scmp.eq.s32.totalorder %s230, 0
      %s233 = sadd.s32 %s232, 1
      %s234 = scalar_select %p231, %s232, %s233
      %p237 = pneg %p231
      %p238 = scmp.eq.s32.totalorder %s28, 1
      %p239 = por %p237, %p238
      %p240 = scmp.ne.s32.totalorder %s232, %s235
      %p241 = scmp.eq.s32.totalorder %s28, 0
      %p242 = por %p240, %p241
      %p243 = scmp.ne.s32.totalorder %s232, %s235
      %p244 = scmp.eq.s32.totalorder %s33, 1
      %p245 = por %p243, %p244
      %p246 = scmp.ne.s32.totalorder %s235, %s236
      %p247 = scmp.eq.s32.totalorder %s33, 0
      %p248 = por %p246, %p247
      %p249 = scmp.ne.s32.totalorder %s235, %s236
      %p250 = scmp.eq.s32.totalorder %s34, 1
      %p251 = por %p249, %p250
      %p253 = scmp.ne.s32.totalorder %s236, %s252
      %p254 = scmp.eq.s32.totalorder %s34, 0
      %p255 = por %p253, %p254
      %s256 = ssub.s32 %s36, %s43
      %p257 = scmp.eq.s32.totalorder %s256, 0
      %s259 = sadd.s32 %s258, 1
      %s260 = scalar_select %p257, %s258, %s259
      %p263 = pneg %p257
      %p264 = scmp.eq.s32.totalorder %s28, 1
      %p265 = por %p263, %p264
      %p266 = scmp.ne.s32.totalorder %s258, %s261
      %p267 = scmp.eq.s32.totalorder %s28, 0
      %p268 = por %p266, %p267
      %p269 = scmp.ne.s32.totalorder %s258, %s261
      %p270 = scmp.eq.s32.totalorder %s33, 1
      %p271 = por %p269, %p270
      %p272 = scmp.ne.s32.totalorder %s261, %s262
      %p273 = scmp.eq.s32.totalorder %s33, 0
      %p274 = por %p272, %p273
      %p275 = scmp.ne.s32.totalorder %s261, %s262
      %p276 = scmp.eq.s32.totalorder %s34, 1
      %p277 = por %p275, %p276
      %p279 = scmp.ne.s32.totalorder %s262, %s278
      %p280 = scmp.eq.s32.totalorder %s34, 0
      %p281 = por %p279, %p280
      %s282 = ssub.s32 %s36, %s43
      %p283 = scmp.eq.s32.totalorder %s282, 0
      %s285 = sadd.s32 %s284, 1
      %s286 = scalar_select %p283, %s284, %s285
      %p289 = pneg %p283
      %p290 = scmp.eq.s32.totalorder %s28, 1
      %p291 = por %p289, %p290
      %p292 = scmp.ne.s32.totalorder %s284, %s287
      %p293 = scmp.eq.s32.totalorder %s28, 0
      %p294 = por %p292, %p293
      %p295 = scmp.ne.s32.totalorder %s284, %s287
      %p296 = scmp.eq.s32.totalorder %s33, 1
      %p297 = por %p295, %p296
      %p298 = scmp.ne.s32.totalorder %s287, %s288
      %p299 = scmp.eq.s32.totalorder %s33, 0
      %p300 = por %p298, %p299
      %p301 = scmp.ne.s32.totalorder %s287, %s288
      %p302 = scmp.eq.s32.totalorder %s34, 1
      %p303 = por %p301, %p302
      %p305 = scmp.ne.s32.totalorder %s288, %s304
      %p306 = scmp.eq.s32.totalorder %s34, 0
      %p307 = por %p305, %p306
      %s308 = ssub.s32 %s36, %s43
      %p309 = scmp.eq.s32.totalorder %s308, 0
      %s311 = sadd.s32 %s310, 1
      %s312 = scalar_select %p309, %s310, %s311
      %p315 = pneg %p309
      %p316 = scmp.eq.s32.totalorder %s28, 1
      %p317 = por %p315, %p316
      %p318 = scmp.ne.s32.totalorder %s310, %s313
      %p319 = scmp.eq.s32.totalorder %s28, 0
      %p320 = por %p318, %p319
      %p321 = scmp.ne.s32.totalorder %s310, %s313
      %p322 = scmp.eq.s32.totalorder %s33, 1
      %p323 = por %p321, %p322
      %p324 = scmp.ne.s32.totalorder %s313, %s314
      %p325 = scmp.eq.s32.totalorder %s33, 0
      %p326 = por %p324, %p325
      %p327 = scmp.ne.s32.totalorder %s313, %s314
      %p328 = scmp.eq.s32.totalorder %s34, 1
      %p329 = por %p327, %p328
      %p331 = scmp.ne.s32.totalorder %s314, %s330
      %p332 = scmp.eq.s32.totalorder %s34, 0
      %p333 = por %p331, %p332
      %s334 = ssub.s32 %s36, %s43
      %p335 = scmp.eq.s32.totalorder %s334, 0
      %s337 = sadd.s32 %s336, 1
      %s338 = scalar_select %p335, %s336, %s337
      %p341 = pneg %p335
      %p342 = scmp.eq.s32.totalorder %s28, 1
      %p343 = por %p341, %p342
      %p344 = scmp.ne.s32.totalorder %s336, %s339
      %p345 = scmp.eq.s32.totalorder %s28, 0
      %p346 = por %p344, %p345
      %p347 = scmp.ne.s32.totalorder %s336, %s339
      %p348 = scmp.eq.s32.totalorder %s33, 1
      %p349 = por %p347, %p348
      %p350 = scmp.ne.s32.totalorder %s339, %s340
      %p351 = scmp.eq.s32.totalorder %s33, 0
      %p352 = por %p350, %p351
      %p353 = scmp.ne.s32.totalorder %s339, %s340
      %p354 = scmp.eq.s32.totalorder %s34, 1
      %p355 = por %p353, %p354
      %p357 = scmp.ne.s32.totalorder %s340, %s356
      %p358 = scmp.eq.s32.totalorder %s34, 0
      %p359 = por %p357, %p358
      %s360 = ssub.s32 %s36, %s43
      %p361 = scmp.eq.s32.totalorder %s360, 0
      %s363 = sadd.s32 %s362, 1
      %s364 = scalar_select %p361, %s362, %s363
      %p367 = pneg %p361
      %p368 = scmp.eq.s32.totalorder %s28, 1
      %p369 = por %p367, %p368
      %p370 = scmp.ne.s32.totalorder %s362, %s365
      %p371 = scmp.eq.s32.totalorder %s28, 0
      %p372 = por %p370, %p371
      %p373 = scmp.ne.s32.totalorder %s362, %s365
      %p374 = scmp.eq.s32.totalorder %s33, 1
      %p375 = por %p373, %p374
      %p376 = scmp.ne.s32.totalorder %s365, %s366
      %p377 = scmp.eq.s32.totalorder %s33, 0
      %p378 = por %p376, %p377
      %p379 = scmp.ne.s32.totalorder %s365, %s366
      %p380 = scmp.eq.s32.totalorder %s34, 1
      %p381 = por %p379, %p380
      %p383 = scmp.ne.s32.totalorder %s366, %s382
      %p384 = scmp.eq.s32.totalorder %s34, 0
      %p385 = por %p383, %p384
      %s386 = ssub.s32 %s36, %s43
      %p387 = scmp.eq.s32.totalorder %s386, 0
      %s389 = sadd.s32 %s388, 1
      %s390 = scalar_select %p387, %s388, %s389
      %p393 = pneg %p387
      %p394 = scmp.eq.s32.totalorder %s28, 1
      %p395 = por %p393, %p394
      %p396 = scmp.ne.s32.totalorder %s388, %s391
      %p397 = scmp.eq.s32.totalorder %s28, 0
      %p398 = por %p396, %p397
      %p399 = scmp.ne.s32.totalorder %s388, %s391
      %p400 = scmp.eq.s32.totalorder %s33, 1
      %p401 = por %p399, %p400
      %p402 = scmp.ne.s32.totalorder %s391, %s392
      %p403 = scmp.eq.s32.totalorder %s33, 0
      %p404 = por %p402, %p403
      %p405 = scmp.ne.s32.totalorder %s391, %s392
      %p406 = scmp.eq.s32.totalorder %s34, 1
      %p407 = por %p405, %p406
      %p409 = scmp.ne.s32.totalorder %s392, %s408
      %p410 = scmp.eq.s32.totalorder %s34, 0
      %p411 = por %p409, %p410
      %s412 = ssub.s32 %s36, %s43
      %p413 = scmp.eq.s32.totalorder %s412, 0
      %s415 = sadd.s32 %s414, 1
      %s416 = scalar_select %p413, %s414, %s415
      %p419 = pneg %p413
      %p420 = scmp.eq.s32.totalorder %s28, 1
      %p421 = por %p419, %p420
      %p422 = scmp.ne.s32.totalorder %s414, %s417
      %p423 = scmp.eq.s32.totalorder %s28, 0
      %p424 = por %p422, %p423
      %p425 = scmp.ne.s32.totalorder %s414, %s417
      %p426 = scmp.eq.s32.totalorder %s33, 1
      %p427 = por %p425, %p426
      %p428 = scmp.ne.s32.totalorder %s417, %s418
      %p429 = scmp.eq.s32.totalorder %s33, 0
      %p430 = por %p428, %p429
      %p431 = scmp.ne.s32.totalorder %s417, %s418
      %p432 = scmp.eq.s32.totalorder %s34, 1
      %p433 = por %p431, %p432
      %p435 = scmp.ne.s32.totalorder %s418, %s434
      %p436 = scmp.eq.s32.totalorder %s34, 0
      %p437 = por %p435, %p436
      %s439 = sadd.s32 %s438, 1
      %p442 = scmp.eq.s32.totalorder %s28, 1
      %p443 = scmp.ne.s32.totalorder %s438, %s440
      %p444 = scmp.eq.s32.totalorder %s28, 0
      %p445 = por %p443, %p444
      %p446 = scmp.ne.s32.totalorder %s438, %s440
      %p447 = scmp.eq.s32.totalorder %s33, 1
      %p448 = por %p446, %p447
      %p449 = scmp.ne.s32.totalorder %s440, %s441
      %p450 = scmp.eq.s32.totalorder %s33, 0
      %p451 = por %p449, %p450
      %p452 = scmp.ne.s32.totalorder %s440, %s441
      %p453 = scmp.eq.s32.totalorder %s34, 1
      %p454 = por %p452, %p453
      %p456 = scmp.ne.s32.totalorder %s441, %s455
      %p457 = scmp.eq.s32.totalorder %s34, 0
      %p458 = por %p456, %p457
      %s460 = sadd.s32 %s459, 1
      %p463 = scmp.eq.s32.totalorder %s28, 1
      %p464 = scmp.ne.s32.totalorder %s459, %s461
      %p465 = scmp.eq.s32.totalorder %s28, 0
      %p466 = por %p464, %p465
      %p467 = scmp.ne.s32.totalorder %s459, %s461
      %p468 = scmp.eq.s32.totalorder %s33, 1
      %p469 = por %p467, %p468
      %p470 = scmp.ne.s32.totalorder %s461, %s462
      %p471 = scmp.eq.s32.totalorder %s33, 0
      %p472 = por %p470, %p471
      %p473 = scmp.ne.s32.totalorder %s461, %s462
      %p474 = scmp.eq.s32.totalorder %s34, 1
      %p475 = por %p473, %p474
      %p477 = scmp.ne.s32.totalorder %s462, %s476
      %p478 = scmp.eq.s32.totalorder %s34, 0
      %p479 = por %p477, %p478
      %s480 = ssub.s32 %s35, %s47
      %p481 = scmp.eq.s32.totalorder %s480, 0
      %s483 = sadd.s32 %s482, 1
      %s484 = scalar_select %p481, %s482, %s483
      %p487 = pneg %p481
      %p488 = scmp.eq.s32.totalorder %s28, 1
      %p489 = por %p487, %p488
      %p490 = scmp.ne.s32.totalorder %s482, %s485
      %p491 = scmp.eq.s32.totalorder %s28, 0
      %p492 = por %p490, %p491
      %p493 = scmp.ne.s32.totalorder %s482, %s485
      %p494 = scmp.eq.s32.totalorder %s33, 1
      %p495 = por %p493, %p494
      %p496 = scmp.ne.s32.totalorder %s485, %s486
      %p497 = scmp.eq.s32.totalorder %s33, 0
      %p498 = por %p496, %p497
      %p499 = scmp.ne.s32.totalorder %s485, %s486
      %p500 = scmp.eq.s32.totalorder %s34, 1
      %p501 = por %p499, %p500
      %p503 = scmp.ne.s32.totalorder %s486, %s502
      %p504 = scmp.eq.s32.totalorder %s34, 0
      %p505 = por %p503, %p504
      %p506 = scmp.le.s32.totalorder 1, %s28
      %p507 = scmp.lt.s32.totalorder %s28, 3
      %p508 = pnand %p506, %p507
      %p509 = pneg %p508
      // Predicated region
      $region9: #{tpu_custom_call.1} parent=5 // pred_check
        _
      $region10: #{tpu_custom_call.1} parent=5 // pred_check_branch
        %511 = sbr.rel (%p508) target = $region12
      $region11: #{tpu_custom_call.1} parent=5 // pred_region
        %s512 = ssub.s32 %s28, 1
        // Predicated region
        $region13: #{tpu_custom_call.1} parent=11 // pred_check
          %p513 = pneg %p66
        $region14: #{tpu_custom_call.1} parent=11 // pred_check_branch
          %515 = sbr.rel (%p513) target = $region16
        $region15: #{tpu_custom_call.1} parent=11 // pred_region
          %s516 = smul.u32 2, %s37
          %s518 = ssub.s32 512, 512
          %519 = vsyncadd [#allocation4], %s518
          %s520 = smul.addr %s516, 2
          %s521 = smul.addr %s520, 128
          %s522 = scalar_lea.hbm %s0, %s521
          %s523 = sshll.u32 [#allocation3], 4
          %s524 = int_to_ptr.vmem [resolvable:$true] %s523
          %529 = dma.hbm_to_vmem [thread:$0]  %s522, 512, %s524, [#allocation4], 256, 256, 16
        $region16: #{tpu_custom_call.1} parent=11 // pred_fallthru
          _
        // Predicated region
        $region17: #{tpu_custom_call.1} parent=11 // pred_check
          %p530 = pneg %p92
        $region18: #{tpu_custom_call.1} parent=11 // pred_check_branch
          %532 = sbr.rel (%p530) target = $region20
        $region19: #{tpu_custom_call.1} parent=11 // pred_region
          %s533 = smul.u32 2, %s37
          %s535 = ssub.s32 512, 512
          %536 = vsyncadd [#allocation7], %s535
          %s537 = smul.addr %s533, 4
          %s538 = smul.addr %s537, 64
          %s539 = scalar_lea.hbm %s1, %s538
          %s540 = sshll.u32 [#allocation6], 4
          %s541 = int_to_ptr.vmem [resolvable:$true] %s540
          %546 = dma.hbm_to_vmem [thread:$0]  %s539, 512, %s541, [#allocation7], 128, 128, 8
        $region20: #{tpu_custom_call.1} parent=11 // pred_fallthru
          _
        // Predicated region
        $region21: #{tpu_custom_call.1} parent=11 // pred_check
          %p547 = pneg %p118
        $region22: #{tpu_custom_call.1} parent=11 // pred_check_branch
          %549 = sbr.rel (%p547) target = $region24
        $region23: #{tpu_custom_call.1} parent=11 // pred_region
          %s550 = smul.u32 2, %s37
          %s552 = ssub.s32 32, 32
          %553 = vsyncadd [#allocation7], %s552
          %s554 = smul.addr %s550, 16
          %s555 = scalar_lea.hbm %s2, %s554
          %s556 = sshll.u32 [#allocation8], 4
          %s557 = int_to_ptr.vmem [resolvable:$true] %s556
          %562 = dma.hbm_to_vmem [thread:$0]  %s555, 32, %s557, [#allocation7], 16, 16, 1
        $region24: #{tpu_custom_call.1} parent=11 // pred_fallthru
          _
        // Predicated region
        $region25: #{tpu_custom_call.1} parent=11 // pred_check
          %p563 = pneg %p144
        $region26: #{tpu_custom_call.1} parent=11 // pred_check_branch
          %565 = sbr.rel (%p563) target = $region28
        $region27: #{tpu_custom_call.1} parent=11 // pred_region
          %s566 = smul.u32 2, %s37
          %s568 = ssub.s32 32, 32
          %569 = vsyncadd [#allocation10], %s568
          %s570 = smul.addr %s566, 16
          %s571 = scalar_lea.hbm %s3, %s570
          %s572 = sshll.u32 [#allocation9], 4
          %s573 = int_to_ptr.vmem [resolvable:$true] %s572
          %578 = dma.hbm_to_vmem [thread:$0]  %s571, 32, %s573, [#allocation10], 16, 16, 1
        $region28: #{tpu_custom_call.1} parent=11 // pred_fallthru
          _
        // Predicated region
        $region29: #{tpu_custom_call.1} parent=11 // pred_check
          %p579 = pneg %p170
        $region30: #{tpu_custom_call.1} parent=11 // pred_check_branch
          %581 = sbr.rel (%p579) target = $region32
        $region31: #{tpu_custom_call.1} parent=11 // pred_region
          %s582 = smul.u32 2, %s37
          %s584 = ssub.s32 32, 32
          %585 = vsyncadd [#allocation10], %s584
          %s586 = smul.addr %s582, 16
          %s587 = scalar_lea.hbm %s4, %s586
          %s588 = sshll.u32 [#allocation11], 4
          %s589 = int_to_ptr.vmem [resolvable:$true] %s588
          %594 = dma.hbm_to_vmem [thread:$0]  %s587, 32, %s589, [#allocation10], 16, 16, 1
        $region32: #{tpu_custom_call.1} parent=11 // pred_fallthru
          _
        // Predicated region
        $region33: #{tpu_custom_call.1} parent=11 // pred_check
          %p595 = pneg %p196
        $region34: #{tpu_custom_call.1} parent=11 // pred_check_branch
          %597 = sbr.rel (%p595) target = $region36
        $region35: #{tpu_custom_call.1} parent=11 // pred_region
          %s598 = smul.u32 2, %s37
          %s600 = ssub.s32 32, 32
          %601 = vsyncadd [#allocation13], %s600
          %s602 = smul.addr %s598, 16
          %s603 = scalar_lea.hbm %s5, %s602
          %s604 = sshll.u32 [#allocation12], 4
          %s605 = int_to_ptr.vmem [resolvable:$true] %s604
          %610 = dma.hbm_to_vmem [thread:$0]  %s603, 32, %s605, [#allocation13], 16, 16, 1
        $region36: #{tpu_custom_call.1} parent=11 // pred_fallthru
          _
        // Predicated region
        $region37: #{tpu_custom_call.1} parent=11 // pred_check
          %p611 = pneg %p451
        $region38: #{tpu_custom_call.1} parent=11 // pred_check_branch
          %613 = sbr.rel (%p611) target = $region40
        $region39: #{tpu_custom_call.1} parent=11 // pred_region
          _
        $region40: #{tpu_custom_call.1} parent=11 // pred_fallthru
          _
        // Predicated region
        $region41: #{tpu_custom_call.1} parent=11 // pred_check
          %p614 = pneg %p472
        $region42: #{tpu_custom_call.1} parent=11 // pred_check_branch
          %616 = sbr.rel (%p614) target = $region44
        $region43: #{tpu_custom_call.1} parent=11 // pred_region
          _
        $region44: #{tpu_custom_call.1} parent=11 // pred_fallthru
          _
      $region12: #{tpu_custom_call.1} parent=5 // pred_fallthru
        _
      %p617 = scmp.lt.s32.totalorder %s28, 2
      // Predicated region
      $region45: #{tpu_custom_call.1} parent=5 // pred_check
        %p618 = pneg %p617
      $region46: #{tpu_custom_call.1} parent=5 // pred_check_branch
        %620 = sbr.rel (%p618) target = $region48
      $region47: #{tpu_custom_call.1} parent=5 // pred_region
        // Predicated region
        $region49: #{tpu_custom_call.1} parent=47 // pred_check
          %p621 = pneg %p216
        $region50: #{tpu_custom_call.1} parent=47 // pred_check_branch
          %623 = sbr.rel (%p621) target = $region52
        $region51: #{tpu_custom_call.1} parent=47 // pred_region
          %s624 = sand.u32 %s28, 1
          %s625 = scalar_lea.sflag [#allocation4], %s624
          %s626 = sand.u32 %s206, 1
          %s627 = smul.addr %s626, 12
          %s628 = scalar_lea.vmem [#allocation14], %s627
          %s630 = ssub.s32 192, 192
          %631 = vsyncadd %s625, %s630
          %s632 = smul.addr %s36, 6
          %s633 = smul.addr %s632, 32
          %s634 = scalar_lea.hbm %s6, %s633
          %s635 = sshll.u32 %s628, 4
          %s636 = int_to_ptr.vmem [resolvable:$true] %s635
          %641 = dma.hbm_to_vmem [thread:$0]  %s634, 192, %s636, %s625, 64, 64, 4
        $region52: #{tpu_custom_call.1} parent=47 // pred_fallthru
          _
        // Predicated region
        $region53: #{tpu_custom_call.1} parent=47 // pred_check
          %p642 = pneg %p242
        $region54: #{tpu_custom_call.1} parent=47 // pred_check_branch
          %644 = sbr.rel (%p642) target = $region56
        $region55: #{tpu_custom_call.1} parent=47 // pred_region
          %s645 = sand.u32 %s28, 1
          %s646 = scalar_lea.sflag [#allocation4], %s645
          %s647 = sand.u32 %s232, 1
          %s648 = smul.addr %s647, 1024
          %s649 = scalar_lea.vmem [#allocation15], %s648
          %s651 = ssub.s32 16384, 16384
          %652 = vsyncadd %s646, %s651
          %s653 = smul.addr %s36, 256
          %s654 = smul.addr %s653, 64
          %s655 = scalar_lea.hbm %s7, %s654
          %s656 = sshll.u32 %s649, 4
          %s657 = int_to_ptr.vmem [resolvable:$true] %s656
          %662 = dma.hbm_to_vmem [thread:$0]  %s655, 16384, %s657, %s646, 128, 128, 8
        $region56: #{tpu_custom_call.1} parent=47 // pred_fallthru
          _
        // Predicated region
        $region57: #{tpu_custom_call.1} parent=47 // pred_check
          %p663 = pneg %p268
        $region58: #{tpu_custom_call.1} parent=47 // pred_check_branch
          %665 = sbr.rel (%p663) target = $region60
        $region59: #{tpu_custom_call.1} parent=47 // pred_region
          %s666 = sand.u32 %s28, 1
          %s667 = scalar_lea.sflag [#allocation4], %s666
          %s668 = sand.u32 %s258, 1
          %s669 = smul.addr %s668, 8
          %s670 = scalar_lea.vmem [#allocation16], %s669
          %s672 = ssub.s32 128, 128
          %673 = vsyncadd %s667, %s672
          %s674 = smul.addr %s36, 2
          %s675 = smul.addr %s674, 64
          %s676 = scalar_lea.hbm %s8, %s675
          %s678 = sshll.u32 %s670, 4
          %s679 = int_to_ptr.vmem [resolvable:$true] %s678
          %681 = dma.hbm_to_vmem [thread:$0]  %s676, 128, %s679, %s667
        $region60: #{tpu_custom_call.1} parent=47 // pred_fallthru
          _
        // Predicated region
        $region61: #{tpu_custom_call.1} parent=47 // pred_check
          %p682 = pneg %p294
        $region62: #{tpu_custom_call.1} parent=47 // pred_check_branch
          %684 = sbr.rel (%p682) target = $region64
        $region63: #{tpu_custom_call.1} parent=47 // pred_region
          %s685 = sand.u32 %s28, 1
          %s686 = scalar_lea.sflag [#allocation4], %s685
          %s687 = sand.u32 %s284, 1
          %s688 = smul.addr %s687, 1024
          %s689 = scalar_lea.vmem [#allocation17], %s688
          %s691 = ssub.s32 16384, 16384
          %692 = vsyncadd %s686, %s691
          %s693 = smul.addr %s36, 256
          %s694 = smul.addr %s693, 64
          %s695 = scalar_lea.hbm %s9, %s694
          %s696 = sshll.u32 %s689, 4
          %s697 = int_to_ptr.vmem [resolvable:$true] %s696
          %702 = dma.hbm_to_vmem [thread:$0]  %s695, 16384, %s697, %s686, 128, 128, 8
        $region64: #{tpu_custom_call.1} parent=47 // pred_fallthru
          _
        // Predicated region
        $region65: #{tpu_custom_call.1} parent=47 // pred_check
          %p703 = pneg %p320
        $region66: #{tpu_custom_call.1} parent=47 // pred_check_branch
          %705 = sbr.rel (%p703) target = $region68
        $region67: #{tpu_custom_call.1} parent=47 // pred_region
          %p706 = scmp.lt.s32.totalorder %s36, 1
          %s707 = scalar_select %p706, %s36, 1
          %s708 = smul.addr %s707, 2
          %s709 = smul.addr %s708, 4
          %s710 = scalar_lea.vmem %s10, %s709
        $region68: #{tpu_custom_call.1} parent=47 // pred_fallthru
          _
        // Predicated region
        $region69: #{tpu_custom_call.1} parent=47 // pred_check
          %p711 = pneg %p346
        $region70: #{tpu_custom_call.1} parent=47 // pred_check_branch
          %713 = sbr.rel (%p711) target = $region72
        $region71: #{tpu_custom_call.1} parent=47 // pred_region
          %s714 = sand.u32 %s28, 1
          %s715 = scalar_lea.sflag [#allocation4], %s714
          %s716 = sand.u32 %s336, 1
          %s717 = smul.addr %s716, 512
          %s718 = scalar_lea.vmem [#allocation18], %s717
          %s720 = ssub.s32 8192, 8192
          %721 = vsyncadd %s715, %s720
          %s722 = smul.addr %s36, 128
          %s723 = smul.addr %s722, 64
          %s724 = scalar_lea.hbm %s11, %s723
          %s725 = sshll.u32 %s718, 4
          %s726 = int_to_ptr.vmem [resolvable:$true] %s725
          %731 = dma.hbm_to_vmem [thread:$0]  %s724, 8192, %s726, %s715, 256, 256, 16
        $region72: #{tpu_custom_call.1} parent=47 // pred_fallthru
          _
        // Predicated region
        $region73: #{tpu_custom_call.1} parent=47 // pred_check
          %p732 = pneg %p372
        $region74: #{tpu_custom_call.1} parent=47 // pred_check_branch
          %734 = sbr.rel (%p732) target = $region76
        $region75: #{tpu_custom_call.1} parent=47 // pred_region
          %s735 = sand.u32 %s28, 1
          %s736 = scalar_lea.sflag [#allocation4], %s735
          %s737 = sand.u32 %s362, 1
          %s738 = smul.addr %s737, 4
          %s739 = scalar_lea.vmem [#allocation19], %s738
          %s741 = ssub.s32 64, 64
          %742 = vsyncadd %s736, %s741
          %s743 = smul.addr %s36, 4
          %s744 = smul.addr %s743, 16
          %s745 = scalar_lea.hbm %s12, %s744
          %s747 = sshll.u32 %s739, 4
          %s748 = int_to_ptr.vmem [resolvable:$true] %s747
          %750 = dma.hbm_to_vmem [thread:$0]  %s745, 64, %s748, %s736
        $region76: #{tpu_custom_call.1} parent=47 // pred_fallthru
          _
        // Predicated region
        $region77: #{tpu_custom_call.1} parent=47 // pred_check
          %p751 = pneg %p398
        $region78: #{tpu_custom_call.1} parent=47 // pred_check_branch
          %753 = sbr.rel (%p751) target = $region80
        $region79: #{tpu_custom_call.1} parent=47 // pred_region
          %s754 = sand.u32 %s28, 1
          %s755 = scalar_lea.sflag [#allocation4], %s754
          %s756 = sand.u32 %s388, 1
          %s757 = smul.addr %s756, 512
          %s758 = scalar_lea.vmem [#allocation20], %s757
          %s760 = ssub.s32 8192, 8192
          %761 = vsyncadd %s755, %s760
          %s762 = smul.addr %s36, 128
          %s763 = smul.addr %s762, 64
          %s764 = scalar_lea.hbm %s13, %s763
          %s765 = sshll.u32 %s758, 4
          %s766 = int_to_ptr.vmem [resolvable:$true] %s765
          %771 = dma.hbm_to_vmem [thread:$0]  %s764, 8192, %s766, %s755, 128, 128, 8
        $region80: #{tpu_custom_call.1} parent=47 // pred_fallthru
          _
        // Predicated region
        $region81: #{tpu_custom_call.1} parent=47 // pred_check
          %p772 = pneg %p424
        $region82: #{tpu_custom_call.1} parent=47 // pred_check_branch
          %774 = sbr.rel (%p772) target = $region84
        $region83: #{tpu_custom_call.1} parent=47 // pred_region
          %p775 = scmp.lt.s32.totalorder %s36, 1
          %s776 = scalar_select %p775, %s36, 1
          %s777 = smul.addr %s776, 2
          %s778 = scalar_lea.vmem %s14, %s777
        $region84: #{tpu_custom_call.1} parent=47 // pred_fallthru
          _
      $region48: #{tpu_custom_call.1} parent=5 // pred_fallthru
        _
      %p779 = scmp.le.s32.totalorder 1, %s28
      %p780 = scmp.lt.s32.totalorder %s28, 3
      %p781 = pnand %p779, %p780
      %p782 = pneg %p781
      // Predicated region
      $region85: #{tpu_custom_call.1} parent=5 // pred_check
        _
      $region86: #{tpu_custom_call.1} parent=5 // pred_check_branch
        %784 = sbr.rel (%p781) target = $region88
      $region87: #{tpu_custom_call.1} parent=5 // pred_region
        %s785 = ssub.s32 %s28, 1
        // Predicated region
        $region89: #{tpu_custom_call.1} parent=87 // pred_check
          %p786 = pneg %p66
        $region90: #{tpu_custom_call.1} parent=87 // pred_check_branch
          %788 = sbr.rel (%p786) target = $region92
        $region91: #{tpu_custom_call.1} parent=87 // pred_region
          %789 = dma.done [#allocation4], 512
        $region92: #{tpu_custom_call.1} parent=87 // pred_fallthru
          _
        // Predicated region
        $region93: #{tpu_custom_call.1} parent=87 // pred_check
          %p790 = pneg %p92
        $region94: #{tpu_custom_call.1} parent=87 // pred_check_branch
          %792 = sbr.rel (%p790) target = $region96
        $region95: #{tpu_custom_call.1} parent=87 // pred_region
          %793 = dma.done [#allocation7], 512
        $region96: #{tpu_custom_call.1} parent=87 // pred_fallthru
          _
        // Predicated region
        $region97: #{tpu_custom_call.1} parent=87 // pred_check
          %p794 = pneg %p118
        $region98: #{tpu_custom_call.1} parent=87 // pred_check_branch
          %796 = sbr.rel (%p794) target = $region100
        $region99: #{tpu_custom_call.1} parent=87 // pred_region
          %797 = dma.done [#allocation7], 32
        $region100: #{tpu_custom_call.1} parent=87 // pred_fallthru
          _
        // Predicated region
        $region101: #{tpu_custom_call.1} parent=87 // pred_check
          %p798 = pneg %p144
        $region102: #{tpu_custom_call.1} parent=87 // pred_check_branch
          %800 = sbr.rel (%p798) target = $region104
        $region103: #{tpu_custom_call.1} parent=87 // pred_region
          %801 = dma.done [#allocation10], 32
        $region104: #{tpu_custom_call.1} parent=87 // pred_fallthru
          _
        // Predicated region
        $region105: #{tpu_custom_call.1} parent=87 // pred_check
          %p802 = pneg %p170
        $region106: #{tpu_custom_call.1} parent=87 // pred_check_branch
          %804 = sbr.rel (%p802) target = $region108
        $region107: #{tpu_custom_call.1} parent=87 // pred_region
          %805 = dma.done [#allocation10], 32
        $region108: #{tpu_custom_call.1} parent=87 // pred_fallthru
          _
        // Predicated region
        $region109: #{tpu_custom_call.1} parent=87 // pred_check
          %p806 = pneg %p196
        $region110: #{tpu_custom_call.1} parent=87 // pred_check_branch
          %808 = sbr.rel (%p806) target = $region112
        $region111: #{tpu_custom_call.1} parent=87 // pred_region
          %809 = dma.done [#allocation13], 32
        $region112: #{tpu_custom_call.1} parent=87 // pred_fallthru
          _
        %s810 = sand.u32 %s33, 1
        %s811 = scalar_lea.sflag [#allocation4], %s810
        %s812 = sand.u32 %s209, 1
        %s813 = smul.addr %s812, 12
        %s814 = scalar_lea.vmem [#allocation14], %s813
        // Predicated region
        $region113: #{tpu_custom_call.1} parent=87 // pred_check
          %p815 = pneg %p222
        $region114: #{tpu_custom_call.1} parent=87 // pred_check_branch
          %817 = sbr.rel (%p815) target = $region116
        $region115: #{tpu_custom_call.1} parent=87 // pred_region
          %818 = dma.done %s811, 192
        $region116: #{tpu_custom_call.1} parent=87 // pred_fallthru
          _
        %s819 = sand.u32 %s33, 1
        %s820 = scalar_lea.sflag [#allocation4], %s819
        %s821 = sand.u32 %s235, 1
        %s822 = smul.addr %s821, 1024
        %s823 = scalar_lea.vmem [#allocation15], %s822
        // Predicated region
        $region117: #{tpu_custom_call.1} parent=87 // pred_check
          %p824 = pneg %p248
        $region118: #{tpu_custom_call.1} parent=87 // pred_check_branch
          %826 = sbr.rel (%p824) target = $region120
        $region119: #{tpu_custom_call.1} parent=87 // pred_region
          %827 = dma.done %s820, 16384
        $region120: #{tpu_custom_call.1} parent=87 // pred_fallthru
          _
        %s828 = sand.u32 %s33, 1
        %s829 = scalar_lea.sflag [#allocation4], %s828
        %s830 = sand.u32 %s261, 1
        %s831 = smul.addr %s830, 8
        %s832 = scalar_lea.vmem [#allocation16], %s831
        // Predicated region
        $region121: #{tpu_custom_call.1} parent=87 // pred_check
          %p833 = pneg %p274
        $region122: #{tpu_custom_call.1} parent=87 // pred_check_branch
          %835 = sbr.rel (%p833) target = $region124
        $region123: #{tpu_custom_call.1} parent=87 // pred_region
          %836 = dma.done %s829, 128
        $region124: #{tpu_custom_call.1} parent=87 // pred_fallthru
          _
        %s837 = sand.u32 %s33, 1
        %s838 = scalar_lea.sflag [#allocation4], %s837
        %s839 = sand.u32 %s287, 1
        %s840 = smul.addr %s839, 1024
        %s841 = scalar_lea.vmem [#allocation17], %s840
        // Predicated region
        $region125: #{tpu_custom_call.1} parent=87 // pred_check
          %p842 = pneg %p300
        $region126: #{tpu_custom_call.1} parent=87 // pred_check_branch
          %844 = sbr.rel (%p842) target = $region128
        $region127: #{tpu_custom_call.1} parent=87 // pred_region
          %845 = dma.done %s838, 16384
        $region128: #{tpu_custom_call.1} parent=87 // pred_fallthru
          _
        %s846 = sand.u32 %s33, 1
        %s847 = scalar_lea.sflag [#allocation4], %s846
        %s848 = sand.u32 %s339, 1
        %s849 = smul.addr %s848, 512
        %s850 = scalar_lea.vmem [#allocation18], %s849
        // Predicated region
        $region129: #{tpu_custom_call.1} parent=87 // pred_check
          %p851 = pneg %p352
        $region130: #{tpu_custom_call.1} parent=87 // pred_check_branch
          %853 = sbr.rel (%p851) target = $region132
        $region131: #{tpu_custom_call.1} parent=87 // pred_region
          %854 = dma.done %s847, 8192
        $region132: #{tpu_custom_call.1} parent=87 // pred_fallthru
          _
        %s855 = sand.u32 %s33, 1
        %s856 = scalar_lea.sflag [#allocation4], %s855
        %s857 = sand.u32 %s365, 1
        %s858 = smul.addr %s857, 4
        %s859 = scalar_lea.vmem [#allocation19], %s858
        // Predicated region
        $region133: #{tpu_custom_call.1} parent=87 // pred_check
          %p860 = pneg %p378
        $region134: #{tpu_custom_call.1} parent=87 // pred_check_branch
          %862 = sbr.rel (%p860) target = $region136
        $region135: #{tpu_custom_call.1} parent=87 // pred_region
          %863 = dma.done %s856, 64
        $region136: #{tpu_custom_call.1} parent=87 // pred_fallthru
          _
        %s864 = sand.u32 %s33, 1
        %s865 = scalar_lea.sflag [#allocation4], %s864
        %s866 = sand.u32 %s391, 1
        %s867 = smul.addr %s866, 512
        %s868 = scalar_lea.vmem [#allocation20], %s867
        // Predicated region
        $region137: #{tpu_custom_call.1} parent=87 // pred_check
          %p869 = pneg %p404
        $region138: #{tpu_custom_call.1} parent=87 // pred_check_branch
          %871 = sbr.rel (%p869) target = $region140
        $region139: #{tpu_custom_call.1} parent=87 // pred_region
          %872 = dma.done %s865, 8192
        $region140: #{tpu_custom_call.1} parent=87 // pred_fallthru
          _
        %p873 = pneg %p66
        %p874 = pneg %p63
        %p875 = pneg %p92
        %p876 = pneg %p89
        %p877 = pneg %p118
        %p878 = pneg %p115
        %p879 = pneg %p144
        %p880 = pneg %p141
        %p881 = pneg %p170
        %p882 = pneg %p167
        %p883 = pneg %p196
        %p884 = pneg %p193
        %s885 = sand.u32 %s33, 1
        %s886 = scalar_lea.sflag [#allocation4], %s885
        %s887 = sand.u32 %s209, 1
        %s888 = smul.addr %s887, 12
        %s889 = scalar_lea.vmem [#allocation14], %s888
        %p890 = pneg %p222
        %p891 = pneg %p219
        %s892 = sand.u32 %s33, 1
        %s893 = scalar_lea.sflag [#allocation4], %s892
        %s894 = sand.u32 %s235, 1
        %s895 = smul.addr %s894, 1024
        %s896 = scalar_lea.vmem [#allocation15], %s895
        %p897 = pneg %p248
        %p898 = pneg %p245
        %s899 = sand.u32 %s33, 1
        %s900 = scalar_lea.sflag [#allocation4], %s899
        %s901 = sand.u32 %s261, 1
        %s902 = smul.addr %s901, 8
        %s903 = scalar_lea.vmem [#allocation16], %s902
        %p904 = pneg %p274
        %p905 = pneg %p271
        %s906 = sand.u32 %s33, 1
        %s907 = scalar_lea.sflag [#allocation4], %s906
        %s908 = sand.u32 %s287, 1
        %s909 = smul.addr %s908, 1024
        %s910 = scalar_lea.vmem [#allocation17], %s909
        %p911 = pneg %p300
        %p912 = pneg %p297
        %p913 = scmp.lt.s32.totalorder %s38, 1
        %s914 = scalar_select %p913, %s38, 1
        %s915 = smul.addr %s914, 2
        %s916 = smul.addr %s915, 4
        %s917 = scalar_lea.vmem %s10, %s916
        %p918 = pneg %p326
        %p919 = pneg %p323
        %s920 = sand.u32 %s33, 1
        %s921 = scalar_lea.sflag [#allocation4], %s920
        %s922 = sand.u32 %s339, 1
        %s923 = smul.addr %s922, 512
        %s924 = scalar_lea.vmem [#allocation18], %s923
        %p925 = pneg %p352
        %p926 = pneg %p349
        %s927 = sand.u32 %s33, 1
        %s928 = scalar_lea.sflag [#allocation4], %s927
        %s929 = sand.u32 %s365, 1
        %s930 = smul.addr %s929, 4
        %s931 = scalar_lea.vmem [#allocation19], %s930
        %p932 = pneg %p378
        %p933 = pneg %p375
        %s934 = sand.u32 %s33, 1
        %s935 = scalar_lea.sflag [#allocation4], %s934
        %s936 = sand.u32 %s391, 1
        %s937 = smul.addr %s936, 512
        %s938 = scalar_lea.vmem [#allocation20], %s937
        %p939 = pneg %p404
        %p940 = pneg %p401
        %p941 = scmp.lt.s32.totalorder %s38, 1
        %s942 = scalar_select %p941, %s38, 1
        %s943 = smul.addr %s942, 2
        %s944 = scalar_lea.vmem %s14, %s943
        %p945 = pneg %p430
        %p946 = pneg %p427
        %p947 = pneg %p451
        %p948 = pneg %p448
        %p949 = pneg %p472
        %p950 = pneg %p469
        %p951 = pneg %p498
        %p952 = pneg %p495
        %s953 = smul.u32 2, %s37
        %s954 = smul.u32 2, %s37
        %s955 = smul.u32 2, %s37
        %s956 = smul.u32 2, %s37
        %s957 = smul.u32 2, %s37
        %s958 = smul.u32 2, %s37
        %p959 = scmp.lt.s32.totalorder %s38, 1
        %s960 = scalar_select %p959, %s38, 1
        %s961 = smul.addr %s960, 2
        %s962 = smul.addr %s961, 4
        %s963 = scalar_lea.vmem %s10, %s962
        %p964 = scmp.lt.s32.totalorder %s38, 1
        %s965 = scalar_select %p964, %s38, 1
        %s966 = smul.addr %s965, 2
        %s967 = scalar_lea.vmem %s14, %s966
        %s968 = smul.u32 2, %s37
        %p970 = scmp.eq.s32.totalorder %s38, 0
        // Predicated region
        $region141: #{tpu_custom_call.1} parent=87 // pred_check
          %p971 = pneg %p970
        $region142: #{tpu_custom_call.1} parent=87 // pred_check_branch
          %973 = sbr.rel (%p971) target = $region144
        $region143: #{tpu_custom_call.1} parent=87 // pred_region
          %v974 = vld [vmem:[#allocation3] sm:$0xff]
          %v975 = vld [vmem:[#allocation3 + $0x8] sm:$0xff]
          %v976 = vld [vmem:[#allocation3 + $0x10] sm:$0xff]
          %v977 = vld [vmem:[#allocation3 + $0x18] sm:$0xff]
          %978 = vst [vmem:[#allocation2] sm:$0xff] %v974
          %979 = vst [vmem:[#allocation2 + $0x8] sm:$0xff] %v975
          %980 = vst [vmem:[#allocation2 + $0x10] sm:$0xff] %v976
          %981 = vst [vmem:[#allocation2 + $0x18] sm:$0xff] %v977
        $region144: #{tpu_custom_call.1} parent=87 // pred_fallthru
          _
        %v982 = vld [vmem:[#allocation2] sm:$0xff]
        %v983 = vld [vmem:[#allocation2 + $0x8] sm:$0xff]
        %v984 = vld [vmem:[#allocation2 + $0x10] sm:$0xff]
        %v985 = vld [vmem:[#allocation2 + $0x18] sm:$0xff]
        %v986 = vld [vmem:[#allocation6] sm:$0xff]
        %v987 = vld [vmem:[#allocation6 + $0x8] sm:$0xff]
        %v988 = vld [vmem:[#allocation6 + $0x10] sm:$0xff]
        %v989 = vld [vmem:[#allocation6 + $0x18] sm:$0xff]
        %v990 = vld [vmem:[#allocation8] sm:$0x1]
        %v991 = vld [vmem:[#allocation8 + $0x1] sm:$0x1]
        %v992 = vld [vmem:[#allocation9] sm:$0x1]
        %v993 = vld [vmem:[#allocation9 + $0x1] sm:$0x1]
        %v994 = vld [vmem:[#allocation11] sm:$0x1]
        %v995 = vld [vmem:[#allocation11 + $0x1] sm:$0x1]
        %v996 = vld [vmem:[#allocation12] sm:$0x1]
        %v997 = vld [vmem:[#allocation12 + $0x1] sm:$0x1]
        %v998 = vld [vmem:[%s814] sm:$0xf]
        %v999 = vld [vmem:[%s814 + $0x4] sm:$0xf]
        %v1000 = vld [vmem:[%s814 + $0x8] sm:$0xf]
        %v1001 = vld [vmem:[%s832] sm:$0xff]
        %v1002 = vld [vmem:[%s963] sm:$0xff]
        %v1003 = vld [vmem:[%s859] sm:$0xf]
        %v1004 = vld [vmem:[%s967] sm:$0x3]
        %v1005 = vadd.f32 %v982, %v983
        %1006 = vadd.xlane.f32.xlu0 %v1005
        %v1007 = vpop.xlane.xlu0 %1006
        %v1008 = vadd.f32 %v984, %v985
        %1009 = vadd.xlane.f32.xlu0 %v1008
        %v1010 = vpop.xlane.xlu0 %1009
        %v1011 = vrcp.pop 256.0
        %v1012 = vmul.f32 %v1007, %v1011
        %v1013 = vmul.f32 %v1010, %v1011
        %v1014 = vsub.f32 %v982, %v1012
        %v1015 = vsub.f32 %v983, %v1012
        %v1016 = vsub.f32 %v984, %v1013
        %v1017 = vsub.f32 %v985, %v1013
        %v1018 = vmul.f32 %v1014, %v1014
        %v1019 = vmul.f32 %v1015, %v1015
        %v1020 = vmul.f32 %v1016, %v1016
        %v1021 = vmul.f32 %v1017, %v1017
        %v1022 = vadd.f32 %v1018, %v1019
        %1023 = vadd.xlane.f32.xlu0 %v1022
        %v1024 = vpop.xlane.xlu0 %1023
        %v1025 = vadd.f32 %v1020, %v1021
        %1026 = vadd.xlane.f32.xlu0 %v1025
        %v1027 = vpop.xlane.xlu0 %1026
        %v1028 = vmul.f32 %v1024, %v1011
        %v1029 = vmul.f32 %v1027, %v1011
        %v1030 = vadd.f32 %v1028, 1e-12
        %v1031 = vadd.f32 %v1029, 1e-12
        %v1032 = vrsqrt.pop %v1030
        %v1033 = vrsqrt.pop %v1031
        %v1034 = vmul.f32 %v1014, %v1032
        %v1035 = vmul.f32 %v1015, %v1032
        %v1036 = vmul.f32 %v1016, %v1033
        %v1037 = vmul.f32 %v1017, %v1033
        %v1039 = vlaneseq
        %v1040 = vshrl.u32 %v1039, 7
        %v1041 = vsub.s32 0, %v1040
        %v1042 = vrot.slane %v998, %v1041
        %v1043 = vlaneseq
        %v1044 = vshrl.u32 %v1043, 7
        %v1045 = vsub.s32 2, %v1044
        %v1046 = vrot.slane %v998, %v1045
        %v1049 = vlaneseq
        %v1050 = vshrl.u32 %v1049, 7
        %v1051 = vsub.s32 0, %v1050
        %v1052 = vrot.slane %v1042, %v1051
        %v1053 = vlaneseq
        %v1054 = vshrl.u32 %v1053, 7
        %v1055 = vsub.s32 0, %v1054
        %v1056 = vrot.slane %v1046, %v1055
        %v1057 = vmul.f32 %v1034, %v1052
        %v1058 = vmul.f32 %v1035, %v1056
        %v1059 = vmul.f32 %v1036, %v1052
        %v1060 = vmul.f32 %v1037, %v1056
        %v1061 = vlaneseq
        %v1062 = vshrl.u32 %v1061, 7
        %v1063 = vsub.s32 1, %v1062
        %v1064 = vrot.slane %v998, %v1063
        %v1065 = vlaneseq
        %v1066 = vshrl.u32 %v1065, 7
        %v1067 = vsub.s32 3, %v1066
        %v1068 = vrot.slane %v998, %v1067
        %v1071 = vlaneseq
        %v1072 = vshrl.u32 %v1071, 7
        %v1073 = vsub.s32 1, %v1072
        %v1074 = vrot.slane %v1064, %v1073
        %v1075 = vlaneseq
        %v1076 = vshrl.u32 %v1075, 7
        %v1077 = vsub.s32 1, %v1076
        %v1078 = vrot.slane %v1068, %v1077
        %v1079 = vadd.f32 %v1057, %v1074
        %v1080 = vadd.f32 %v1058, %v1078
        %v1081 = vadd.f32 %v1059, %v1074
        %v1082 = vadd.f32 %v1060, %v1078
        %v1083 = vpack.c.bf16 %v1079, %v1079
        %v1084 = vpack.c.bf16 %v1080, %v1080
        %v1085 = vpack.c.bf16 %v1081, %v1081
        %v1086 = vpack.c.bf16 %v1082, %v1082
        %v1091 = vunpack.c.l.b16 %v1083
        %v1092 = vunpack.c.l.b16 %v1084
        %v1093 = vunpack.c.l.b16 %v1085
        %v1094 = vunpack.c.l.b16 %v1086
        %v1095 = vld [vmem:[%s823] sm:$0xff]
        %v1096 = vld [vmem:[%s823 + $0x8] sm:$0xff]
        %v1097 = vld [vmem:[%s823 + $0x10] sm:$0xff]
        %v1098 = vld [vmem:[%s823 + $0x18] sm:$0xff]
        %v1099 = vld [vmem:[%s823 + $0x20] sm:$0xff]
        %v1100 = vld [vmem:[%s823 + $0x28] sm:$0xff]
        %v1101 = vld [vmem:[%s823 + $0x30] sm:$0xff]
        %v1102 = vld [vmem:[%s823 + $0x38] sm:$0xff]
        %v1103 = vld [vmem:[%s823 + $0x40] sm:$0xff]
        %v1104 = vld [vmem:[%s823 + $0x48] sm:$0xff]
        %v1105 = vld [vmem:[%s823 + $0x50] sm:$0xff]
        %v1106 = vld [vmem:[%s823 + $0x58] sm:$0xff]
        %v1107 = vld [vmem:[%s823 + $0x60] sm:$0xff]
        %v1108 = vld [vmem:[%s823 + $0x68] sm:$0xff]
        %v1109 = vld [vmem:[%s823 + $0x70] sm:$0xff]
        %v1110 = vld [vmem:[%s823 + $0x78] sm:$0xff]
        %v1111 = vld [vmem:[%s823 + $0x80] sm:$0xff]
        %v1112 = vld [vmem:[%s823 + $0x88] sm:$0xff]
        %v1113 = vld [vmem:[%s823 + $0x90] sm:$0xff]
        %v1114 = vld [vmem:[%s823 + $0x98] sm:$0xff]
        %v1115 = vld [vmem:[%s823 + $0xa0] sm:$0xff]
        %v1116 = vld [vmem:[%s823 + $0xa8] sm:$0xff]
        %v1117 = vld [vmem:[%s823 + $0xb0] sm:$0xff]
        %v1118 = vld [vmem:[%s823 + $0xb8] sm:$0xff]
        %v1119 = vld [vmem:[%s823 + $0xc0] sm:$0xff]
        %v1120 = vld [vmem:[%s823 + $0xc8] sm:$0xff]
        %v1121 = vld [vmem:[%s823 + $0xd0] sm:$0xff]
        %v1122 = vld [vmem:[%s823 + $0xd8] sm:$0xff]
        %v1123 = vld [vmem:[%s823 + $0xe0] sm:$0xff]
        %v1124 = vld [vmem:[%s823 + $0xe8] sm:$0xff]
        %v1125 = vld [vmem:[%s823 + $0xf0] sm:$0xff]
        %v1126 = vld [vmem:[%s823 + $0xf8] sm:$0xff]
        %v1128 = vlaneseq
        %v1129 = vshrl.u32 %v1128, 7
        %v1130 = vsub.s32 0, %v1129
        %v1131 = vrot.slane %v1001, %v1130
        %v1132 = vlaneseq
        %v1133 = vshrl.u32 %v1132, 7
        %v1134 = vsub.s32 4, %v1133
        %v1135 = vrot.slane %v1001, %v1134
        %v1138 = vlaneseq
        %v1139 = vshrl.u32 %v1138, 7
        %v1140 = vsub.s32 0, %v1139
        %v1141 = vrot.slane %v1131, %v1140
        %v1142 = vlaneseq
        %v1143 = vshrl.u32 %v1142, 7
        %v1144 = vsub.s32 0, %v1143
        %v1145 = vrot.slane %v1135, %v1144
        %v1146 = vpack.c.b16 %v1093, %v1091
        %v1147 = vpack.c.b16 %v1094, %v1092
        %v1182 = vunpack.c.l.b16 %v1095
        %v1183 = vunpack.c.h.b16 %v1095
        %v1184 = vunpack.c.l.b16 %v1096
        %v1185 = vunpack.c.h.b16 %v1096
        %v1186 = vunpack.c.l.b16 %v1097
        %v1187 = vunpack.c.h.b16 %v1097
        %v1188 = vunpack.c.l.b16 %v1098
        %v1189 = vunpack.c.h.b16 %v1098
        %v1190 = vunpack.c.l.b16 %v1099
        %v1191 = vunpack.c.h.b16 %v1099
        %v1192 = vunpack.c.l.b16 %v1100
        %v1193 = vunpack.c.h.b16 %v1100
        %v1194 = vunpack.c.l.b16 %v1101
        %v1195 = vunpack.c.h.b16 %v1101
        %v1196 = vunpack.c.l.b16 %v1102
        %v1197 = vunpack.c.h.b16 %v1102
        %v1198 = vunpack.c.l.b16 %v1103
        %v1199 = vunpack.c.h.b16 %v1103
        %v1200 = vunpack.c.l.b16 %v1104
        %v1201 = vunpack.c.h.b16 %v1104
        %v1202 = vunpack.c.l.b16 %v1105
        %v1203 = vunpack.c.h.b16 %v1105
        %v1204 = vunpack.c.l.b16 %v1106
        %v1205 = vunpack.c.h.b16 %v1106
        %v1206 = vunpack.c.l.b16 %v1107
        %v1207 = vunpack.c.h.b16 %v1107
        %v1208 = vunpack.c.l.b16 %v1108
        %v1209 = vunpack.c.h.b16 %v1108
        %v1210 = vunpack.c.l.b16 %v1109
        %v1211 = vunpack.c.h.b16 %v1109
        %v1212 = vunpack.c.l.b16 %v1110
        %v1213 = vunpack.c.h.b16 %v1110
        %v1214 = vunpack.c.l.b16 %v1111
        %v1215 = vunpack.c.h.b16 %v1111
        %v1216 = vunpack.c.l.b16 %v1112
        %v1217 = vunpack.c.h.b16 %v1112
        %v1218 = vunpack.c.l.b16 %v1113
        %v1219 = vunpack.c.h.b16 %v1113
        %v1220 = vunpack.c.l.b16 %v1114
        %v1221 = vunpack.c.h.b16 %v1114
        %v1222 = vunpack.c.l.b16 %v1115
        %v1223 = vunpack.c.h.b16 %v1115
        %v1224 = vunpack.c.l.b16 %v1116
        %v1225 = vunpack.c.h.b16 %v1116
        %v1226 = vunpack.c.l.b16 %v1117
        %v1227 = vunpack.c.h.b16 %v1117
        %v1228 = vunpack.c.l.b16 %v1118
        %v1229 = vunpack.c.h.b16 %v1118
        %v1230 = vunpack.c.l.b16 %v1119
        %v1231 = vunpack.c.h.b16 %v1119
        %v1232 = vunpack.c.l.b16 %v1120
        %v1233 = vunpack.c.h.b16 %v1120
        %v1234 = vunpack.c.l.b16 %v1121
        %v1235 = vunpack.c.h.b16 %v1121
        %v1236 = vunpack.c.l.b16 %v1122
        %v1237 = vunpack.c.h.b16 %v1122
        %v1238 = vunpack.c.l.b16 %v1123
        %v1239 = vunpack.c.h.b16 %v1123
        %v1240 = vunpack.c.l.b16 %v1124
        %v1241 = vunpack.c.h.b16 %v1124
        %v1242 = vunpack.c.l.b16 %v1125
        %v1243 = vunpack.c.h.b16 %v1125
        %v1244 = vunpack.c.l.b16 %v1126
        %v1245 = vunpack.c.h.b16 %v1126
        %v1246 = vpack.c.b16 %v1184, %v1182
        %v1247 = vpack.c.b16 %v1185, %v1183
        %v1248 = vpack.c.b16 %v1188, %v1186
        %v1249 = vpack.c.b16 %v1189, %v1187
        %v1250 = vpack.c.b16 %v1192, %v1190
        %v1251 = vpack.c.b16 %v1193, %v1191
        %v1252 = vpack.c.b16 %v1196, %v1194
        %v1253 = vpack.c.b16 %v1197, %v1195
        %v1254 = vpack.c.b16 %v1200, %v1198
        %v1255 = vpack.c.b16 %v1201, %v1199
        %v1256 = vpack.c.b16 %v1204, %v1202
        %v1257 = vpack.c.b16 %v1205, %v1203
        %v1258 = vpack.c.b16 %v1208, %v1206
        %v1259 = vpack.c.b16 %v1209, %v1207
        %v1260 = vpack.c.b16 %v1212, %v1210
        %v1261 = vpack.c.b16 %v1213, %v1211
        %v1262 = vpack.c.b16 %v1216, %v1214
        %v1263 = vpack.c.b16 %v1217, %v1215
        %v1264 = vpack.c.b16 %v1220, %v1218
        %v1265 = vpack.c.b16 %v1221, %v1219
        %v1266 = vpack.c.b16 %v1224, %v1222
        %v1267 = vpack.c.b16 %v1225, %v1223
        %v1268 = vpack.c.b16 %v1228, %v1226
        %v1269 = vpack.c.b16 %v1229, %v1227
        %v1270 = vpack.c.b16 %v1232, %v1230
        %v1271 = vpack.c.b16 %v1233, %v1231
        %v1272 = vpack.c.b16 %v1236, %v1234
        %v1273 = vpack.c.b16 %v1237, %v1235
        %v1274 = vpack.c.b16 %v1240, %v1238
        %v1275 = vpack.c.b16 %v1241, %v1239
        %v1276 = vpack.c.b16 %v1244, %v1242
        %v1277 = vpack.c.b16 %v1245, %v1243
        %1310 = vmatprep.subr.bf16.mxu0 %v1261
        %1311 = vmatpush1.bf16.msra.mxu0 %v1260
        %1312 = vmatprep.subr.bf16.mxu0 %v1259
        %1313 = vmatpush1.bf16.msra.mxu0 %v1258
        %1314 = vmatprep.subr.bf16.mxu0 %v1257
        %1315 = vmatpush1.bf16.msra.mxu0 %v1256
        %1316 = vmatprep.subr.bf16.mxu0 %v1255
        %1317 = vmatpush1.bf16.msra.mxu0 %v1254
        %1318 = vmatprep.subr.bf16.mxu0 %v1253
        %1319 = vmatpush1.bf16.msra.mxu0 %v1252
        %1320 = vmatprep.subr.bf16.mxu0 %v1251
        %1321 = vmatpush1.bf16.msra.mxu0 %v1250
        %1322 = vmatprep.subr.bf16.mxu0 %v1249
        %1323 = vmatpush1.bf16.msra.mxu0 %v1248
        %1324 = vmatprep.subr.bf16.mxu0 %v1247
        %1325 = vmatpush1.bf16.msra.mxu0 %v1246
        %1326 = vmatprep.subr.bf16.mxu0 %v1277
        %1327 = vmatpush2.bf16.msra.mxu0 %v1276
        %1328 = vmatprep.subr.bf16.mxu0 %v1275
        %1329 = vmatpush2.bf16.msra.mxu0 %v1274
        %1330 = vmatprep.subr.bf16.mxu0 %v1273
        %1331 = vmatpush2.bf16.msra.mxu0 %v1272
        %1332 = vmatprep.subr.bf16.mxu0 %v1271
        %1333 = vmatpush2.bf16.msra.mxu0 %v1270
        %1334 = vmatprep.subr.bf16.mxu0 %v1269
        %1335 = vmatpush2.bf16.msra.mxu0 %v1268
        %1336 = vmatprep.subr.bf16.mxu0 %v1267
        %1337 = vmatpush2.bf16.msra.mxu0 %v1266
        %1338 = vmatprep.subr.bf16.mxu0 %v1265
        %1339 = vmatpush2.bf16.msra.mxu0 %v1264
        %1340 = vmatprep.subr.bf16.mxu0 %v1263
        %1341 = vmatpush2.bf16.msra.mxu0 %v1262
        %1342 = vmatprep.mubr.bf16.mxu0 %v1147
        %1343 = vmatmul.mubr.bf16.gmra.mxu0 %v1146
        %v1344 = vpop.f32.mrf.mxu0
        %v1345 = vadd.f32 %v1141, %v1344
        %v1346 = vpop.f32.mrf.mxu0
        %v1347 = vadd.f32 %v1145, %v1346
        %v1348 = vpop.f32.mrf.mxu0
        %v1349 = vadd.f32 %v1141, %v1348
        %v1350 = vpop.f32.mrf.mxu0
        %v1351 = vadd.f32 %v1145, %v1350
        %1352 = vdwg.mxu0
        %v1353 = vpack.c.bf16 %v1349, %v1345
        %v1354 = vpack.c.bf16 %v1351, %v1347
        %s1355 = scalar_lea.vmem %s823, 256 [#allocation15]
        %v1356 = vld [vmem:[%s1355] sm:$0xff]
        %v1357 = vld [vmem:[%s1355 + $0x8] sm:$0xff]
        %v1358 = vld [vmem:[%s1355 + $0x10] sm:$0xff]
        %v1359 = vld [vmem:[%s1355 + $0x18] sm:$0xff]
        %v1360 = vld [vmem:[%s1355 + $0x20] sm:$0xff]
        %v1361 = vld [vmem:[%s1355 + $0x28] sm:$0xff]
        %v1362 = vld [vmem:[%s1355 + $0x30] sm:$0xff]
        %v1363 = vld [vmem:[%s1355 + $0x38] sm:$0xff]
        %v1364 = vld [vmem:[%s1355 + $0x40] sm:$0xff]
        %v1365 = vld [vmem:[%s1355 + $0x48] sm:$0xff]
        %v1366 = vld [vmem:[%s1355 + $0x50] sm:$0xff]
        %v1367 = vld [vmem:[%s1355 + $0x58] sm:$0xff]
        %v1368 = vld [vmem:[%s1355 + $0x60] sm:$0xff]
        %v1369 = vld [vmem:[%s1355 + $0x68] sm:$0xff]
        %v1370 = vld [vmem:[%s1355 + $0x70] sm:$0xff]
        %v1371 = vld [vmem:[%s1355 + $0x78] sm:$0xff]
        %v1372 = vld [vmem:[%s1355 + $0x80] sm:$0xff]
        %v1373 = vld [vmem:[%s1355 + $0x88] sm:$0xff]
        %v1374 = vld [vmem:[%s1355 + $0x90] sm:$0xff]
        %v1375 = vld [vmem:[%s1355 + $0x98] sm:$0xff]
        %v1376 = vld [vmem:[%s1355 + $0xa0] sm:$0xff]
        %v1377 = vld [vmem:[%s1355 + $0xa8] sm:$0xff]
        %v1378 = vld [vmem:[%s1355 + $0xb0] sm:$0xff]
        %v1379 = vld [vmem:[%s1355 + $0xb8] sm:$0xff]
        %v1380 = vld [vmem:[%s1355 + $0xc0] sm:$0xff]
        %v1381 = vld [vmem:[%s1355 + $0xc8] sm:$0xff]
        %v1382 = vld [vmem:[%s1355 + $0xd0] sm:$0xff]
        %v1383 = vld [vmem:[%s1355 + $0xd8] sm:$0xff]
        %v1384 = vld [vmem:[%s1355 + $0xe0] sm:$0xff]
        %v1385 = vld [vmem:[%s1355 + $0xe8] sm:$0xff]
        %v1386 = vld [vmem:[%s1355 + $0xf0] sm:$0xff]
        %v1387 = vld [vmem:[%s1355 + $0xf8] sm:$0xff]
        %v1388 = vlaneseq
        %v1389 = vshrl.u32 %v1388, 7
        %v1390 = vsub.s32 1, %v1389
        %v1391 = vrot.slane %v1001, %v1390
        %v1392 = vlaneseq
        %v1393 = vshrl.u32 %v1392, 7
        %v1394 = vsub.s32 5, %v1393
        %v1395 = vrot.slane %v1001, %v1394
        %v1398 = vlaneseq
        %v1399 = vshrl.u32 %v1398, 7
        %v1400 = vsub.s32 1, %v1399
        %v1401 = vrot.slane %v1391, %v1400
        %v1402 = vlaneseq
        %v1403 = vshrl.u32 %v1402, 7
        %v1404 = vsub.s32 1, %v1403
        %v1405 = vrot.slane %v1395, %v1404
        %v1438 = vunpack.c.l.b16 %v1356
        %v1439 = vunpack.c.h.b16 %v1356
        %v1440 = vunpack.c.l.b16 %v1357
        %v1441 = vunpack.c.h.b16 %v1357
        %v1442 = vunpack.c.l.b16 %v1358
        %v1443 = vunpack.c.h.b16 %v1358
        %v1444 = vunpack.c.l.b16 %v1359
        %v1445 = vunpack.c.h.b16 %v1359
        %v1446 = vunpack.c.l.b16 %v1360
        %v1447 = vunpack.c.h.b16 %v1360
        %v1448 = vunpack.c.l.b16 %v1361
        %v1449 = vunpack.c.h.b16 %v1361
        %v1450 = vunpack.c.l.b16 %v1362
        %v1451 = vunpack.c.h.b16 %v1362
        %v1452 = vunpack.c.l.b16 %v1363
        %v1453 = vunpack.c.h.b16 %v1363
        %v1454 = vunpack.c.l.b16 %v1364
        %v1455 = vunpack.c.h.b16 %v1364
        %v1456 = vunpack.c.l.b16 %v1365
        %v1457 = vunpack.c.h.b16 %v1365
        %v1458 = vunpack.c.l.b16 %v1366
        %v1459 = vunpack.c.h.b16 %v1366
        %v1460 = vunpack.c.l.b16 %v1367
        %v1461 = vunpack.c.h.b16 %v1367
        %v1462 = vunpack.c.l.b16 %v1368
        %v1463 = vunpack.c.h.b16 %v1368
        %v1464 = vunpack.c.l.b16 %v1369
        %v1465 = vunpack.c.h.b16 %v1369
        %v1466 = vunpack.c.l.b16 %v1370
        %v1467 = vunpack.c.h.b16 %v1370
        %v1468 = vunpack.c.l.b16 %v1371
        %v1469 = vunpack.c.h.b16 %v1371
        %v1470 = vunpack.c.l.b16 %v1372
        %v1471 = vunpack.c.h.b16 %v1372
        %v1472 = vunpack.c.l.b16 %v1373
        %v1473 = vunpack.c.h.b16 %v1373
        %v1474 = vunpack.c.l.b16 %v1374
        %v1475 = vunpack.c.h.b16 %v1374
        %v1476 = vunpack.c.l.b16 %v1375
        %v1477 = vunpack.c.h.b16 %v1375
        %v1478 = vunpack.c.l.b16 %v1376
        %v1479 = vunpack.c.h.b16 %v1376
        %v1480 = vunpack.c.l.b16 %v1377
        %v1481 = vunpack.c.h.b16 %v1377
        %v1482 = vunpack.c.l.b16 %v1378
        %v1483 = vunpack.c.h.b16 %v1378
        %v1484 = vunpack.c.l.b16 %v1379
        %v1485 = vunpack.c.h.b16 %v1379
        %v1486 = vunpack.c.l.b16 %v1380
        %v1487 = vunpack.c.h.b16 %v1380
        %v1488 = vunpack.c.l.b16 %v1381
        %v1489 = vunpack.c.h.b16 %v1381
        %v1490 = vunpack.c.l.b16 %v1382
        %v1491 = vunpack.c.h.b16 %v1382
        %v1492 = vunpack.c.l.b16 %v1383
        %v1493 = vunpack.c.h.b16 %v1383
        %v1494 = vunpack.c.l.b16 %v1384
        %v1495 = vunpack.c.h.b16 %v1384
        %v1496 = vunpack.c.l.b16 %v1385
        %v1497 = vunpack.c.h.b16 %v1385
        %v1498 = vunpack.c.l.b16 %v1386
        %v1499 = vunpack.c.h.b16 %v1386
        %v1500 = vunpack.c.l.b16 %v1387
        %v1501 = vunpack.c.h.b16 %v1387
        %v1502 = vpack.c.b16 %v1440, %v1438
        %v1503 = vpack.c.b16 %v1441, %v1439
        %v1504 = vpack.c.b16 %v1444, %v1442
        %v1505 = vpack.c.b16 %v1445, %v1443
        %v1506 = vpack.c.b16 %v1448, %v1446
        %v1507 = vpack.c.b16 %v1449, %v1447
        %v1508 = vpack.c.b16 %v1452, %v1450
        %v1509 = vpack.c.b16 %v1453, %v1451
        %v1510 = vpack.c.b16 %v1456, %v1454
        %v1511 = vpack.c.b16 %v1457, %v1455
        %v1512 = vpack.c.b16 %v1460, %v1458
        %v1513 = vpack.c.b16 %v1461, %v1459
        %v1514 = vpack.c.b16 %v1464, %v1462
        %v1515 = vpack.c.b16 %v1465, %v1463
        %v1516 = vpack.c.b16 %v1468, %v1466
        %v1517 = vpack.c.b16 %v1469, %v1467
        %v1518 = vpack.c.b16 %v1472, %v1470
        %v1519 = vpack.c.b16 %v1473, %v1471
        %v1520 = vpack.c.b16 %v1476, %v1474
        %v1521 = vpack.c.b16 %v1477, %v1475
        %v1522 = vpack.c.b16 %v1480, %v1478
        %v1523 = vpack.c.b16 %v1481, %v1479
        %v1524 = vpack.c.b16 %v1484, %v1482
        %v1525 = vpack.c.b16 %v1485, %v1483
        %v1526 = vpack.c.b16 %v1488, %v1486
        %v1527 = vpack.c.b16 %v1489, %v1487
        %v1528 = vpack.c.b16 %v1492, %v1490
        %v1529 = vpack.c.b16 %v1493, %v1491
        %v1530 = vpack.c.b16 %v1496, %v1494
        %v1531 = vpack.c.b16 %v1497, %v1495
        %v1532 = vpack.c.b16 %v1500, %v1498
        %v1533 = vpack.c.b16 %v1501, %v1499
        %1566 = vmatprep.subr.bf16.mxu0 %v1517
        %1567 = vmatpush1.bf16.msra.mxu0 %v1516
        %1568 = vmatprep.subr.bf16.mxu0 %v1515
        %1569 = vmatpush1.bf16.msra.mxu0 %v1514
        %1570 = vmatprep.subr.bf16.mxu0 %v1513
        %1571 = vmatpush1.bf16.msra.mxu0 %v1512
        %1572 = vmatprep.subr.bf16.mxu0 %v1511
        %1573 = vmatpush1.bf16.msra.mxu0 %v1510
        %1574 = vmatprep.subr.bf16.mxu0 %v1509
        %1575 = vmatpush1.bf16.msra.mxu0 %v1508
        %1576 = vmatprep.subr.bf16.mxu0 %v1507
        %1577 = vmatpush1.bf16.msra.mxu0 %v1506
        %1578 = vmatprep.subr.bf16.mxu0 %v1505
        %1579 = vmatpush1.bf16.msra.mxu0 %v1504
        %1580 = vmatprep.subr.bf16.mxu0 %v1503
        %1581 = vmatpush1.bf16.msra.mxu0 %v1502
        %1582 = vmatprep.subr.bf16.mxu0 %v1533
        %1583 = vmatpush2.bf16.msra.mxu0 %v1532
        %1584 = vmatprep.subr.bf16.mxu0 %v1531
        %1585 = vmatpush2.bf16.msra.mxu0 %v1530
        %1586 = vmatprep.subr.bf16.mxu0 %v1529
        %1587 = vmatpush2.bf16.msra.mxu0 %v1528
        %1588 = vmatprep.subr.bf16.mxu0 %v1527
        %1589 = vmatpush2.bf16.msra.mxu0 %v1526
        %1590 = vmatprep.subr.bf16.mxu0 %v1525
        %1591 = vmatpush2.bf16.msra.mxu0 %v1524
        %1592 = vmatprep.subr.bf16.mxu0 %v1523
        %1593 = vmatpush2.bf16.msra.mxu0 %v1522
        %1594 = vmatprep.subr.bf16.mxu0 %v1521
        %1595 = vmatpush2.bf16.msra.mxu0 %v1520
        %1596 = vmatprep.subr.bf16.mxu0 %v1519
        %1597 = vmatpush2.bf16.msra.mxu0 %v1518
        %1598 = vmatprep.mubr.bf16.mxu0 %v1147
        %1599 = vmatmul.mubr.bf16.gmra.mxu0 %v1146
        %v1600 = vpop.f32.mrf.mxu0
        %v1601 = vadd.f32 %v1401, %v1600
        %v1602 = vpop.f32.mrf.mxu0
        %v1603 = vadd.f32 %v1405, %v1602
        %v1604 = vpop.f32.mrf.mxu0
        %v1605 = vadd.f32 %v1401, %v1604
        %v1606 = vpop.f32.mrf.mxu0
        %v1607 = vadd.f32 %v1405, %v1606
        %1608 = vdwg.mxu0
        %v1609 = vpack.c.bf16 %v1605, %v1601
        %v1610 = vpack.c.bf16 %v1607, %v1603
        %s1611 = scalar_lea.vmem %s823, 512 [#allocation15]
        %v1612 = vld [vmem:[%s1611] sm:$0xff]
        %v1613 = vld [vmem:[%s1611 + $0x8] sm:$0xff]
        %v1614 = vld [vmem:[%s1611 + $0x10] sm:$0xff]
        %v1615 = vld [vmem:[%s1611 + $0x18] sm:$0xff]
        %v1616 = vld [vmem:[%s1611 + $0x20] sm:$0xff]
        %v1617 = vld [vmem:[%s1611 + $0x28] sm:$0xff]
        %v1618 = vld [vmem:[%s1611 + $0x30] sm:$0xff]
        %v1619 = vld [vmem:[%s1611 + $0x38] sm:$0xff]
        %v1620 = vld [vmem:[%s1611 + $0x40] sm:$0xff]
        %v1621 = vld [vmem:[%s1611 + $0x48] sm:$0xff]
        %v1622 = vld [vmem:[%s1611 + $0x50] sm:$0xff]
        %v1623 = vld [vmem:[%s1611 + $0x58] sm:$0xff]
        %v1624 = vld [vmem:[%s1611 + $0x60] sm:$0xff]
        %v1625 = vld [vmem:[%s1611 + $0x68] sm:$0xff]
        %v1626 = vld [vmem:[%s1611 + $0x70] sm:$0xff]
        %v1627 = vld [vmem:[%s1611 + $0x78] sm:$0xff]
        %v1628 = vld [vmem:[%s1611 + $0x80] sm:$0xff]
        %v1629 = vld [vmem:[%s1611 + $0x88] sm:$0xff]
        %v1630 = vld [vmem:[%s1611 + $0x90] sm:$0xff]
        %v1631 = vld [vmem:[%s1611 + $0x98] sm:$0xff]
        %v1632 = vld [vmem:[%s1611 + $0xa0] sm:$0xff]
        %v1633 = vld [vmem:[%s1611 + $0xa8] sm:$0xff]
        %v1634 = vld [vmem:[%s1611 + $0xb0] sm:$0xff]
        %v1635 = vld [vmem:[%s1611 + $0xb8] sm:$0xff]
        %v1636 = vld [vmem:[%s1611 + $0xc0] sm:$0xff]
        %v1637 = vld [vmem:[%s1611 + $0xc8] sm:$0xff]
        %v1638 = vld [vmem:[%s1611 + $0xd0] sm:$0xff]
        %v1639 = vld [vmem:[%s1611 + $0xd8] sm:$0xff]
        %v1640 = vld [vmem:[%s1611 + $0xe0] sm:$0xff]
        %v1641 = vld [vmem:[%s1611 + $0xe8] sm:$0xff]
        %v1642 = vld [vmem:[%s1611 + $0xf0] sm:$0xff]
        %v1643 = vld [vmem:[%s1611 + $0xf8] sm:$0xff]
        %v1644 = vlaneseq
        %v1645 = vshrl.u32 %v1644, 7
        %v1646 = vsub.s32 2, %v1645
        %v1647 = vrot.slane %v1001, %v1646
        %v1648 = vlaneseq
        %v1649 = vshrl.u32 %v1648, 7
        %v1650 = vsub.s32 6, %v1649
        %v1651 = vrot.slane %v1001, %v1650
        %v1654 = vlaneseq
        %v1655 = vshrl.u32 %v1654, 7
        %v1656 = vsub.s32 2, %v1655
        %v1657 = vrot.slane %v1647, %v1656
        %v1658 = vlaneseq
        %v1659 = vshrl.u32 %v1658, 7
        %v1660 = vsub.s32 2, %v1659
        %v1661 = vrot.slane %v1651, %v1660
        %v1694 = vunpack.c.l.b16 %v1612
        %v1695 = vunpack.c.h.b16 %v1612
        %v1696 = vunpack.c.l.b16 %v1613
        %v1697 = vunpack.c.h.b16 %v1613
        %v1698 = vunpack.c.l.b16 %v1614
        %v1699 = vunpack.c.h.b16 %v1614
        %v1700 = vunpack.c.l.b16 %v1615
        %v1701 = vunpack.c.h.b16 %v1615
        %v1702 = vunpack.c.l.b16 %v1616
        %v1703 = vunpack.c.h.b16 %v1616
        %v1704 = vunpack.c.l.b16 %v1617
        %v1705 = vunpack.c.h.b16 %v1617
        %v1706 = vunpack.c.l.b16 %v1618
        %v1707 = vunpack.c.h.b16 %v1618
        %v1708 = vunpack.c.l.b16 %v1619
        %v1709 = vunpack.c.h.b16 %v1619
        %v1710 = vunpack.c.l.b16 %v1620
        %v1711 = vunpack.c.h.b16 %v1620
        %v1712 = vunpack.c.l.b16 %v1621
        %v1713 = vunpack.c.h.b16 %v1621
        %v1714 = vunpack.c.l.b16 %v1622
        %v1715 = vunpack.c.h.b16 %v1622
        %v1716 = vunpack.c.l.b16 %v1623
        %v1717 = vunpack.c.h.b16 %v1623
        %v1718 = vunpack.c.l.b16 %v1624
        %v1719 = vunpack.c.h.b16 %v1624
        %v1720 = vunpack.c.l.b16 %v1625
        %v1721 = vunpack.c.h.b16 %v1625
        %v1722 = vunpack.c.l.b16 %v1626
        %v1723 = vunpack.c.h.b16 %v1626
        %v1724 = vunpack.c.l.b16 %v1627
        %v1725 = vunpack.c.h.b16 %v1627
        %v1726 = vunpack.c.l.b16 %v1628
        %v1727 = vunpack.c.h.b16 %v1628
        %v1728 = vunpack.c.l.b16 %v1629
        %v1729 = vunpack.c.h.b16 %v1629
        %v1730 = vunpack.c.l.b16 %v1630
        %v1731 = vunpack.c.h.b16 %v1630
        %v1732 = vunpack.c.l.b16 %v1631
        %v1733 = vunpack.c.h.b16 %v1631
        %v1734 = vunpack.c.l.b16 %v1632
        %v1735 = vunpack.c.h.b16 %v1632
        %v1736 = vunpack.c.l.b16 %v1633
        %v1737 = vunpack.c.h.b16 %v1633
        %v1738 = vunpack.c.l.b16 %v1634
        %v1739 = vunpack.c.h.b16 %v1634
        %v1740 = vunpack.c.l.b16 %v1635
        %v1741 = vunpack.c.h.b16 %v1635
        %v1742 = vunpack.c.l.b16 %v1636
        %v1743 = vunpack.c.h.b16 %v1636
        %v1744 = vunpack.c.l.b16 %v1637
        %v1745 = vunpack.c.h.b16 %v1637
        %v1746 = vunpack.c.l.b16 %v1638
        %v1747 = vunpack.c.h.b16 %v1638
        %v1748 = vunpack.c.l.b16 %v1639
        %v1749 = vunpack.c.h.b16 %v1639
        %v1750 = vunpack.c.l.b16 %v1640
        %v1751 = vunpack.c.h.b16 %v1640
        %v1752 = vunpack.c.l.b16 %v1641
        %v1753 = vunpack.c.h.b16 %v1641
        %v1754 = vunpack.c.l.b16 %v1642
        %v1755 = vunpack.c.h.b16 %v1642
        %v1756 = vunpack.c.l.b16 %v1643
        %v1757 = vunpack.c.h.b16 %v1643
        %v1758 = vpack.c.b16 %v1696, %v1694
        %v1759 = vpack.c.b16 %v1697, %v1695
        %v1760 = vpack.c.b16 %v1700, %v1698
        %v1761 = vpack.c.b16 %v1701, %v1699
        %v1762 = vpack.c.b16 %v1704, %v1702
        %v1763 = vpack.c.b16 %v1705, %v1703
        %v1764 = vpack.c.b16 %v1708, %v1706
        %v1765 = vpack.c.b16 %v1709, %v1707
        %v1766 = vpack.c.b16 %v1712, %v1710
        %v1767 = vpack.c.b16 %v1713, %v1711
        %v1768 = vpack.c.b16 %v1716, %v1714
        %v1769 = vpack.c.b16 %v1717, %v1715
        %v1770 = vpack.c.b16 %v1720, %v1718
        %v1771 = vpack.c.b16 %v1721, %v1719
        %v1772 = vpack.c.b16 %v1724, %v1722
        %v1773 = vpack.c.b16 %v1725, %v1723
        %v1774 = vpack.c.b16 %v1728, %v1726
        %v1775 = vpack.c.b16 %v1729, %v1727
        %v1776 = vpack.c.b16 %v1732, %v1730
        %v1777 = vpack.c.b16 %v1733, %v1731
        %v1778 = vpack.c.b16 %v1736, %v1734
        %v1779 = vpack.c.b16 %v1737, %v1735
        %v1780 = vpack.c.b16 %v1740, %v1738
        %v1781 = vpack.c.b16 %v1741, %v1739
        %v1782 = vpack.c.b16 %v1744, %v1742
        %v1783 = vpack.c.b16 %v1745, %v1743
        %v1784 = vpack.c.b16 %v1748, %v1746
        %v1785 = vpack.c.b16 %v1749, %v1747
        %v1786 = vpack.c.b16 %v1752, %v1750
        %v1787 = vpack.c.b16 %v1753, %v1751
        %v1788 = vpack.c.b16 %v1756, %v1754
        %v1789 = vpack.c.b16 %v1757, %v1755
        %1822 = vmatprep.subr.bf16.mxu0 %v1773
        %1823 = vmatpush1.bf16.msra.mxu0 %v1772
        %1824 = vmatprep.subr.bf16.mxu0 %v1771
        %1825 = vmatpush1.bf16.msra.mxu0 %v1770
        %1826 = vmatprep.subr.bf16.mxu0 %v1769
        %1827 = vmatpush1.bf16.msra.mxu0 %v1768
        %1828 = vmatprep.subr.bf16.mxu0 %v1767
        %1829 = vmatpush1.bf16.msra.mxu0 %v1766
        %1830 = vmatprep.subr.bf16.mxu0 %v1765
        %1831 = vmatpush1.bf16.msra.mxu0 %v1764
        %1832 = vmatprep.subr.bf16.mxu0 %v1763
        %1833 = vmatpush1.bf16.msra.mxu0 %v1762
        %1834 = vmatprep.subr.bf16.mxu0 %v1761
        %1835 = vmatpush1.bf16.msra.mxu0 %v1760
        %1836 = vmatprep.subr.bf16.mxu0 %v1759
        %1837 = vmatpush1.bf16.msra.mxu0 %v1758
        %1838 = vmatprep.subr.bf16.mxu0 %v1789
        %1839 = vmatpush2.bf16.msra.mxu0 %v1788
        %1840 = vmatprep.subr.bf16.mxu0 %v1787
        %1841 = vmatpush2.bf16.msra.mxu0 %v1786
        %1842 = vmatprep.subr.bf16.mxu0 %v1785
        %1843 = vmatpush2.bf16.msra.mxu0 %v1784
        %1844 = vmatprep.subr.bf16.mxu0 %v1783
        %1845 = vmatpush2.bf16.msra.mxu0 %v1782
        %1846 = vmatprep.subr.bf16.mxu0 %v1781
        %1847 = vmatpush2.bf16.msra.mxu0 %v1780
        %1848 = vmatprep.subr.bf16.mxu0 %v1779
        %1849 = vmatpush2.bf16.msra.mxu0 %v1778
        %1850 = vmatprep.subr.bf16.mxu0 %v1777
        %1851 = vmatpush2.bf16.msra.mxu0 %v1776
        %1852 = vmatprep.subr.bf16.mxu0 %v1775
        %1853 = vmatpush2.bf16.msra.mxu0 %v1774
        %1854 = vmatprep.mubr.bf16.mxu0 %v1147
        %1855 = vmatmul.mubr.bf16.gmra.mxu0 %v1146
        %v1856 = vpop.f32.mrf.mxu0
        %v1857 = vadd.f32 %v1657, %v1856
        %v1858 = vpop.f32.mrf.mxu0
        %v1859 = vadd.f32 %v1661, %v1858
        %v1860 = vpop.f32.mrf.mxu0
        %v1861 = vadd.f32 %v1657, %v1860
        %v1862 = vpop.f32.mrf.mxu0
        %v1863 = vadd.f32 %v1661, %v1862
        %1864 = vdwg.mxu0
        %v1865 = vpack.c.bf16 %v1861, %v1857
        %v1866 = vpack.c.bf16 %v1863, %v1859
        %v1868 = vunpack.c.l.b16 %v1353
        %v1869 = vunpack.c.h.b16 %v1353
        %v1870 = vpack.c.b16 %v1868, %v1868
        %v1871 = vpack.c.b16 %v1869, %v1869
        %v1875 = vunpack.c.l.b16 %v1609
        %v1876 = vunpack.c.h.b16 %v1609
        %v1877 = vpack.c.b16 %v1875, %v1875
        %v1878 = vpack.c.b16 %v1876, %v1876
        %v1882 = vunpack.c.l.b16 %v1865
        %v1883 = vunpack.c.h.b16 %v1865
        %v1884 = vpack.c.b16 %v1882, %v1882
        %v1885 = vpack.c.b16 %v1883, %v1883
        %1886 = vmatprep.subr.bf16.mxu0 0
        %1887 = vmatpush1.bf16.xpose.msra.mxu0 0
        %1888 = vmatprep.subr.bf16.mxu0 0
        %1889 = vmatpush1.bf16.xpose.msra.mxu0 0
        %1890 = vmatprep.subr.bf16.mxu0 0
        %1891 = vmatpush1.bf16.xpose.msra.mxu0 0
        %1892 = vmatprep.subr.bf16.mxu0 0
        %1893 = vmatpush1.bf16.xpose.msra.mxu0 0
        %1894 = vmatprep.subr.bf16.mxu0 0
        %1895 = vmatpush1.bf16.xpose.msra.mxu0 0
        %1896 = vmatprep.subr.bf16.mxu0 0
        %1897 = vmatpush1.bf16.xpose.msra.mxu0 0
        %1898 = vmatprep.subr.bf16.mxu0 0
        %1899 = vmatpush1.bf16.xpose.msra.mxu0 0
        %1900 = vmatprep.subr.bf16.mxu0 0
        %1901 = vmatpush1.bf16.xpose.msra.mxu0 %v1877
        %1902 = vmatprep.subr.bf16.mxu0 0
        %1903 = vmatpush2.bf16.xpose.msra.mxu0 0
        %1904 = vmatprep.subr.bf16.mxu0 0
        %1905 = vmatpush2.bf16.xpose.msra.mxu0 0
        %1906 = vmatprep.subr.bf16.mxu0 0
        %1907 = vmatpush2.bf16.xpose.msra.mxu0 0
        %1908 = vmatprep.subr.bf16.mxu0 0
        %1909 = vmatpush2.bf16.xpose.msra.mxu0 0
        %1910 = vmatprep.subr.bf16.mxu0 0
        %1911 = vmatpush2.bf16.xpose.msra.mxu0 0
        %1912 = vmatprep.subr.bf16.mxu0 0
        %1913 = vmatpush2.bf16.xpose.msra.mxu0 0
        %1914 = vmatprep.subr.bf16.mxu0 0
        %1915 = vmatpush2.bf16.xpose.msra.mxu0 0
        %1916 = vmatprep.subr.bf16.mxu0 0
        %1917 = vmatpush2.bf16.xpose.msra.mxu0 0
        %1918 = vmatprep.mubr.bf16.mxu0 0
        %1919 = vmatmul.mubr.bf16.gmra.mxu0 %v1870
        %v1920 = vpop.f32.mrf.mxu0
        %v1921 = vadd.f32 0.0, %v1920
        %v1922 = vpop.f32.mrf.mxu0
        %v1923 = vpop.f32.mrf.mxu0
        %v1924 = vpop.f32.mrf.mxu0
        %1925 = vdwg.mxu0
        %1926 = vmatprep.subr.bf16.mxu0 0
        %1927 = vmatpush1.bf16.xpose.msra.mxu0 0
        %1928 = vmatprep.subr.bf16.mxu0 0
        %1929 = vmatpush1.bf16.xpose.msra.mxu0 0
        %1930 = vmatprep.subr.bf16.mxu0 0
        %1931 = vmatpush1.bf16.xpose.msra.mxu0 0
        %1932 = vmatprep.subr.bf16.mxu0 0
        %1933 = vmatpush1.bf16.xpose.msra.mxu0 0
        %1934 = vmatprep.subr.bf16.mxu0 0
        %1935 = vmatpush1.bf16.xpose.msra.mxu0 0
        %1936 = vmatprep.subr.bf16.mxu0 0
        %1937 = vmatpush1.bf16.xpose.msra.mxu0 0
        %1938 = vmatprep.subr.bf16.mxu0 0
        %1939 = vmatpush1.bf16.xpose.msra.mxu0 0
        %1940 = vmatprep.subr.bf16.mxu0 0
        %1941 = vmatpush1.bf16.xpose.msra.mxu0 %v1878
        %1942 = vmatprep.subr.bf16.mxu0 0
        %1943 = vmatpush2.bf16.xpose.msra.mxu0 0
        %1944 = vmatprep.subr.bf16.mxu0 0
        %1945 = vmatpush2.bf16.xpose.msra.mxu0 0
        %1946 = vmatprep.subr.bf16.mxu0 0
        %1947 = vmatpush2.bf16.xpose.msra.mxu0 0
        %1948 = vmatprep.subr.bf16.mxu0 0
        %1949 = vmatpush2.bf16.xpose.msra.mxu0 0
        %1950 = vmatprep.subr.bf16.mxu0 0
        %1951 = vmatpush2.bf16.xpose.msra.mxu0 0
        %1952 = vmatprep.subr.bf16.mxu0 0
        %1953 = vmatpush2.bf16.xpose.msra.mxu0 0
        %1954 = vmatprep.subr.bf16.mxu0 0
        %1955 = vmatpush2.bf16.xpose.msra.mxu0 0
        %1956 = vmatprep.subr.bf16.mxu0 0
        %1957 = vmatpush2.bf16.xpose.msra.mxu0 0
        %1958 = vmatprep.mubr.bf16.mxu0 0
        %1959 = vmatmul.mubr.bf16.gmra.mxu0 %v1871
        %v1960 = vpop.f32.mrf.mxu0
        %v1961 = vadd.f32 0.0, %v1960
        %v1962 = vpop.f32.mrf.mxu0
        %v1963 = vpop.f32.mrf.mxu0
        %v1964 = vpop.f32.mrf.mxu0
        %1965 = vdwg.mxu0
        %v1966 = vmul.f32 %v1921, 0.088388346
        %v1967 = vmul.f32 %v1961, 0.088388346
        %v1970 = vlaneseq
        %v1971 = vshrl.u32 %v1970, 7
        %v1972 = vsub.s32 0, %v1971
        %v1973 = vrot.slane %v992, %v1972
        %v1974 = vlaneseq
        %v1975 = vshrl.u32 %v1974, 7
        %v1976 = vsub.s32 0, %v1975
        %v1977 = vrot.slane %v993, %v1976
        %v1980 = vadd.f32 %v1966, %v1973
        %v1981 = vadd.f32 %v1967, %v1977
        %vm1982 = vcmask 64512
        %v1983 = vsel %vm1982, %v1980, -inf
        %1984 = vmax.xlane.f32.xlu0 %v1983
        %v1985 = vpop.xlane.xlu0 %1984
        %v1986 = vsel %vm1982, %v1981, -inf
        %1987 = vmax.xlane.f32.xlu0 %v1986
        %v1988 = vpop.xlane.xlu0 %1987
        %v1989 = vsub.f32 %v1980, %v1985
        %v1990 = vsub.f32 %v1981, %v1988
        %v1991 = vmul.f32 %v1989, 1.442695
        %v1992 = vpow.pop %v1991
        %v1993 = vmul.f32 %v1990, 1.442695
        %v1994 = vpow.pop %v1993
        %v1995 = vsel %vm1982, %v1992, 0.0
        %1996 = vadd.xlane.f32.xlu0 %v1995
        %v1997 = vpop.xlane.xlu0 %1996
        %v1998 = vsel %vm1982, %v1994, 0.0
        %1999 = vadd.xlane.f32.xlu0 %v1998
        %v2000 = vpop.xlane.xlu0 %1999
        %v2001 = vrcp.pop %v1997
        %v2002 = vrcp.pop %v2000
        %v2003 = vmul.f32 %v1992, %v2001
        %v2004 = vmul.f32 %v1994, %v2002
        %v2007 = vlaneseq
        %v2008 = vshrl.u32 %v2007, 7
        %v2009 = vsub.s32 0, %v2008
        %v2010 = vrot.slane %v990, %v2009
        %v2011 = vlaneseq
        %v2012 = vshrl.u32 %v2011, 7
        %v2013 = vsub.s32 0, %v2012
        %v2014 = vrot.slane %v991, %v2013
        %v2017 = vmul.f32 %v2003, %v2010
        %v2018 = vmul.f32 %v2004, %v2014
        %v2019 = vpack.c.bf16 %v2017, %v2017
        %v2020 = vpack.c.bf16 %v2018, %v2018
        %v2022 = vsel %vm1982, %v2019, 0
        %vm2024 = vcmask 1043456
        %v2026 = vsel %vm2024, %v1884, 0
        %2028 = vmatprep.subr.bf16.mxu0 0
        %2029 = vmatpush1.bf16.msra.mxu0 0
        %2030 = vmatprep.subr.bf16.mxu0 0
        %2031 = vmatpush1.bf16.msra.mxu0 0
        %2032 = vmatprep.subr.bf16.mxu0 0
        %2033 = vmatpush1.bf16.msra.mxu0 0
        %2034 = vmatprep.subr.bf16.mxu0 0
        %2035 = vmatpush1.bf16.msra.mxu0 0
        %2036 = vmatprep.subr.bf16.mxu0 0
        %2037 = vmatpush1.bf16.msra.mxu0 0
        %2038 = vmatprep.subr.bf16.mxu0 0
        %2039 = vmatpush1.bf16.msra.mxu0 0
        %2040 = vmatprep.subr.bf16.mxu0 0
        %2041 = vmatpush1.bf16.msra.mxu0 0
        %2042 = vmatprep.subr.bf16.mxu0 0
        %2043 = vmatpush1.bf16.msra.mxu0 %v2026
        %2044 = vmatprep.subr.bf16.mxu0 0
        %2045 = vmatpush2.bf16.msra.mxu0 0
        %2046 = vmatprep.subr.bf16.mxu0 0
        %2047 = vmatpush2.bf16.msra.mxu0 0
        %2048 = vmatprep.subr.bf16.mxu0 0
        %2049 = vmatpush2.bf16.msra.mxu0 0
        %2050 = vmatprep.subr.bf16.mxu0 0
        %2051 = vmatpush2.bf16.msra.mxu0 0
        %2052 = vmatprep.subr.bf16.mxu0 0
        %2053 = vmatpush2.bf16.msra.mxu0 0
        %2054 = vmatprep.subr.bf16.mxu0 0
        %2055 = vmatpush2.bf16.msra.mxu0 0
        %2056 = vmatprep.subr.bf16.mxu0 0
        %2057 = vmatpush2.bf16.msra.mxu0 0
        %2058 = vmatprep.subr.bf16.mxu0 0
        %2059 = vmatpush2.bf16.msra.mxu0 0
        %2060 = vmatprep.mubr.bf16.mxu0 0
        %2061 = vmatmul.mubr.bf16.gmra.mxu0 %v2022
        %v2062 = vpop.f32.mrf.mxu0
        %v2063 = vadd.f32 0.0, %v2062
        %v2064 = vpop.f32.mrf.mxu0
        %v2065 = vpop.f32.mrf.mxu0
        %v2066 = vpop.f32.mrf.mxu0
        %2067 = vdwg.mxu0
        %v2069 = vsel %vm1982, %v2020, 0
        %v2072 = vsel %vm2024, %v1885, 0
        %2074 = vmatprep.subr.bf16.mxu0 0
        %2075 = vmatpush1.bf16.msra.mxu0 0
        %2076 = vmatprep.subr.bf16.mxu0 0
        %2077 = vmatpush1.bf16.msra.mxu0 0
        %2078 = vmatprep.subr.bf16.mxu0 0
        %2079 = vmatpush1.bf16.msra.mxu0 0
        %2080 = vmatprep.subr.bf16.mxu0 0
        %2081 = vmatpush1.bf16.msra.mxu0 0
        %2082 = vmatprep.subr.bf16.mxu0 0
        %2083 = vmatpush1.bf16.msra.mxu0 0
        %2084 = vmatprep.subr.bf16.mxu0 0
        %2085 = vmatpush1.bf16.msra.mxu0 0
        %2086 = vmatprep.subr.bf16.mxu0 0
        %2087 = vmatpush1.bf16.msra.mxu0 0
        %2088 = vmatprep.subr.bf16.mxu0 0
        %2089 = vmatpush1.bf16.msra.mxu0 %v2072
        %2090 = vmatprep.subr.bf16.mxu0 0
        %2091 = vmatpush2.bf16.msra.mxu0 0
        %2092 = vmatprep.subr.bf16.mxu0 0
        %2093 = vmatpush2.bf16.msra.mxu0 0
        %2094 = vmatprep.subr.bf16.mxu0 0
        %2095 = vmatpush2.bf16.msra.mxu0 0
        %2096 = vmatprep.subr.bf16.mxu0 0
        %2097 = vmatpush2.bf16.msra.mxu0 0
        %2098 = vmatprep.subr.bf16.mxu0 0
        %2099 = vmatpush2.bf16.msra.mxu0 0
        %2100 = vmatprep.subr.bf16.mxu0 0
        %2101 = vmatpush2.bf16.msra.mxu0 0
        %2102 = vmatprep.subr.bf16.mxu0 0
        %2103 = vmatpush2.bf16.msra.mxu0 0
        %2104 = vmatprep.subr.bf16.mxu0 0
        %2105 = vmatpush2.bf16.msra.mxu0 0
        %2106 = vmatprep.mubr.bf16.mxu0 0
        %2107 = vmatmul.mubr.bf16.gmra.mxu0 %v2069
        %v2108 = vpop.f32.mrf.mxu0
        %v2109 = vadd.f32 0.0, %v2108
        %v2110 = vpop.f32.mrf.mxu0
        %v2111 = vpop.f32.mrf.mxu0
        %v2112 = vpop.f32.mrf.mxu0
        %2113 = vdwg.mxu0
        %v2114 = vpack.c.bf16 %v2109, %v2063
        %v2116 = vunpack.c.l.b16 %v1354
        %v2117 = vunpack.c.h.b16 %v1354
        %v2118 = vpack.c.b16 %v2116, %v2116
        %v2119 = vpack.c.b16 %v2117, %v2117
        %v2123 = vunpack.c.l.b16 %v1610
        %v2124 = vunpack.c.h.b16 %v1610
        %v2125 = vpack.c.b16 %v2123, %v2123
        %v2126 = vpack.c.b16 %v2124, %v2124
        %v2130 = vunpack.c.l.b16 %v1866
        %v2131 = vunpack.c.h.b16 %v1866
        %v2132 = vpack.c.b16 %v2130, %v2130
        %v2133 = vpack.c.b16 %v2131, %v2131
        %2134 = vmatprep.subr.bf16.mxu0 0
        %2135 = vmatpush1.bf16.xpose.msra.mxu0 0
        %2136 = vmatprep.subr.bf16.mxu0 0
        %2137 = vmatpush1.bf16.xpose.msra.mxu0 0
        %2138 = vmatprep.subr.bf16.mxu0 0
        %2139 = vmatpush1.bf16.xpose.msra.mxu0 0
        %2140 = vmatprep.subr.bf16.mxu0 0
        %2141 = vmatpush1.bf16.xpose.msra.mxu0 0
        %2142 = vmatprep.subr.bf16.mxu0 0
        %2143 = vmatpush1.bf16.xpose.msra.mxu0 0
        %2144 = vmatprep.subr.bf16.mxu0 0
        %2145 = vmatpush1.bf16.xpose.msra.mxu0 0
        %2146 = vmatprep.subr.bf16.mxu0 0
        %2147 = vmatpush1.bf16.xpose.msra.mxu0 0
        %2148 = vmatprep.subr.bf16.mxu0 0
        %2149 = vmatpush1.bf16.xpose.msra.mxu0 %v2125
        %2150 = vmatprep.subr.bf16.mxu0 0
        %2151 = vmatpush2.bf16.xpose.msra.mxu0 0
        %2152 = vmatprep.subr.bf16.mxu0 0
        %2153 = vmatpush2.bf16.xpose.msra.mxu0 0
        %2154 = vmatprep.subr.bf16.mxu0 0
        %2155 = vmatpush2.bf16.xpose.msra.mxu0 0
        %2156 = vmatprep.subr.bf16.mxu0 0
        %2157 = vmatpush2.bf16.xpose.msra.mxu0 0
        %2158 = vmatprep.subr.bf16.mxu0 0
        %2159 = vmatpush2.bf16.xpose.msra.mxu0 0
        %2160 = vmatprep.subr.bf16.mxu0 0
        %2161 = vmatpush2.bf16.xpose.msra.mxu0 0
        %2162 = vmatprep.subr.bf16.mxu0 0
        %2163 = vmatpush2.bf16.xpose.msra.mxu0 0
        %2164 = vmatprep.subr.bf16.mxu0 0
        %2165 = vmatpush2.bf16.xpose.msra.mxu0 0
        %2166 = vmatprep.mubr.bf16.mxu0 0
        %2167 = vmatmul.mubr.bf16.gmra.mxu0 %v2118
        %v2168 = vpop.f32.mrf.mxu0
        %v2169 = vadd.f32 0.0, %v2168
        %v2170 = vpop.f32.mrf.mxu0
        %v2171 = vpop.f32.mrf.mxu0
        %v2172 = vpop.f32.mrf.mxu0
        %2173 = vdwg.mxu0
        %2174 = vmatprep.subr.bf16.mxu0 0
        %2175 = vmatpush1.bf16.xpose.msra.mxu0 0
        %2176 = vmatprep.subr.bf16.mxu0 0
        %2177 = vmatpush1.bf16.xpose.msra.mxu0 0
        %2178 = vmatprep.subr.bf16.mxu0 0
        %2179 = vmatpush1.bf16.xpose.msra.mxu0 0
        %2180 = vmatprep.subr.bf16.mxu0 0
        %2181 = vmatpush1.bf16.xpose.msra.mxu0 0
        %2182 = vmatprep.subr.bf16.mxu0 0
        %2183 = vmatpush1.bf16.xpose.msra.mxu0 0
        %2184 = vmatprep.subr.bf16.mxu0 0
        %2185 = vmatpush1.bf16.xpose.msra.mxu0 0
        %2186 = vmatprep.subr.bf16.mxu0 0
        %2187 = vmatpush1.bf16.xpose.msra.mxu0 0
        %2188 = vmatprep.subr.bf16.mxu0 0
        %2189 = vmatpush1.bf16.xpose.msra.mxu0 %v2126
        %2190 = vmatprep.subr.bf16.mxu0 0
        %2191 = vmatpush2.bf16.xpose.msra.mxu0 0
        %2192 = vmatprep.subr.bf16.mxu0 0
        %2193 = vmatpush2.bf16.xpose.msra.mxu0 0
        %2194 = vmatprep.subr.bf16.mxu0 0
        %2195 = vmatpush2.bf16.xpose.msra.mxu0 0
        %2196 = vmatprep.subr.bf16.mxu0 0
        %2197 = vmatpush2.bf16.xpose.msra.mxu0 0
        %2198 = vmatprep.subr.bf16.mxu0 0
        %2199 = vmatpush2.bf16.xpose.msra.mxu0 0
        %2200 = vmatprep.subr.bf16.mxu0 0
        %2201 = vmatpush2.bf16.xpose.msra.mxu0 0
        %2202 = vmatprep.subr.bf16.mxu0 0
        %2203 = vmatpush2.bf16.xpose.msra.mxu0 0
        %2204 = vmatprep.subr.bf16.mxu0 0
        %2205 = vmatpush2.bf16.xpose.msra.mxu0 0
        %2206 = vmatprep.mubr.bf16.mxu0 0
        %2207 = vmatmul.mubr.bf16.gmra.mxu0 %v2119
        %v2208 = vpop.f32.mrf.mxu0
        %v2209 = vadd.f32 0.0, %v2208
        %v2210 = vpop.f32.mrf.mxu0
        %v2211 = vpop.f32.mrf.mxu0
        %v2212 = vpop.f32.mrf.mxu0
        %2213 = vdwg.mxu0
        %v2214 = vmul.f32 %v2169, 0.088388346
        %v2215 = vmul.f32 %v2209, 0.088388346
        %v2216 = vadd.f32 %v2214, %v1973
        %v2217 = vadd.f32 %v2215, %v1977
        %v2218 = vsel %vm1982, %v2216, -inf
        %2219 = vmax.xlane.f32.xlu0 %v2218
        %v2220 = vpop.xlane.xlu0 %2219
        %v2221 = vsel %vm1982, %v2217, -inf
        %2222 = vmax.xlane.f32.xlu0 %v2221
        %v2223 = vpop.xlane.xlu0 %2222
        %v2224 = vsub.f32 %v2216, %v2220
        %v2225 = vsub.f32 %v2217, %v2223
        %v2226 = vmul.f32 %v2224, 1.442695
        %v2227 = vpow.pop %v2226
        %v2228 = vmul.f32 %v2225, 1.442695
        %v2229 = vpow.pop %v2228
        %v2230 = vsel %vm1982, %v2227, 0.0
        %2231 = vadd.xlane.f32.xlu0 %v2230
        %v2232 = vpop.xlane.xlu0 %2231
        %v2233 = vsel %vm1982, %v2229, 0.0
        %2234 = vadd.xlane.f32.xlu0 %v2233
        %v2235 = vpop.xlane.xlu0 %2234
        %v2236 = vrcp.pop %v2232
        %v2237 = vrcp.pop %v2235
        %v2238 = vmul.f32 %v2227, %v2236
        %v2239 = vmul.f32 %v2229, %v2237
        %v2240 = vmul.f32 %v2238, %v2010
        %v2241 = vmul.f32 %v2239, %v2014
        %v2242 = vpack.c.bf16 %v2240, %v2240
        %v2243 = vpack.c.bf16 %v2241, %v2241
        %v2245 = vsel %vm1982, %v2242, 0
        %v2248 = vsel %vm2024, %v2132, 0
        %2250 = vmatprep.subr.bf16.mxu0 0
        %2251 = vmatpush1.bf16.msra.mxu0 0
        %2252 = vmatprep.subr.bf16.mxu0 0
        %2253 = vmatpush1.bf16.msra.mxu0 0
        %2254 = vmatprep.subr.bf16.mxu0 0
        %2255 = vmatpush1.bf16.msra.mxu0 0
        %2256 = vmatprep.subr.bf16.mxu0 0
        %2257 = vmatpush1.bf16.msra.mxu0 0
        %2258 = vmatprep.subr.bf16.mxu0 0
        %2259 = vmatpush1.bf16.msra.mxu0 0
        %2260 = vmatprep.subr.bf16.mxu0 0
        %2261 = vmatpush1.bf16.msra.mxu0 0
        %2262 = vmatprep.subr.bf16.mxu0 0
        %2263 = vmatpush1.bf16.msra.mxu0 0
        %2264 = vmatprep.subr.bf16.mxu0 0
        %2265 = vmatpush1.bf16.msra.mxu0 %v2248
        %2266 = vmatprep.subr.bf16.mxu0 0
        %2267 = vmatpush2.bf16.msra.mxu0 0
        %2268 = vmatprep.subr.bf16.mxu0 0
        %2269 = vmatpush2.bf16.msra.mxu0 0
        %2270 = vmatprep.subr.bf16.mxu0 0
        %2271 = vmatpush2.bf16.msra.mxu0 0
        %2272 = vmatprep.subr.bf16.mxu0 0
        %2273 = vmatpush2.bf16.msra.mxu0 0
        %2274 = vmatprep.subr.bf16.mxu0 0
        %2275 = vmatpush2.bf16.msra.mxu0 0
        %2276 = vmatprep.subr.bf16.mxu0 0
        %2277 = vmatpush2.bf16.msra.mxu0 0
        %2278 = vmatprep.subr.bf16.mxu0 0
        %2279 = vmatpush2.bf16.msra.mxu0 0
        %2280 = vmatprep.subr.bf16.mxu0 0
        %2281 = vmatpush2.bf16.msra.mxu0 0
        %2282 = vmatprep.mubr.bf16.mxu0 0
        %2283 = vmatmul.mubr.bf16.gmra.mxu0 %v2245
        %v2284 = vpop.f32.mrf.mxu0
        %v2285 = vadd.f32 0.0, %v2284
        %v2286 = vpop.f32.mrf.mxu0
        %v2287 = vpop.f32.mrf.mxu0
        %v2288 = vpop.f32.mrf.mxu0
        %2289 = vdwg.mxu0
        %v2291 = vsel %vm1982, %v2243, 0
        %v2294 = vsel %vm2024, %v2133, 0
        %2296 = vmatprep.subr.bf16.mxu0 0
        %2297 = vmatpush1.bf16.msra.mxu0 0
        %2298 = vmatprep.subr.bf16.mxu0 0
        %2299 = vmatpush1.bf16.msra.mxu0 0
        %2300 = vmatprep.subr.bf16.mxu0 0
        %2301 = vmatpush1.bf16.msra.mxu0 0
        %2302 = vmatprep.subr.bf16.mxu0 0
        %2303 = vmatpush1.bf16.msra.mxu0 0
        %2304 = vmatprep.subr.bf16.mxu0 0
        %2305 = vmatpush1.bf16.msra.mxu0 0
        %2306 = vmatprep.subr.bf16.mxu0 0
        %2307 = vmatpush1.bf16.msra.mxu0 0
        %2308 = vmatprep.subr.bf16.mxu0 0
        %2309 = vmatpush1.bf16.msra.mxu0 0
        %2310 = vmatprep.subr.bf16.mxu0 0
        %2311 = vmatpush1.bf16.msra.mxu0 %v2294
        %2312 = vmatprep.subr.bf16.mxu0 0
        %2313 = vmatpush2.bf16.msra.mxu0 0
        %2314 = vmatprep.subr.bf16.mxu0 0
        %2315 = vmatpush2.bf16.msra.mxu0 0
        %2316 = vmatprep.subr.bf16.mxu0 0
        %2317 = vmatpush2.bf16.msra.mxu0 0
        %2318 = vmatprep.subr.bf16.mxu0 0
        %2319 = vmatpush2.bf16.msra.mxu0 0
        %2320 = vmatprep.subr.bf16.mxu0 0
        %2321 = vmatpush2.bf16.msra.mxu0 0
        %2322 = vmatprep.subr.bf16.mxu0 0
        %2323 = vmatpush2.bf16.msra.mxu0 0
        %2324 = vmatprep.subr.bf16.mxu0 0
        %2325 = vmatpush2.bf16.msra.mxu0 0
        %2326 = vmatprep.subr.bf16.mxu0 0
        %2327 = vmatpush2.bf16.msra.mxu0 0
        %2328 = vmatprep.mubr.bf16.mxu0 0
        %2329 = vmatmul.mubr.bf16.gmra.mxu0 %v2291
        %v2330 = vpop.f32.mrf.mxu0
        %v2331 = vadd.f32 0.0, %v2330
        %v2332 = vpop.f32.mrf.mxu0
        %v2333 = vpop.f32.mrf.mxu0
        %v2334 = vpop.f32.mrf.mxu0
        %2335 = vdwg.mxu0
        %v2336 = vpack.c.bf16 %v2331, %v2285
        %s2337 = scalar_lea.vmem %s823, 768 [#allocation15]
        %v2338 = vld [vmem:[%s2337] sm:$0xff]
        %v2339 = vld [vmem:[%s2337 + $0x8] sm:$0xff]
        %v2340 = vld [vmem:[%s2337 + $0x10] sm:$0xff]
        %v2341 = vld [vmem:[%s2337 + $0x18] sm:$0xff]
        %v2342 = vld [vmem:[%s2337 + $0x20] sm:$0xff]
        %v2343 = vld [vmem:[%s2337 + $0x28] sm:$0xff]
        %v2344 = vld [vmem:[%s2337 + $0x30] sm:$0xff]
        %v2345 = vld [vmem:[%s2337 + $0x38] sm:$0xff]
        %v2346 = vld [vmem:[%s2337 + $0x40] sm:$0xff]
        %v2347 = vld [vmem:[%s2337 + $0x48] sm:$0xff]
        %v2348 = vld [vmem:[%s2337 + $0x50] sm:$0xff]
        %v2349 = vld [vmem:[%s2337 + $0x58] sm:$0xff]
        %v2350 = vld [vmem:[%s2337 + $0x60] sm:$0xff]
        %v2351 = vld [vmem:[%s2337 + $0x68] sm:$0xff]
        %v2352 = vld [vmem:[%s2337 + $0x70] sm:$0xff]
        %v2353 = vld [vmem:[%s2337 + $0x78] sm:$0xff]
        %v2354 = vld [vmem:[%s2337 + $0x80] sm:$0xff]
        %v2355 = vld [vmem:[%s2337 + $0x88] sm:$0xff]
        %v2356 = vld [vmem:[%s2337 + $0x90] sm:$0xff]
        %v2357 = vld [vmem:[%s2337 + $0x98] sm:$0xff]
        %v2358 = vld [vmem:[%s2337 + $0xa0] sm:$0xff]
        %v2359 = vld [vmem:[%s2337 + $0xa8] sm:$0xff]
        %v2360 = vld [vmem:[%s2337 + $0xb0] sm:$0xff]
        %v2361 = vld [vmem:[%s2337 + $0xb8] sm:$0xff]
        %v2362 = vld [vmem:[%s2337 + $0xc0] sm:$0xff]
        %v2363 = vld [vmem:[%s2337 + $0xc8] sm:$0xff]
        %v2364 = vld [vmem:[%s2337 + $0xd0] sm:$0xff]
        %v2365 = vld [vmem:[%s2337 + $0xd8] sm:$0xff]
        %v2366 = vld [vmem:[%s2337 + $0xe0] sm:$0xff]
        %v2367 = vld [vmem:[%s2337 + $0xe8] sm:$0xff]
        %v2368 = vld [vmem:[%s2337 + $0xf0] sm:$0xff]
        %v2369 = vld [vmem:[%s2337 + $0xf8] sm:$0xff]
        %v2370 = vlaneseq
        %v2371 = vshrl.u32 %v2370, 7
        %v2372 = vsub.s32 3, %v2371
        %v2373 = vrot.slane %v1001, %v2372
        %v2374 = vlaneseq
        %v2375 = vshrl.u32 %v2374, 7
        %v2376 = vsub.s32 7, %v2375
        %v2377 = vrot.slane %v1001, %v2376
        %v2380 = vlaneseq
        %v2381 = vshrl.u32 %v2380, 7
        %v2382 = vsub.s32 3, %v2381
        %v2383 = vrot.slane %v2373, %v2382
        %v2384 = vlaneseq
        %v2385 = vshrl.u32 %v2384, 7
        %v2386 = vsub.s32 3, %v2385
        %v2387 = vrot.slane %v2377, %v2386
        %v2420 = vunpack.c.l.b16 %v2338
        %v2421 = vunpack.c.h.b16 %v2338
        %v2422 = vunpack.c.l.b16 %v2339
        %v2423 = vunpack.c.h.b16 %v2339
        %v2424 = vunpack.c.l.b16 %v2340
        %v2425 = vunpack.c.h.b16 %v2340
        %v2426 = vunpack.c.l.b16 %v2341
        %v2427 = vunpack.c.h.b16 %v2341
        %v2428 = vunpack.c.l.b16 %v2342
        %v2429 = vunpack.c.h.b16 %v2342
        %v2430 = vunpack.c.l.b16 %v2343
        %v2431 = vunpack.c.h.b16 %v2343
        %v2432 = vunpack.c.l.b16 %v2344
        %v2433 = vunpack.c.h.b16 %v2344
        %v2434 = vunpack.c.l.b16 %v2345
        %v2435 = vunpack.c.h.b16 %v2345
        %v2436 = vunpack.c.l.b16 %v2346
        %v2437 = vunpack.c.h.b16 %v2346
        %v2438 = vunpack.c.l.b16 %v2347
        %v2439 = vunpack.c.h.b16 %v2347
        %v2440 = vunpack.c.l.b16 %v2348
        %v2441 = vunpack.c.h.b16 %v2348
        %v2442 = vunpack.c.l.b16 %v2349
        %v2443 = vunpack.c.h.b16 %v2349
        %v2444 = vunpack.c.l.b16 %v2350
        %v2445 = vunpack.c.h.b16 %v2350
        %v2446 = vunpack.c.l.b16 %v2351
        %v2447 = vunpack.c.h.b16 %v2351
        %v2448 = vunpack.c.l.b16 %v2352
        %v2449 = vunpack.c.h.b16 %v2352
        %v2450 = vunpack.c.l.b16 %v2353
        %v2451 = vunpack.c.h.b16 %v2353
        %v2452 = vunpack.c.l.b16 %v2354
        %v2453 = vunpack.c.h.b16 %v2354
        %v2454 = vunpack.c.l.b16 %v2355
        %v2455 = vunpack.c.h.b16 %v2355
        %v2456 = vunpack.c.l.b16 %v2356
        %v2457 = vunpack.c.h.b16 %v2356
        %v2458 = vunpack.c.l.b16 %v2357
        %v2459 = vunpack.c.h.b16 %v2357
        %v2460 = vunpack.c.l.b16 %v2358
        %v2461 = vunpack.c.h.b16 %v2358
        %v2462 = vunpack.c.l.b16 %v2359
        %v2463 = vunpack.c.h.b16 %v2359
        %v2464 = vunpack.c.l.b16 %v2360
        %v2465 = vunpack.c.h.b16 %v2360
        %v2466 = vunpack.c.l.b16 %v2361
        %v2467 = vunpack.c.h.b16 %v2361
        %v2468 = vunpack.c.l.b16 %v2362
        %v2469 = vunpack.c.h.b16 %v2362
        %v2470 = vunpack.c.l.b16 %v2363
        %v2471 = vunpack.c.h.b16 %v2363
        %v2472 = vunpack.c.l.b16 %v2364
        %v2473 = vunpack.c.h.b16 %v2364
        %v2474 = vunpack.c.l.b16 %v2365
        %v2475 = vunpack.c.h.b16 %v2365
        %v2476 = vunpack.c.l.b16 %v2366
        %v2477 = vunpack.c.h.b16 %v2366
        %v2478 = vunpack.c.l.b16 %v2367
        %v2479 = vunpack.c.h.b16 %v2367
        %v2480 = vunpack.c.l.b16 %v2368
        %v2481 = vunpack.c.h.b16 %v2368
        %v2482 = vunpack.c.l.b16 %v2369
        %v2483 = vunpack.c.h.b16 %v2369
        %v2484 = vpack.c.b16 %v2422, %v2420
        %v2485 = vpack.c.b16 %v2423, %v2421
        %v2486 = vpack.c.b16 %v2426, %v2424
        %v2487 = vpack.c.b16 %v2427, %v2425
        %v2488 = vpack.c.b16 %v2430, %v2428
        %v2489 = vpack.c.b16 %v2431, %v2429
        %v2490 = vpack.c.b16 %v2434, %v2432
        %v2491 = vpack.c.b16 %v2435, %v2433
        %v2492 = vpack.c.b16 %v2438, %v2436
        %v2493 = vpack.c.b16 %v2439, %v2437
        %v2494 = vpack.c.b16 %v2442, %v2440
        %v2495 = vpack.c.b16 %v2443, %v2441
        %v2496 = vpack.c.b16 %v2446, %v2444
        %v2497 = vpack.c.b16 %v2447, %v2445
        %v2498 = vpack.c.b16 %v2450, %v2448
        %v2499 = vpack.c.b16 %v2451, %v2449
        %v2500 = vpack.c.b16 %v2454, %v2452
        %v2501 = vpack.c.b16 %v2455, %v2453
        %v2502 = vpack.c.b16 %v2458, %v2456
        %v2503 = vpack.c.b16 %v2459, %v2457
        %v2504 = vpack.c.b16 %v2462, %v2460
        %v2505 = vpack.c.b16 %v2463, %v2461
        %v2506 = vpack.c.b16 %v2466, %v2464
        %v2507 = vpack.c.b16 %v2467, %v2465
        %v2508 = vpack.c.b16 %v2470, %v2468
        %v2509 = vpack.c.b16 %v2471, %v2469
        %v2510 = vpack.c.b16 %v2474, %v2472
        %v2511 = vpack.c.b16 %v2475, %v2473
        %v2512 = vpack.c.b16 %v2478, %v2476
        %v2513 = vpack.c.b16 %v2479, %v2477
        %v2514 = vpack.c.b16 %v2482, %v2480
        %v2515 = vpack.c.b16 %v2483, %v2481
        %2548 = vmatprep.subr.bf16.mxu0 %v2499
        %2549 = vmatpush1.bf16.msra.mxu0 %v2498
        %2550 = vmatprep.subr.bf16.mxu0 %v2497
        %2551 = vmatpush1.bf16.msra.mxu0 %v2496
        %2552 = vmatprep.subr.bf16.mxu0 %v2495
        %2553 = vmatpush1.bf16.msra.mxu0 %v2494
        %2554 = vmatprep.subr.bf16.mxu0 %v2493
        %2555 = vmatpush1.bf16.msra.mxu0 %v2492
        %2556 = vmatprep.subr.bf16.mxu0 %v2491
        %2557 = vmatpush1.bf16.msra.mxu0 %v2490
        %2558 = vmatprep.subr.bf16.mxu0 %v2489
        %2559 = vmatpush1.bf16.msra.mxu0 %v2488
        %2560 = vmatprep.subr.bf16.mxu0 %v2487
        %2561 = vmatpush1.bf16.msra.mxu0 %v2486
        %2562 = vmatprep.subr.bf16.mxu0 %v2485
        %2563 = vmatpush1.bf16.msra.mxu0 %v2484
        %2564 = vmatprep.subr.bf16.mxu0 %v2515
        %2565 = vmatpush2.bf16.msra.mxu0 %v2514
        %2566 = vmatprep.subr.bf16.mxu0 %v2513
        %2567 = vmatpush2.bf16.msra.mxu0 %v2512
        %2568 = vmatprep.subr.bf16.mxu0 %v2511
        %2569 = vmatpush2.bf16.msra.mxu0 %v2510
        %2570 = vmatprep.subr.bf16.mxu0 %v2509
        %2571 = vmatpush2.bf16.msra.mxu0 %v2508
        %2572 = vmatprep.subr.bf16.mxu0 %v2507
        %2573 = vmatpush2.bf16.msra.mxu0 %v2506
        %2574 = vmatprep.subr.bf16.mxu0 %v2505
        %2575 = vmatpush2.bf16.msra.mxu0 %v2504
        %2576 = vmatprep.subr.bf16.mxu0 %v2503
        %2577 = vmatpush2.bf16.msra.mxu0 %v2502
        %2578 = vmatprep.subr.bf16.mxu0 %v2501
        %2579 = vmatpush2.bf16.msra.mxu0 %v2500
        %2580 = vmatprep.mubr.bf16.mxu0 %v2336
        %2581 = vmatmul.mubr.bf16.gmra.mxu0 %v2114
        %v2582 = vpop.f32.mrf.mxu0
        %v2583 = vadd.f32 %v2383, %v2582
        %v2584 = vpop.f32.mrf.mxu0
        %v2585 = vadd.f32 %v2387, %v2584
        %v2586 = vpop.f32.mrf.mxu0
        %v2587 = vadd.f32 %v2383, %v2586
        %v2588 = vpop.f32.mrf.mxu0
        %v2589 = vadd.f32 %v2387, %v2588
        %2590 = vdwg.mxu0
        %v2591 = vadd.f32 %v982, %v2583
        %v2592 = vadd.f32 %v983, %v2585
        %v2593 = vadd.f32 %v984, %v2587
        %v2594 = vadd.f32 %v985, %v2589
        %v2595 = vadd.f32 %v2591, %v2592
        %2596 = vadd.xlane.f32.xlu0 %v2595
        %v2597 = vpop.xlane.xlu0 %2596
        %v2598 = vadd.f32 %v2593, %v2594
        %2599 = vadd.xlane.f32.xlu0 %v2598
        %v2600 = vpop.xlane.xlu0 %2599
        %v2601 = vmul.f32 %v2597, %v1011
        %v2602 = vmul.f32 %v2600, %v1011
        %v2603 = vsub.f32 %v2591, %v2601
        %v2604 = vsub.f32 %v2592, %v2601
        %v2605 = vsub.f32 %v2593, %v2602
        %v2606 = vsub.f32 %v2594, %v2602
        %v2607 = vmul.f32 %v2603, %v2603
        %v2608 = vmul.f32 %v2604, %v2604
        %v2609 = vmul.f32 %v2605, %v2605
        %v2610 = vmul.f32 %v2606, %v2606
        %v2611 = vadd.f32 %v2607, %v2608
        %2612 = vadd.xlane.f32.xlu0 %v2611
        %v2613 = vpop.xlane.xlu0 %2612
        %v2614 = vadd.f32 %v2609, %v2610
        %2615 = vadd.xlane.f32.xlu0 %v2614
        %v2616 = vpop.xlane.xlu0 %2615
        %v2617 = vmul.f32 %v2613, %v1011
        %v2618 = vmul.f32 %v2616, %v1011
        %v2619 = vadd.f32 %v2617, 1e-12
        %v2620 = vadd.f32 %v2618, 1e-12
        %v2621 = vrsqrt.pop %v2619
        %v2622 = vrsqrt.pop %v2620
        %v2623 = vmul.f32 %v2603, %v2621
        %v2624 = vmul.f32 %v2604, %v2621
        %v2625 = vmul.f32 %v2605, %v2622
        %v2626 = vmul.f32 %v2606, %v2622
        %v2628 = vlaneseq
        %v2629 = vshrl.u32 %v2628, 7
        %v2630 = vsub.s32 0, %v2629
        %v2631 = vrot.slane %v999, %v2630
        %v2632 = vlaneseq
        %v2633 = vshrl.u32 %v2632, 7
        %v2634 = vsub.s32 2, %v2633
        %v2635 = vrot.slane %v999, %v2634
        %v2638 = vlaneseq
        %v2639 = vshrl.u32 %v2638, 7
        %v2640 = vsub.s32 0, %v2639
        %v2641 = vrot.slane %v2631, %v2640
        %v2642 = vlaneseq
        %v2643 = vshrl.u32 %v2642, 7
        %v2644 = vsub.s32 0, %v2643
        %v2645 = vrot.slane %v2635, %v2644
        %v2646 = vmul.f32 %v2623, %v2641
        %v2647 = vmul.f32 %v2624, %v2645
        %v2648 = vmul.f32 %v2625, %v2641
        %v2649 = vmul.f32 %v2626, %v2645
        %v2650 = vlaneseq
        %v2651 = vshrl.u32 %v2650, 7
        %v2652 = vsub.s32 1, %v2651
        %v2653 = vrot.slane %v999, %v2652
        %v2654 = vlaneseq
        %v2655 = vshrl.u32 %v2654, 7
        %v2656 = vsub.s32 3, %v2655
        %v2657 = vrot.slane %v999, %v2656
        %v2660 = vlaneseq
        %v2661 = vshrl.u32 %v2660, 7
        %v2662 = vsub.s32 1, %v2661
        %v2663 = vrot.slane %v2653, %v2662
        %v2664 = vlaneseq
        %v2665 = vshrl.u32 %v2664, 7
        %v2666 = vsub.s32 1, %v2665
        %v2667 = vrot.slane %v2657, %v2666
        %v2668 = vadd.f32 %v2646, %v2663
        %v2669 = vadd.f32 %v2647, %v2667
        %v2670 = vadd.f32 %v2648, %v2663
        %v2671 = vadd.f32 %v2649, %v2667
        %v2672 = vpack.c.bf16 %v2668, %v2668
        %v2673 = vpack.c.bf16 %v2669, %v2669
        %v2674 = vpack.c.bf16 %v2670, %v2670
        %v2675 = vpack.c.bf16 %v2671, %v2671
        %v2680 = vunpack.c.l.b16 %v2672
        %v2681 = vunpack.c.l.b16 %v2673
        %v2682 = vunpack.c.l.b16 %v2674
        %v2683 = vunpack.c.l.b16 %v2675
        %v2684 = vld [vmem:[%s841] sm:$0xff]
        %v2685 = vld [vmem:[%s841 + $0x8] sm:$0xff]
        %v2686 = vld [vmem:[%s841 + $0x10] sm:$0xff]
        %v2687 = vld [vmem:[%s841 + $0x18] sm:$0xff]
        %v2688 = vld [vmem:[%s841 + $0x20] sm:$0xff]
        %v2689 = vld [vmem:[%s841 + $0x28] sm:$0xff]
        %v2690 = vld [vmem:[%s841 + $0x30] sm:$0xff]
        %v2691 = vld [vmem:[%s841 + $0x38] sm:$0xff]
        %v2692 = vld [vmem:[%s841 + $0x40] sm:$0xff]
        %v2693 = vld [vmem:[%s841 + $0x48] sm:$0xff]
        %v2694 = vld [vmem:[%s841 + $0x50] sm:$0xff]
        %v2695 = vld [vmem:[%s841 + $0x58] sm:$0xff]
        %v2696 = vld [vmem:[%s841 + $0x60] sm:$0xff]
        %v2697 = vld [vmem:[%s841 + $0x68] sm:$0xff]
        %v2698 = vld [vmem:[%s841 + $0x70] sm:$0xff]
        %v2699 = vld [vmem:[%s841 + $0x78] sm:$0xff]
        %v2700 = vld [vmem:[%s841 + $0x80] sm:$0xff]
        %v2701 = vld [vmem:[%s841 + $0x88] sm:$0xff]
        %v2702 = vld [vmem:[%s841 + $0x90] sm:$0xff]
        %v2703 = vld [vmem:[%s841 + $0x98] sm:$0xff]
        %v2704 = vld [vmem:[%s841 + $0xa0] sm:$0xff]
        %v2705 = vld [vmem:[%s841 + $0xa8] sm:$0xff]
        %v2706 = vld [vmem:[%s841 + $0xb0] sm:$0xff]
        %v2707 = vld [vmem:[%s841 + $0xb8] sm:$0xff]
        %v2708 = vld [vmem:[%s841 + $0xc0] sm:$0xff]
        %v2709 = vld [vmem:[%s841 + $0xc8] sm:$0xff]
        %v2710 = vld [vmem:[%s841 + $0xd0] sm:$0xff]
        %v2711 = vld [vmem:[%s841 + $0xd8] sm:$0xff]
        %v2712 = vld [vmem:[%s841 + $0xe0] sm:$0xff]
        %v2713 = vld [vmem:[%s841 + $0xe8] sm:$0xff]
        %v2714 = vld [vmem:[%s841 + $0xf0] sm:$0xff]
        %v2715 = vld [vmem:[%s841 + $0xf8] sm:$0xff]
        %v2717 = vlaneseq
        %v2718 = vshrl.u32 %v2717, 7
        %v2719 = vsub.s32 0, %v2718
        %v2720 = vrot.slane %v1002, %v2719
        %v2721 = vlaneseq
        %v2722 = vshrl.u32 %v2721, 7
        %v2723 = vsub.s32 4, %v2722
        %v2724 = vrot.slane %v1002, %v2723
        %v2727 = vlaneseq
        %v2728 = vshrl.u32 %v2727, 7
        %v2729 = vsub.s32 0, %v2728
        %v2730 = vrot.slane %v2720, %v2729
        %v2731 = vlaneseq
        %v2732 = vshrl.u32 %v2731, 7
        %v2733 = vsub.s32 0, %v2732
        %v2734 = vrot.slane %v2724, %v2733
        %v2735 = vpack.c.b16 %v2682, %v2680
        %v2736 = vpack.c.b16 %v2683, %v2681
        %v2771 = vunpack.c.l.b16 %v2684
        %v2772 = vunpack.c.h.b16 %v2684
        %v2773 = vunpack.c.l.b16 %v2685
        %v2774 = vunpack.c.h.b16 %v2685
        %v2775 = vunpack.c.l.b16 %v2686
        %v2776 = vunpack.c.h.b16 %v2686
        %v2777 = vunpack.c.l.b16 %v2687
        %v2778 = vunpack.c.h.b16 %v2687
        %v2779 = vunpack.c.l.b16 %v2688
        %v2780 = vunpack.c.h.b16 %v2688
        %v2781 = vunpack.c.l.b16 %v2689
        %v2782 = vunpack.c.h.b16 %v2689
        %v2783 = vunpack.c.l.b16 %v2690
        %v2784 = vunpack.c.h.b16 %v2690
        %v2785 = vunpack.c.l.b16 %v2691
        %v2786 = vunpack.c.h.b16 %v2691
        %v2787 = vunpack.c.l.b16 %v2692
        %v2788 = vunpack.c.h.b16 %v2692
        %v2789 = vunpack.c.l.b16 %v2693
        %v2790 = vunpack.c.h.b16 %v2693
        %v2791 = vunpack.c.l.b16 %v2694
        %v2792 = vunpack.c.h.b16 %v2694
        %v2793 = vunpack.c.l.b16 %v2695
        %v2794 = vunpack.c.h.b16 %v2695
        %v2795 = vunpack.c.l.b16 %v2696
        %v2796 = vunpack.c.h.b16 %v2696
        %v2797 = vunpack.c.l.b16 %v2697
        %v2798 = vunpack.c.h.b16 %v2697
        %v2799 = vunpack.c.l.b16 %v2698
        %v2800 = vunpack.c.h.b16 %v2698
        %v2801 = vunpack.c.l.b16 %v2699
        %v2802 = vunpack.c.h.b16 %v2699
        %v2803 = vunpack.c.l.b16 %v2700
        %v2804 = vunpack.c.h.b16 %v2700
        %v2805 = vunpack.c.l.b16 %v2701
        %v2806 = vunpack.c.h.b16 %v2701
        %v2807 = vunpack.c.l.b16 %v2702
        %v2808 = vunpack.c.h.b16 %v2702
        %v2809 = vunpack.c.l.b16 %v2703
        %v2810 = vunpack.c.h.b16 %v2703
        %v2811 = vunpack.c.l.b16 %v2704
        %v2812 = vunpack.c.h.b16 %v2704
        %v2813 = vunpack.c.l.b16 %v2705
        %v2814 = vunpack.c.h.b16 %v2705
        %v2815 = vunpack.c.l.b16 %v2706
        %v2816 = vunpack.c.h.b16 %v2706
        %v2817 = vunpack.c.l.b16 %v2707
        %v2818 = vunpack.c.h.b16 %v2707
        %v2819 = vunpack.c.l.b16 %v2708
        %v2820 = vunpack.c.h.b16 %v2708
        %v2821 = vunpack.c.l.b16 %v2709
        %v2822 = vunpack.c.h.b16 %v2709
        %v2823 = vunpack.c.l.b16 %v2710
        %v2824 = vunpack.c.h.b16 %v2710
        %v2825 = vunpack.c.l.b16 %v2711
        %v2826 = vunpack.c.h.b16 %v2711
        %v2827 = vunpack.c.l.b16 %v2712
        %v2828 = vunpack.c.h.b16 %v2712
        %v2829 = vunpack.c.l.b16 %v2713
        %v2830 = vunpack.c.h.b16 %v2713
        %v2831 = vunpack.c.l.b16 %v2714
        %v2832 = vunpack.c.h.b16 %v2714
        %v2833 = vunpack.c.l.b16 %v2715
        %v2834 = vunpack.c.h.b16 %v2715
        %v2835 = vpack.c.b16 %v2773, %v2771
        %v2836 = vpack.c.b16 %v2774, %v2772
        %v2837 = vpack.c.b16 %v2777, %v2775
        %v2838 = vpack.c.b16 %v2778, %v2776
        %v2839 = vpack.c.b16 %v2781, %v2779
        %v2840 = vpack.c.b16 %v2782, %v2780
        %v2841 = vpack.c.b16 %v2785, %v2783
        %v2842 = vpack.c.b16 %v2786, %v2784
        %v2843 = vpack.c.b16 %v2789, %v2787
        %v2844 = vpack.c.b16 %v2790, %v2788
        %v2845 = vpack.c.b16 %v2793, %v2791
        %v2846 = vpack.c.b16 %v2794, %v2792
        %v2847 = vpack.c.b16 %v2797, %v2795
        %v2848 = vpack.c.b16 %v2798, %v2796
        %v2849 = vpack.c.b16 %v2801, %v2799
        %v2850 = vpack.c.b16 %v2802, %v2800
        %v2851 = vpack.c.b16 %v2805, %v2803
        %v2852 = vpack.c.b16 %v2806, %v2804
        %v2853 = vpack.c.b16 %v2809, %v2807
        %v2854 = vpack.c.b16 %v2810, %v2808
        %v2855 = vpack.c.b16 %v2813, %v2811
        %v2856 = vpack.c.b16 %v2814, %v2812
        %v2857 = vpack.c.b16 %v2817, %v2815
        %v2858 = vpack.c.b16 %v2818, %v2816
        %v2859 = vpack.c.b16 %v2821, %v2819
        %v2860 = vpack.c.b16 %v2822, %v2820
        %v2861 = vpack.c.b16 %v2825, %v2823
        %v2862 = vpack.c.b16 %v2826, %v2824
        %v2863 = vpack.c.b16 %v2829, %v2827
        %v2864 = vpack.c.b16 %v2830, %v2828
        %v2865 = vpack.c.b16 %v2833, %v2831
        %v2866 = vpack.c.b16 %v2834, %v2832
        %2899 = vmatprep.subr.bf16.mxu0 %v2850
        %2900 = vmatpush1.bf16.msra.mxu0 %v2849
        %2901 = vmatprep.subr.bf16.mxu0 %v2848
        %2902 = vmatpush1.bf16.msra.mxu0 %v2847
        %2903 = vmatprep.subr.bf16.mxu0 %v2846
        %2904 = vmatpush1.bf16.msra.mxu0 %v2845
        %2905 = vmatprep.subr.bf16.mxu0 %v2844
        %2906 = vmatpush1.bf16.msra.mxu0 %v2843
        %2907 = vmatprep.subr.bf16.mxu0 %v2842
        %2908 = vmatpush1.bf16.msra.mxu0 %v2841
        %2909 = vmatprep.subr.bf16.mxu0 %v2840
        %2910 = vmatpush1.bf16.msra.mxu0 %v2839
        %2911 = vmatprep.subr.bf16.mxu0 %v2838
        %2912 = vmatpush1.bf16.msra.mxu0 %v2837
        %2913 = vmatprep.subr.bf16.mxu0 %v2836
        %2914 = vmatpush1.bf16.msra.mxu0 %v2835
        %2915 = vmatprep.subr.bf16.mxu0 %v2866
        %2916 = vmatpush2.bf16.msra.mxu0 %v2865
        %2917 = vmatprep.subr.bf16.mxu0 %v2864
        %2918 = vmatpush2.bf16.msra.mxu0 %v2863
        %2919 = vmatprep.subr.bf16.mxu0 %v2862
        %2920 = vmatpush2.bf16.msra.mxu0 %v2861
        %2921 = vmatprep.subr.bf16.mxu0 %v2860
        %2922 = vmatpush2.bf16.msra.mxu0 %v2859
        %2923 = vmatprep.subr.bf16.mxu0 %v2858
        %2924 = vmatpush2.bf16.msra.mxu0 %v2857
        %2925 = vmatprep.subr.bf16.mxu0 %v2856
        %2926 = vmatpush2.bf16.msra.mxu0 %v2855
        %2927 = vmatprep.subr.bf16.mxu0 %v2854
        %2928 = vmatpush2.bf16.msra.mxu0 %v2853
        %2929 = vmatprep.subr.bf16.mxu0 %v2852
        %2930 = vmatpush2.bf16.msra.mxu0 %v2851
        %2931 = vmatprep.mubr.bf16.mxu0 %v2736
        %2932 = vmatmul.mubr.bf16.gmra.mxu0 %v2735
        %v2933 = vpop.f32.mrf.mxu0
        %v2934 = vadd.f32 %v2730, %v2933
        %v2935 = vpop.f32.mrf.mxu0
        %v2936 = vadd.f32 %v2734, %v2935
        %v2937 = vpop.f32.mrf.mxu0
        %v2938 = vadd.f32 %v2730, %v2937
        %v2939 = vpop.f32.mrf.mxu0
        %v2940 = vadd.f32 %v2734, %v2939
        %2941 = vdwg.mxu0
        %v2942 = vpack.c.bf16 %v2938, %v2934
        %v2943 = vpack.c.bf16 %v2940, %v2936
        %s2944 = scalar_lea.vmem %s841, 256 [#allocation17]
        %v2945 = vld [vmem:[%s2944] sm:$0xff]
        %v2946 = vld [vmem:[%s2944 + $0x8] sm:$0xff]
        %v2947 = vld [vmem:[%s2944 + $0x10] sm:$0xff]
        %v2948 = vld [vmem:[%s2944 + $0x18] sm:$0xff]
        %v2949 = vld [vmem:[%s2944 + $0x20] sm:$0xff]
        %v2950 = vld [vmem:[%s2944 + $0x28] sm:$0xff]
        %v2951 = vld [vmem:[%s2944 + $0x30] sm:$0xff]
        %v2952 = vld [vmem:[%s2944 + $0x38] sm:$0xff]
        %v2953 = vld [vmem:[%s2944 + $0x40] sm:$0xff]
        %v2954 = vld [vmem:[%s2944 + $0x48] sm:$0xff]
        %v2955 = vld [vmem:[%s2944 + $0x50] sm:$0xff]
        %v2956 = vld [vmem:[%s2944 + $0x58] sm:$0xff]
        %v2957 = vld [vmem:[%s2944 + $0x60] sm:$0xff]
        %v2958 = vld [vmem:[%s2944 + $0x68] sm:$0xff]
        %v2959 = vld [vmem:[%s2944 + $0x70] sm:$0xff]
        %v2960 = vld [vmem:[%s2944 + $0x78] sm:$0xff]
        %v2961 = vld [vmem:[%s2944 + $0x80] sm:$0xff]
        %v2962 = vld [vmem:[%s2944 + $0x88] sm:$0xff]
        %v2963 = vld [vmem:[%s2944 + $0x90] sm:$0xff]
        %v2964 = vld [vmem:[%s2944 + $0x98] sm:$0xff]
        %v2965 = vld [vmem:[%s2944 + $0xa0] sm:$0xff]
        %v2966 = vld [vmem:[%s2944 + $0xa8] sm:$0xff]
        %v2967 = vld [vmem:[%s2944 + $0xb0] sm:$0xff]
        %v2968 = vld [vmem:[%s2944 + $0xb8] sm:$0xff]
        %v2969 = vld [vmem:[%s2944 + $0xc0] sm:$0xff]
        %v2970 = vld [vmem:[%s2944 + $0xc8] sm:$0xff]
        %v2971 = vld [vmem:[%s2944 + $0xd0] sm:$0xff]
        %v2972 = vld [vmem:[%s2944 + $0xd8] sm:$0xff]
        %v2973 = vld [vmem:[%s2944 + $0xe0] sm:$0xff]
        %v2974 = vld [vmem:[%s2944 + $0xe8] sm:$0xff]
        %v2975 = vld [vmem:[%s2944 + $0xf0] sm:$0xff]
        %v2976 = vld [vmem:[%s2944 + $0xf8] sm:$0xff]
        %v2977 = vlaneseq
        %v2978 = vshrl.u32 %v2977, 7
        %v2979 = vsub.s32 1, %v2978
        %v2980 = vrot.slane %v1002, %v2979
        %v2981 = vlaneseq
        %v2982 = vshrl.u32 %v2981, 7
        %v2983 = vsub.s32 5, %v2982
        %v2984 = vrot.slane %v1002, %v2983
        %v2987 = vlaneseq
        %v2988 = vshrl.u32 %v2987, 7
        %v2989 = vsub.s32 1, %v2988
        %v2990 = vrot.slane %v2980, %v2989
        %v2991 = vlaneseq
        %v2992 = vshrl.u32 %v2991, 7
        %v2993 = vsub.s32 1, %v2992
        %v2994 = vrot.slane %v2984, %v2993
        %v2999 = vunpack.c.l.b16 %v986
        %v3000 = vunpack.c.h.b16 %v986
        %v3001 = vunpack.c.l.b16 %v987
        %v3002 = vunpack.c.h.b16 %v987
        %v3003 = vunpack.c.l.b16 %v988
        %v3004 = vunpack.c.h.b16 %v988
        %v3005 = vunpack.c.l.b16 %v989
        %v3006 = vunpack.c.h.b16 %v989
        %v3007 = vpack.c.b16 %v3001, %v2999
        %v3008 = vpack.c.b16 %v3002, %v3000
        %v3009 = vpack.c.b16 %v3005, %v3003
        %v3010 = vpack.c.b16 %v3006, %v3004
        %v3047 = vunpack.c.l.b16 %v2945
        %v3048 = vunpack.c.h.b16 %v2945
        %v3049 = vunpack.c.l.b16 %v2946
        %v3050 = vunpack.c.h.b16 %v2946
        %v3051 = vunpack.c.l.b16 %v2947
        %v3052 = vunpack.c.h.b16 %v2947
        %v3053 = vunpack.c.l.b16 %v2948
        %v3054 = vunpack.c.h.b16 %v2948
        %v3055 = vunpack.c.l.b16 %v2949
        %v3056 = vunpack.c.h.b16 %v2949
        %v3057 = vunpack.c.l.b16 %v2950
        %v3058 = vunpack.c.h.b16 %v2950
        %v3059 = vunpack.c.l.b16 %v2951
        %v3060 = vunpack.c.h.b16 %v2951
        %v3061 = vunpack.c.l.b16 %v2952
        %v3062 = vunpack.c.h.b16 %v2952
        %v3063 = vunpack.c.l.b16 %v2953
        %v3064 = vunpack.c.h.b16 %v2953
        %v3065 = vunpack.c.l.b16 %v2954
        %v3066 = vunpack.c.h.b16 %v2954
        %v3067 = vunpack.c.l.b16 %v2955
        %v3068 = vunpack.c.h.b16 %v2955
        %v3069 = vunpack.c.l.b16 %v2956
        %v3070 = vunpack.c.h.b16 %v2956
        %v3071 = vunpack.c.l.b16 %v2957
        %v3072 = vunpack.c.h.b16 %v2957
        %v3073 = vunpack.c.l.b16 %v2958
        %v3074 = vunpack.c.h.b16 %v2958
        %v3075 = vunpack.c.l.b16 %v2959
        %v3076 = vunpack.c.h.b16 %v2959
        %v3077 = vunpack.c.l.b16 %v2960
        %v3078 = vunpack.c.h.b16 %v2960
        %v3079 = vunpack.c.l.b16 %v2961
        %v3080 = vunpack.c.h.b16 %v2961
        %v3081 = vunpack.c.l.b16 %v2962
        %v3082 = vunpack.c.h.b16 %v2962
        %v3083 = vunpack.c.l.b16 %v2963
        %v3084 = vunpack.c.h.b16 %v2963
        %v3085 = vunpack.c.l.b16 %v2964
        %v3086 = vunpack.c.h.b16 %v2964
        %v3087 = vunpack.c.l.b16 %v2965
        %v3088 = vunpack.c.h.b16 %v2965
        %v3089 = vunpack.c.l.b16 %v2966
        %v3090 = vunpack.c.h.b16 %v2966
        %v3091 = vunpack.c.l.b16 %v2967
        %v3092 = vunpack.c.h.b16 %v2967
        %v3093 = vunpack.c.l.b16 %v2968
        %v3094 = vunpack.c.h.b16 %v2968
        %v3095 = vunpack.c.l.b16 %v2969
        %v3096 = vunpack.c.h.b16 %v2969
        %v3097 = vunpack.c.l.b16 %v2970
        %v3098 = vunpack.c.h.b16 %v2970
        %v3099 = vunpack.c.l.b16 %v2971
        %v3100 = vunpack.c.h.b16 %v2971
        %v3101 = vunpack.c.l.b16 %v2972
        %v3102 = vunpack.c.h.b16 %v2972
        %v3103 = vunpack.c.l.b16 %v2973
        %v3104 = vunpack.c.h.b16 %v2973
        %v3105 = vunpack.c.l.b16 %v2974
        %v3106 = vunpack.c.h.b16 %v2974
        %v3107 = vunpack.c.l.b16 %v2975
        %v3108 = vunpack.c.h.b16 %v2975
        %v3109 = vunpack.c.l.b16 %v2976
        %v3110 = vunpack.c.h.b16 %v2976
        %v3111 = vpack.c.b16 %v3049, %v3047
        %v3112 = vpack.c.b16 %v3050, %v3048
        %v3113 = vpack.c.b16 %v3053, %v3051
        %v3114 = vpack.c.b16 %v3054, %v3052
        %v3115 = vpack.c.b16 %v3057, %v3055
        %v3116 = vpack.c.b16 %v3058, %v3056
        %v3117 = vpack.c.b16 %v3061, %v3059
        %v3118 = vpack.c.b16 %v3062, %v3060
        %v3119 = vpack.c.b16 %v3065, %v3063
        %v3120 = vpack.c.b16 %v3066, %v3064
        %v3121 = vpack.c.b16 %v3069, %v3067
        %v3122 = vpack.c.b16 %v3070, %v3068
        %v3123 = vpack.c.b16 %v3073, %v3071
        %v3124 = vpack.c.b16 %v3074, %v3072
        %v3125 = vpack.c.b16 %v3077, %v3075
        %v3126 = vpack.c.b16 %v3078, %v3076
        %v3127 = vpack.c.b16 %v3081, %v3079
        %v3128 = vpack.c.b16 %v3082, %v3080
        %v3129 = vpack.c.b16 %v3085, %v3083
        %v3130 = vpack.c.b16 %v3086, %v3084
        %v3131 = vpack.c.b16 %v3089, %v3087
        %v3132 = vpack.c.b16 %v3090, %v3088
        %v3133 = vpack.c.b16 %v3093, %v3091
        %v3134 = vpack.c.b16 %v3094, %v3092
        %v3135 = vpack.c.b16 %v3097, %v3095
        %v3136 = vpack.c.b16 %v3098, %v3096
        %v3137 = vpack.c.b16 %v3101, %v3099
        %v3138 = vpack.c.b16 %v3102, %v3100
        %v3139 = vpack.c.b16 %v3105, %v3103
        %v3140 = vpack.c.b16 %v3106, %v3104
        %v3141 = vpack.c.b16 %v3109, %v3107
        %v3142 = vpack.c.b16 %v3110, %v3108
        %3175 = vmatprep.subr.bf16.mxu0 %v3126
        %3176 = vmatpush1.bf16.msra.mxu0 %v3125
        %3177 = vmatprep.subr.bf16.mxu0 %v3124
        %3178 = vmatpush1.bf16.msra.mxu0 %v3123
        %3179 = vmatprep.subr.bf16.mxu0 %v3122
        %3180 = vmatpush1.bf16.msra.mxu0 %v3121
        %3181 = vmatprep.subr.bf16.mxu0 %v3120
        %3182 = vmatpush1.bf16.msra.mxu0 %v3119
        %3183 = vmatprep.subr.bf16.mxu0 %v3118
        %3184 = vmatpush1.bf16.msra.mxu0 %v3117
        %3185 = vmatprep.subr.bf16.mxu0 %v3116
        %3186 = vmatpush1.bf16.msra.mxu0 %v3115
        %3187 = vmatprep.subr.bf16.mxu0 %v3114
        %3188 = vmatpush1.bf16.msra.mxu0 %v3113
        %3189 = vmatprep.subr.bf16.mxu0 %v3112
        %3190 = vmatpush1.bf16.msra.mxu0 %v3111
        %3191 = vmatprep.subr.bf16.mxu0 %v3142
        %3192 = vmatpush2.bf16.msra.mxu0 %v3141
        %3193 = vmatprep.subr.bf16.mxu0 %v3140
        %3194 = vmatpush2.bf16.msra.mxu0 %v3139
        %3195 = vmatprep.subr.bf16.mxu0 %v3138
        %3196 = vmatpush2.bf16.msra.mxu0 %v3137
        %3197 = vmatprep.subr.bf16.mxu0 %v3136
        %3198 = vmatpush2.bf16.msra.mxu0 %v3135
        %3199 = vmatprep.subr.bf16.mxu0 %v3134
        %3200 = vmatpush2.bf16.msra.mxu0 %v3133
        %3201 = vmatprep.subr.bf16.mxu0 %v3132
        %3202 = vmatpush2.bf16.msra.mxu0 %v3131
        %3203 = vmatprep.subr.bf16.mxu0 %v3130
        %3204 = vmatpush2.bf16.msra.mxu0 %v3129
        %3205 = vmatprep.subr.bf16.mxu0 %v3128
        %3206 = vmatpush2.bf16.msra.mxu0 %v3127
        %3207 = vmatprep.mubr.bf16.mxu0 %v3008
        %3208 = vmatmul.mubr.bf16.gmra.mxu0 %v3007
        %v3209 = vpop.f32.mrf.mxu0
        %v3210 = vadd.f32 %v2990, %v3209
        %v3211 = vpop.f32.mrf.mxu0
        %v3212 = vadd.f32 %v2994, %v3211
        %v3213 = vpop.f32.mrf.mxu0
        %v3214 = vadd.f32 %v2990, %v3213
        %v3215 = vpop.f32.mrf.mxu0
        %v3216 = vadd.f32 %v2994, %v3215
        %3217 = vmatprep.mubr.bf16.mxu0 %v3010
        %3218 = vmatmul.mubr.bf16.gmra.mxu0 %v3009
        %v3219 = vpop.f32.mrf.mxu0
        %v3220 = vadd.f32 %v2990, %v3219
        %v3221 = vpop.f32.mrf.mxu0
        %v3222 = vadd.f32 %v2994, %v3221
        %v3223 = vpop.f32.mrf.mxu0
        %v3224 = vadd.f32 %v2990, %v3223
        %v3225 = vpop.f32.mrf.mxu0
        %v3226 = vadd.f32 %v2994, %v3225
        %3227 = vdwg.mxu0
        %v3228 = vpack.c.bf16 %v3214, %v3210
        %v3229 = vpack.c.bf16 %v3216, %v3212
        %v3230 = vpack.c.bf16 %v3224, %v3220
        %v3231 = vpack.c.bf16 %v3226, %v3222
        %s3232 = scalar_lea.vmem %s841, 512 [#allocation17]
        %v3233 = vld [vmem:[%s3232] sm:$0xff]
        %v3234 = vld [vmem:[%s3232 + $0x8] sm:$0xff]
        %v3235 = vld [vmem:[%s3232 + $0x10] sm:$0xff]
        %v3236 = vld [vmem:[%s3232 + $0x18] sm:$0xff]
        %v3237 = vld [vmem:[%s3232 + $0x20] sm:$0xff]
        %v3238 = vld [vmem:[%s3232 + $0x28] sm:$0xff]
        %v3239 = vld [vmem:[%s3232 + $0x30] sm:$0xff]
        %v3240 = vld [vmem:[%s3232 + $0x38] sm:$0xff]
        %v3241 = vld [vmem:[%s3232 + $0x40] sm:$0xff]
        %v3242 = vld [vmem:[%s3232 + $0x48] sm:$0xff]
        %v3243 = vld [vmem:[%s3232 + $0x50] sm:$0xff]
        %v3244 = vld [vmem:[%s3232 + $0x58] sm:$0xff]
        %v3245 = vld [vmem:[%s3232 + $0x60] sm:$0xff]
        %v3246 = vld [vmem:[%s3232 + $0x68] sm:$0xff]
        %v3247 = vld [vmem:[%s3232 + $0x70] sm:$0xff]
        %v3248 = vld [vmem:[%s3232 + $0x78] sm:$0xff]
        %v3249 = vld [vmem:[%s3232 + $0x80] sm:$0xff]
        %v3250 = vld [vmem:[%s3232 + $0x88] sm:$0xff]
        %v3251 = vld [vmem:[%s3232 + $0x90] sm:$0xff]
        %v3252 = vld [vmem:[%s3232 + $0x98] sm:$0xff]
        %v3253 = vld [vmem:[%s3232 + $0xa0] sm:$0xff]
        %v3254 = vld [vmem:[%s3232 + $0xa8] sm:$0xff]
        %v3255 = vld [vmem:[%s3232 + $0xb0] sm:$0xff]
        %v3256 = vld [vmem:[%s3232 + $0xb8] sm:$0xff]
        %v3257 = vld [vmem:[%s3232 + $0xc0] sm:$0xff]
        %v3258 = vld [vmem:[%s3232 + $0xc8] sm:$0xff]
        %v3259 = vld [vmem:[%s3232 + $0xd0] sm:$0xff]
        %v3260 = vld [vmem:[%s3232 + $0xd8] sm:$0xff]
        %v3261 = vld [vmem:[%s3232 + $0xe0] sm:$0xff]
        %v3262 = vld [vmem:[%s3232 + $0xe8] sm:$0xff]
        %v3263 = vld [vmem:[%s3232 + $0xf0] sm:$0xff]
        %v3264 = vld [vmem:[%s3232 + $0xf8] sm:$0xff]
        %v3265 = vlaneseq
        %v3266 = vshrl.u32 %v3265, 7
        %v3267 = vsub.s32 2, %v3266
        %v3268 = vrot.slane %v1002, %v3267
        %v3269 = vlaneseq
        %v3270 = vshrl.u32 %v3269, 7
        %v3271 = vsub.s32 6, %v3270
        %v3272 = vrot.slane %v1002, %v3271
        %v3275 = vlaneseq
        %v3276 = vshrl.u32 %v3275, 7
        %v3277 = vsub.s32 2, %v3276
        %v3278 = vrot.slane %v3268, %v3277
        %v3279 = vlaneseq
        %v3280 = vshrl.u32 %v3279, 7
        %v3281 = vsub.s32 2, %v3280
        %v3282 = vrot.slane %v3272, %v3281
        %v3315 = vunpack.c.l.b16 %v3233
        %v3316 = vunpack.c.h.b16 %v3233
        %v3317 = vunpack.c.l.b16 %v3234
        %v3318 = vunpack.c.h.b16 %v3234
        %v3319 = vunpack.c.l.b16 %v3235
        %v3320 = vunpack.c.h.b16 %v3235
        %v3321 = vunpack.c.l.b16 %v3236
        %v3322 = vunpack.c.h.b16 %v3236
        %v3323 = vunpack.c.l.b16 %v3237
        %v3324 = vunpack.c.h.b16 %v3237
        %v3325 = vunpack.c.l.b16 %v3238
        %v3326 = vunpack.c.h.b16 %v3238
        %v3327 = vunpack.c.l.b16 %v3239
        %v3328 = vunpack.c.h.b16 %v3239
        %v3329 = vunpack.c.l.b16 %v3240
        %v3330 = vunpack.c.h.b16 %v3240
        %v3331 = vunpack.c.l.b16 %v3241
        %v3332 = vunpack.c.h.b16 %v3241
        %v3333 = vunpack.c.l.b16 %v3242
        %v3334 = vunpack.c.h.b16 %v3242
        %v3335 = vunpack.c.l.b16 %v3243
        %v3336 = vunpack.c.h.b16 %v3243
        %v3337 = vunpack.c.l.b16 %v3244
        %v3338 = vunpack.c.h.b16 %v3244
        %v3339 = vunpack.c.l.b16 %v3245
        %v3340 = vunpack.c.h.b16 %v3245
        %v3341 = vunpack.c.l.b16 %v3246
        %v3342 = vunpack.c.h.b16 %v3246
        %v3343 = vunpack.c.l.b16 %v3247
        %v3344 = vunpack.c.h.b16 %v3247
        %v3345 = vunpack.c.l.b16 %v3248
        %v3346 = vunpack.c.h.b16 %v3248
        %v3347 = vunpack.c.l.b16 %v3249
        %v3348 = vunpack.c.h.b16 %v3249
        %v3349 = vunpack.c.l.b16 %v3250
        %v3350 = vunpack.c.h.b16 %v3250
        %v3351 = vunpack.c.l.b16 %v3251
        %v3352 = vunpack.c.h.b16 %v3251
        %v3353 = vunpack.c.l.b16 %v3252
        %v3354 = vunpack.c.h.b16 %v3252
        %v3355 = vunpack.c.l.b16 %v3253
        %v3356 = vunpack.c.h.b16 %v3253
        %v3357 = vunpack.c.l.b16 %v3254
        %v3358 = vunpack.c.h.b16 %v3254
        %v3359 = vunpack.c.l.b16 %v3255
        %v3360 = vunpack.c.h.b16 %v3255
        %v3361 = vunpack.c.l.b16 %v3256
        %v3362 = vunpack.c.h.b16 %v3256
        %v3363 = vunpack.c.l.b16 %v3257
        %v3364 = vunpack.c.h.b16 %v3257
        %v3365 = vunpack.c.l.b16 %v3258
        %v3366 = vunpack.c.h.b16 %v3258
        %v3367 = vunpack.c.l.b16 %v3259
        %v3368 = vunpack.c.h.b16 %v3259
        %v3369 = vunpack.c.l.b16 %v3260
        %v3370 = vunpack.c.h.b16 %v3260
        %v3371 = vunpack.c.l.b16 %v3261
        %v3372 = vunpack.c.h.b16 %v3261
        %v3373 = vunpack.c.l.b16 %v3262
        %v3374 = vunpack.c.h.b16 %v3262
        %v3375 = vunpack.c.l.b16 %v3263
        %v3376 = vunpack.c.h.b16 %v3263
        %v3377 = vunpack.c.l.b16 %v3264
        %v3378 = vunpack.c.h.b16 %v3264
        %v3379 = vpack.c.b16 %v3317, %v3315
        %v3380 = vpack.c.b16 %v3318, %v3316
        %v3381 = vpack.c.b16 %v3321, %v3319
        %v3382 = vpack.c.b16 %v3322, %v3320
        %v3383 = vpack.c.b16 %v3325, %v3323
        %v3384 = vpack.c.b16 %v3326, %v3324
        %v3385 = vpack.c.b16 %v3329, %v3327
        %v3386 = vpack.c.b16 %v3330, %v3328
        %v3387 = vpack.c.b16 %v3333, %v3331
        %v3388 = vpack.c.b16 %v3334, %v3332
        %v3389 = vpack.c.b16 %v3337, %v3335
        %v3390 = vpack.c.b16 %v3338, %v3336
        %v3391 = vpack.c.b16 %v3341, %v3339
        %v3392 = vpack.c.b16 %v3342, %v3340
        %v3393 = vpack.c.b16 %v3345, %v3343
        %v3394 = vpack.c.b16 %v3346, %v3344
        %v3395 = vpack.c.b16 %v3349, %v3347
        %v3396 = vpack.c.b16 %v3350, %v3348
        %v3397 = vpack.c.b16 %v3353, %v3351
        %v3398 = vpack.c.b16 %v3354, %v3352
        %v3399 = vpack.c.b16 %v3357, %v3355
        %v3400 = vpack.c.b16 %v3358, %v3356
        %v3401 = vpack.c.b16 %v3361, %v3359
        %v3402 = vpack.c.b16 %v3362, %v3360
        %v3403 = vpack.c.b16 %v3365, %v3363
        %v3404 = vpack.c.b16 %v3366, %v3364
        %v3405 = vpack.c.b16 %v3369, %v3367
        %v3406 = vpack.c.b16 %v3370, %v3368
        %v3407 = vpack.c.b16 %v3373, %v3371
        %v3408 = vpack.c.b16 %v3374, %v3372
        %v3409 = vpack.c.b16 %v3377, %v3375
        %v3410 = vpack.c.b16 %v3378, %v3376
        %3443 = vmatprep.subr.bf16.mxu0 %v3394
        %3444 = vmatpush1.bf16.msra.mxu0 %v3393
        %3445 = vmatprep.subr.bf16.mxu0 %v3392
        %3446 = vmatpush1.bf16.msra.mxu0 %v3391
        %3447 = vmatprep.subr.bf16.mxu0 %v3390
        %3448 = vmatpush1.bf16.msra.mxu0 %v3389
        %3449 = vmatprep.subr.bf16.mxu0 %v3388
        %3450 = vmatpush1.bf16.msra.mxu0 %v3387
        %3451 = vmatprep.subr.bf16.mxu0 %v3386
        %3452 = vmatpush1.bf16.msra.mxu0 %v3385
        %3453 = vmatprep.subr.bf16.mxu0 %v3384
        %3454 = vmatpush1.bf16.msra.mxu0 %v3383
        %3455 = vmatprep.subr.bf16.mxu0 %v3382
        %3456 = vmatpush1.bf16.msra.mxu0 %v3381
        %3457 = vmatprep.subr.bf16.mxu0 %v3380
        %3458 = vmatpush1.bf16.msra.mxu0 %v3379
        %3459 = vmatprep.subr.bf16.mxu0 %v3410
        %3460 = vmatpush2.bf16.msra.mxu0 %v3409
        %3461 = vmatprep.subr.bf16.mxu0 %v3408
        %3462 = vmatpush2.bf16.msra.mxu0 %v3407
        %3463 = vmatprep.subr.bf16.mxu0 %v3406
        %3464 = vmatpush2.bf16.msra.mxu0 %v3405
        %3465 = vmatprep.subr.bf16.mxu0 %v3404
        %3466 = vmatpush2.bf16.msra.mxu0 %v3403
        %3467 = vmatprep.subr.bf16.mxu0 %v3402
        %3468 = vmatpush2.bf16.msra.mxu0 %v3401
        %3469 = vmatprep.subr.bf16.mxu0 %v3400
        %3470 = vmatpush2.bf16.msra.mxu0 %v3399
        %3471 = vmatprep.subr.bf16.mxu0 %v3398
        %3472 = vmatpush2.bf16.msra.mxu0 %v3397
        %3473 = vmatprep.subr.bf16.mxu0 %v3396
        %3474 = vmatpush2.bf16.msra.mxu0 %v3395
        %3475 = vmatprep.mubr.bf16.mxu0 %v3008
        %3476 = vmatmul.mubr.bf16.gmra.mxu0 %v3007
        %v3477 = vpop.f32.mrf.mxu0
        %v3478 = vadd.f32 %v3278, %v3477
        %v3479 = vpop.f32.mrf.mxu0
        %v3480 = vadd.f32 %v3282, %v3479
        %v3481 = vpop.f32.mrf.mxu0
        %v3482 = vadd.f32 %v3278, %v3481
        %v3483 = vpop.f32.mrf.mxu0
        %v3484 = vadd.f32 %v3282, %v3483
        %3485 = vmatprep.mubr.bf16.mxu0 %v3010
        %3486 = vmatmul.mubr.bf16.gmra.mxu0 %v3009
        %v3487 = vpop.f32.mrf.mxu0
        %v3488 = vadd.f32 %v3278, %v3487
        %v3489 = vpop.f32.mrf.mxu0
        %v3490 = vadd.f32 %v3282, %v3489
        %v3491 = vpop.f32.mrf.mxu0
        %v3492 = vadd.f32 %v3278, %v3491
        %v3493 = vpop.f32.mrf.mxu0
        %v3494 = vadd.f32 %v3282, %v3493
        %3495 = vdwg.mxu0
        %v3496 = vpack.c.bf16 %v3482, %v3478
        %v3497 = vpack.c.bf16 %v3484, %v3480
        %v3498 = vpack.c.bf16 %v3492, %v3488
        %v3499 = vpack.c.bf16 %v3494, %v3490
        %v3501 = vunpack.c.l.b16 %v2942
        %v3502 = vunpack.c.h.b16 %v2942
        %v3503 = vpack.c.b16 %v3501, %v3501
        %v3504 = vpack.c.b16 %v3502, %v3502
        %3507 = vmatprep.subr.bf16.mxu0 0
        %3508 = vmatpush1.bf16.xpose.msra.mxu0 0
        %3509 = vmatprep.subr.bf16.mxu0 0
        %3510 = vmatpush1.bf16.xpose.msra.mxu0 0
        %3511 = vmatprep.subr.bf16.mxu0 0
        %3512 = vmatpush1.bf16.xpose.msra.mxu0 0
        %3513 = vmatprep.subr.bf16.mxu0 0
        %3514 = vmatpush1.bf16.xpose.msra.mxu0 0
        %3515 = vmatprep.subr.bf16.mxu0 0
        %3516 = vmatpush1.bf16.xpose.msra.mxu0 0
        %3517 = vmatprep.subr.bf16.mxu0 0
        %3518 = vmatpush1.bf16.xpose.msra.mxu0 0
        %3519 = vmatprep.subr.bf16.mxu0 0
        %3520 = vmatpush1.bf16.xpose.msra.mxu0 0
        %3521 = vmatprep.subr.bf16.mxu0 0
        %3522 = vmatpush1.bf16.xpose.msra.mxu0 %v3228
        %3523 = vmatprep.subr.bf16.mxu0 0
        %3524 = vmatpush2.bf16.xpose.msra.mxu0 0
        %3525 = vmatprep.subr.bf16.mxu0 0
        %3526 = vmatpush2.bf16.xpose.msra.mxu0 0
        %3527 = vmatprep.subr.bf16.mxu0 0
        %3528 = vmatpush2.bf16.xpose.msra.mxu0 0
        %3529 = vmatprep.subr.bf16.mxu0 0
        %3530 = vmatpush2.bf16.xpose.msra.mxu0 0
        %3531 = vmatprep.subr.bf16.mxu0 0
        %3532 = vmatpush2.bf16.xpose.msra.mxu0 0
        %3533 = vmatprep.subr.bf16.mxu0 0
        %3534 = vmatpush2.bf16.xpose.msra.mxu0 0
        %3535 = vmatprep.subr.bf16.mxu0 0
        %3536 = vmatpush2.bf16.xpose.msra.mxu0 0
        %3537 = vmatprep.subr.bf16.mxu0 0
        %3538 = vmatpush2.bf16.xpose.msra.mxu0 0
        %3539 = vmatprep.mubr.bf16.mxu0 0
        %3540 = vmatmul.mubr.bf16.gmra.mxu0 %v3503
        %v3541 = vpop.f32.mrf.mxu0
        %v3542 = vadd.f32 0.0, %v3541
        %v3543 = vpop.f32.mrf.mxu0
        %v3544 = vpop.f32.mrf.mxu0
        %v3545 = vpop.f32.mrf.mxu0
        %3546 = vdwg.mxu0
        %3547 = vmatprep.subr.bf16.mxu0 0
        %3548 = vmatpush1.bf16.xpose.msra.mxu0 0
        %3549 = vmatprep.subr.bf16.mxu0 0
        %3550 = vmatpush1.bf16.xpose.msra.mxu0 0
        %3551 = vmatprep.subr.bf16.mxu0 0
        %3552 = vmatpush1.bf16.xpose.msra.mxu0 0
        %3553 = vmatprep.subr.bf16.mxu0 0
        %3554 = vmatpush1.bf16.xpose.msra.mxu0 0
        %3555 = vmatprep.subr.bf16.mxu0 0
        %3556 = vmatpush1.bf16.xpose.msra.mxu0 0
        %3557 = vmatprep.subr.bf16.mxu0 0
        %3558 = vmatpush1.bf16.xpose.msra.mxu0 0
        %3559 = vmatprep.subr.bf16.mxu0 0
        %3560 = vmatpush1.bf16.xpose.msra.mxu0 0
        %3561 = vmatprep.subr.bf16.mxu0 0
        %3562 = vmatpush1.bf16.xpose.msra.mxu0 %v3230
        %3563 = vmatprep.subr.bf16.mxu0 0
        %3564 = vmatpush2.bf16.xpose.msra.mxu0 0
        %3565 = vmatprep.subr.bf16.mxu0 0
        %3566 = vmatpush2.bf16.xpose.msra.mxu0 0
        %3567 = vmatprep.subr.bf16.mxu0 0
        %3568 = vmatpush2.bf16.xpose.msra.mxu0 0
        %3569 = vmatprep.subr.bf16.mxu0 0
        %3570 = vmatpush2.bf16.xpose.msra.mxu0 0
        %3571 = vmatprep.subr.bf16.mxu0 0
        %3572 = vmatpush2.bf16.xpose.msra.mxu0 0
        %3573 = vmatprep.subr.bf16.mxu0 0
        %3574 = vmatpush2.bf16.xpose.msra.mxu0 0
        %3575 = vmatprep.subr.bf16.mxu0 0
        %3576 = vmatpush2.bf16.xpose.msra.mxu0 0
        %3577 = vmatprep.subr.bf16.mxu0 0
        %3578 = vmatpush2.bf16.xpose.msra.mxu0 0
        %3579 = vmatprep.mubr.bf16.mxu0 0
        %3580 = vmatmul.mubr.bf16.gmra.mxu0 %v3504
        %v3581 = vpop.f32.mrf.mxu0
        %v3582 = vadd.f32 0.0, %v3581
        %v3583 = vpop.f32.mrf.mxu0
        %v3584 = vpop.f32.mrf.mxu0
        %v3585 = vpop.f32.mrf.mxu0
        %3586 = vdwg.mxu0
        %v3587 = vmul.f32 %v3542, 0.088388346
        %v3588 = vmul.f32 %v3582, 0.088388346
        %v3591 = vlaneseq
        %v3592 = vshrl.u32 %v3591, 7
        %v3593 = vsub.s32 0, %v3592
        %v3594 = vrot.slane %v996, %v3593
        %v3595 = vlaneseq
        %v3596 = vshrl.u32 %v3595, 7
        %v3597 = vsub.s32 0, %v3596
        %v3598 = vrot.slane %v997, %v3597
        %v3601 = vadd.f32 %v3587, %v3594
        %v3602 = vadd.f32 %v3588, %v3598
        %vm3603 = vcmask 130048
        %v3604 = vsel %vm3603, %v3601, -inf
        %3605 = vmax.xlane.f32.xlu0 %v3604
        %v3606 = vpop.xlane.xlu0 %3605
        %v3607 = vsel %vm3603, %v3602, -inf
        %3608 = vmax.xlane.f32.xlu0 %v3607
        %v3609 = vpop.xlane.xlu0 %3608
        %v3610 = vsub.f32 %v3601, %v3606
        %v3611 = vsub.f32 %v3602, %v3609
        %v3612 = vmul.f32 %v3610, 1.442695
        %v3613 = vpow.pop %v3612
        %v3614 = vmul.f32 %v3611, 1.442695
        %v3615 = vpow.pop %v3614
        %v3616 = vsel %vm3603, %v3613, 0.0
        %3617 = vadd.xlane.f32.xlu0 %v3616
        %v3618 = vpop.xlane.xlu0 %3617
        %v3619 = vsel %vm3603, %v3615, 0.0
        %3620 = vadd.xlane.f32.xlu0 %v3619
        %v3621 = vpop.xlane.xlu0 %3620
        %v3622 = vrcp.pop %v3618
        %v3623 = vrcp.pop %v3621
        %v3624 = vmul.f32 %v3613, %v3622
        %v3625 = vmul.f32 %v3615, %v3623
        %v3628 = vlaneseq
        %v3629 = vshrl.u32 %v3628, 7
        %v3630 = vsub.s32 0, %v3629
        %v3631 = vrot.slane %v994, %v3630
        %v3632 = vlaneseq
        %v3633 = vshrl.u32 %v3632, 7
        %v3634 = vsub.s32 0, %v3633
        %v3635 = vrot.slane %v995, %v3634
        %v3638 = vmul.f32 %v3624, %v3631
        %v3639 = vmul.f32 %v3625, %v3635
        %v3640 = vpack.c.bf16 %v3638, %v3638
        %v3641 = vpack.c.bf16 %v3639, %v3639
        %v3643 = vsel %vm3603, %v3640, 0
        %3645 = vmatprep.subr.bf16.mxu0 0
        %3646 = vmatpush1.bf16.msra.mxu0 0
        %3647 = vmatprep.subr.bf16.mxu0 0
        %3648 = vmatpush1.bf16.msra.mxu0 0
        %3649 = vmatprep.subr.bf16.mxu0 0
        %3650 = vmatpush1.bf16.msra.mxu0 0
        %3651 = vmatprep.subr.bf16.mxu0 0
        %3652 = vmatpush1.bf16.msra.mxu0 0
        %3653 = vmatprep.subr.bf16.mxu0 0
        %3654 = vmatpush1.bf16.msra.mxu0 0
        %3655 = vmatprep.subr.bf16.mxu0 0
        %3656 = vmatpush1.bf16.msra.mxu0 0
        %3657 = vmatprep.subr.bf16.mxu0 0
        %3658 = vmatpush1.bf16.msra.mxu0 0
        %3659 = vmatprep.subr.bf16.mxu0 0
        %3660 = vmatpush1.bf16.msra.mxu0 %v3496
        %3661 = vmatprep.subr.bf16.mxu0 0
        %3662 = vmatpush2.bf16.msra.mxu0 0
        %3663 = vmatprep.subr.bf16.mxu0 0
        %3664 = vmatpush2.bf16.msra.mxu0 0
        %3665 = vmatprep.subr.bf16.mxu0 0
        %3666 = vmatpush2.bf16.msra.mxu0 0
        %3667 = vmatprep.subr.bf16.mxu0 0
        %3668 = vmatpush2.bf16.msra.mxu0 0
        %3669 = vmatprep.subr.bf16.mxu0 0
        %3670 = vmatpush2.bf16.msra.mxu0 0
        %3671 = vmatprep.subr.bf16.mxu0 0
        %3672 = vmatpush2.bf16.msra.mxu0 0
        %3673 = vmatprep.subr.bf16.mxu0 0
        %3674 = vmatpush2.bf16.msra.mxu0 0
        %3675 = vmatprep.subr.bf16.mxu0 0
        %3676 = vmatpush2.bf16.msra.mxu0 0
        %3677 = vmatprep.mubr.bf16.mxu0 0
        %3678 = vmatmul.mubr.bf16.gmra.mxu0 %v3643
        %v3679 = vpop.f32.mrf.mxu0
        %v3680 = vadd.f32 0.0, %v3679
        %v3681 = vpop.f32.mrf.mxu0
        %v3682 = vpop.f32.mrf.mxu0
        %v3683 = vpop.f32.mrf.mxu0
        %3684 = vdwg.mxu0
        %v3686 = vsel %vm3603, %v3641, 0
        %3688 = vmatprep.subr.bf16.mxu0 0
        %3689 = vmatpush1.bf16.msra.mxu0 0
        %3690 = vmatprep.subr.bf16.mxu0 0
        %3691 = vmatpush1.bf16.msra.mxu0 0
        %3692 = vmatprep.subr.bf16.mxu0 0
        %3693 = vmatpush1.bf16.msra.mxu0 0
        %3694 = vmatprep.subr.bf16.mxu0 0
        %3695 = vmatpush1.bf16.msra.mxu0 0
        %3696 = vmatprep.subr.bf16.mxu0 0
        %3697 = vmatpush1.bf16.msra.mxu0 0
        %3698 = vmatprep.subr.bf16.mxu0 0
        %3699 = vmatpush1.bf16.msra.mxu0 0
        %3700 = vmatprep.subr.bf16.mxu0 0
        %3701 = vmatpush1.bf16.msra.mxu0 0
        %3702 = vmatprep.subr.bf16.mxu0 0
        %3703 = vmatpush1.bf16.msra.mxu0 %v3498
        %3704 = vmatprep.subr.bf16.mxu0 0
        %3705 = vmatpush2.bf16.msra.mxu0 0
        %3706 = vmatprep.subr.bf16.mxu0 0
        %3707 = vmatpush2.bf16.msra.mxu0 0
        %3708 = vmatprep.subr.bf16.mxu0 0
        %3709 = vmatpush2.bf16.msra.mxu0 0
        %3710 = vmatprep.subr.bf16.mxu0 0
        %3711 = vmatpush2.bf16.msra.mxu0 0
        %3712 = vmatprep.subr.bf16.mxu0 0
        %3713 = vmatpush2.bf16.msra.mxu0 0
        %3714 = vmatprep.subr.bf16.mxu0 0
        %3715 = vmatpush2.bf16.msra.mxu0 0
        %3716 = vmatprep.subr.bf16.mxu0 0
        %3717 = vmatpush2.bf16.msra.mxu0 0
        %3718 = vmatprep.subr.bf16.mxu0 0
        %3719 = vmatpush2.bf16.msra.mxu0 0
        %3720 = vmatprep.mubr.bf16.mxu0 0
        %3721 = vmatmul.mubr.bf16.gmra.mxu0 %v3686
        %v3722 = vpop.f32.mrf.mxu0
        %v3723 = vadd.f32 0.0, %v3722
        %v3724 = vpop.f32.mrf.mxu0
        %v3725 = vpop.f32.mrf.mxu0
        %v3726 = vpop.f32.mrf.mxu0
        %3727 = vdwg.mxu0
        %v3728 = vpack.c.bf16 %v3723, %v3680
        %v3730 = vunpack.c.l.b16 %v2943
        %v3731 = vunpack.c.h.b16 %v2943
        %v3732 = vpack.c.b16 %v3730, %v3730
        %v3733 = vpack.c.b16 %v3731, %v3731
        %3736 = vmatprep.subr.bf16.mxu0 0
        %3737 = vmatpush1.bf16.xpose.msra.mxu0 0
        %3738 = vmatprep.subr.bf16.mxu0 0
        %3739 = vmatpush1.bf16.xpose.msra.mxu0 0
        %3740 = vmatprep.subr.bf16.mxu0 0
        %3741 = vmatpush1.bf16.xpose.msra.mxu0 0
        %3742 = vmatprep.subr.bf16.mxu0 0
        %3743 = vmatpush1.bf16.xpose.msra.mxu0 0
        %3744 = vmatprep.subr.bf16.mxu0 0
        %3745 = vmatpush1.bf16.xpose.msra.mxu0 0
        %3746 = vmatprep.subr.bf16.mxu0 0
        %3747 = vmatpush1.bf16.xpose.msra.mxu0 0
        %3748 = vmatprep.subr.bf16.mxu0 0
        %3749 = vmatpush1.bf16.xpose.msra.mxu0 0
        %3750 = vmatprep.subr.bf16.mxu0 0
        %3751 = vmatpush1.bf16.xpose.msra.mxu0 %v3229
        %3752 = vmatprep.subr.bf16.mxu0 0
        %3753 = vmatpush2.bf16.xpose.msra.mxu0 0
        %3754 = vmatprep.subr.bf16.mxu0 0
        %3755 = vmatpush2.bf16.xpose.msra.mxu0 0
        %3756 = vmatprep.subr.bf16.mxu0 0
        %3757 = vmatpush2.bf16.xpose.msra.mxu0 0
        %3758 = vmatprep.subr.bf16.mxu0 0
        %3759 = vmatpush2.bf16.xpose.msra.mxu0 0
        %3760 = vmatprep.subr.bf16.mxu0 0
        %3761 = vmatpush2.bf16.xpose.msra.mxu0 0
        %3762 = vmatprep.subr.bf16.mxu0 0
        %3763 = vmatpush2.bf16.xpose.msra.mxu0 0
        %3764 = vmatprep.subr.bf16.mxu0 0
        %3765 = vmatpush2.bf16.xpose.msra.mxu0 0
        %3766 = vmatprep.subr.bf16.mxu0 0
        %3767 = vmatpush2.bf16.xpose.msra.mxu0 0
        %3768 = vmatprep.mubr.bf16.mxu0 0
        %3769 = vmatmul.mubr.bf16.gmra.mxu0 %v3732
        %v3770 = vpop.f32.mrf.mxu0
        %v3771 = vadd.f32 0.0, %v3770
        %v3772 = vpop.f32.mrf.mxu0
        %v3773 = vpop.f32.mrf.mxu0
        %v3774 = vpop.f32.mrf.mxu0
        %3775 = vdwg.mxu0
        %3776 = vmatprep.subr.bf16.mxu0 0
        %3777 = vmatpush1.bf16.xpose.msra.mxu0 0
        %3778 = vmatprep.subr.bf16.mxu0 0
        %3779 = vmatpush1.bf16.xpose.msra.mxu0 0
        %3780 = vmatprep.subr.bf16.mxu0 0
        %3781 = vmatpush1.bf16.xpose.msra.mxu0 0
        %3782 = vmatprep.subr.bf16.mxu0 0
        %3783 = vmatpush1.bf16.xpose.msra.mxu0 0
        %3784 = vmatprep.subr.bf16.mxu0 0
        %3785 = vmatpush1.bf16.xpose.msra.mxu0 0
        %3786 = vmatprep.subr.bf16.mxu0 0
        %3787 = vmatpush1.bf16.xpose.msra.mxu0 0
        %3788 = vmatprep.subr.bf16.mxu0 0
        %3789 = vmatpush1.bf16.xpose.msra.mxu0 0
        %3790 = vmatprep.subr.bf16.mxu0 0
        %3791 = vmatpush1.bf16.xpose.msra.mxu0 %v3231
        %3792 = vmatprep.subr.bf16.mxu0 0
        %3793 = vmatpush2.bf16.xpose.msra.mxu0 0
        %3794 = vmatprep.subr.bf16.mxu0 0
        %3795 = vmatpush2.bf16.xpose.msra.mxu0 0
        %3796 = vmatprep.subr.bf16.mxu0 0
        %3797 = vmatpush2.bf16.xpose.msra.mxu0 0
        %3798 = vmatprep.subr.bf16.mxu0 0
        %3799 = vmatpush2.bf16.xpose.msra.mxu0 0
        %3800 = vmatprep.subr.bf16.mxu0 0
        %3801 = vmatpush2.bf16.xpose.msra.mxu0 0
        %3802 = vmatprep.subr.bf16.mxu0 0
        %3803 = vmatpush2.bf16.xpose.msra.mxu0 0
        %3804 = vmatprep.subr.bf16.mxu0 0
        %3805 = vmatpush2.bf16.xpose.msra.mxu0 0
        %3806 = vmatprep.subr.bf16.mxu0 0
        %3807 = vmatpush2.bf16.xpose.msra.mxu0 0
        %3808 = vmatprep.mubr.bf16.mxu0 0
        %3809 = vmatmul.mubr.bf16.gmra.mxu0 %v3733
        %v3810 = vpop.f32.mrf.mxu0
        %v3811 = vadd.f32 0.0, %v3810
        %v3812 = vpop.f32.mrf.mxu0
        %v3813 = vpop.f32.mrf.mxu0
        %v3814 = vpop.f32.mrf.mxu0
        %3815 = vdwg.mxu0
        %v3816 = vmul.f32 %v3771, 0.088388346
        %v3817 = vmul.f32 %v3811, 0.088388346
        %v3818 = vadd.f32 %v3816, %v3594
        %v3819 = vadd.f32 %v3817, %v3598
        %v3820 = vsel %vm3603, %v3818, -inf
        %3821 = vmax.xlane.f32.xlu0 %v3820
        %v3822 = vpop.xlane.xlu0 %3821
        %v3823 = vsel %vm3603, %v3819, -inf
        %3824 = vmax.xlane.f32.xlu0 %v3823
        %v3825 = vpop.xlane.xlu0 %3824
        %v3826 = vsub.f32 %v3818, %v3822
        %v3827 = vsub.f32 %v3819, %v3825
        %v3828 = vmul.f32 %v3826, 1.442695
        %v3829 = vpow.pop %v3828
        %v3830 = vmul.f32 %v3827, 1.442695
        %v3831 = vpow.pop %v3830
        %v3832 = vsel %vm3603, %v3829, 0.0
        %3833 = vadd.xlane.f32.xlu0 %v3832
        %v3834 = vpop.xlane.xlu0 %3833
        %v3835 = vsel %vm3603, %v3831, 0.0
        %3836 = vadd.xlane.f32.xlu0 %v3835
        %v3837 = vpop.xlane.xlu0 %3836
        %v3838 = vrcp.pop %v3834
        %v3839 = vrcp.pop %v3837
        %v3840 = vmul.f32 %v3829, %v3838
        %v3841 = vmul.f32 %v3831, %v3839
        %v3842 = vmul.f32 %v3840, %v3631
        %v3843 = vmul.f32 %v3841, %v3635
        %v3844 = vpack.c.bf16 %v3842, %v3842
        %v3845 = vpack.c.bf16 %v3843, %v3843
        %v3847 = vsel %vm3603, %v3844, 0
        %3849 = vmatprep.subr.bf16.mxu0 0
        %3850 = vmatpush1.bf16.msra.mxu0 0
        %3851 = vmatprep.subr.bf16.mxu0 0
        %3852 = vmatpush1.bf16.msra.mxu0 0
        %3853 = vmatprep.subr.bf16.mxu0 0
        %3854 = vmatpush1.bf16.msra.mxu0 0
        %3855 = vmatprep.subr.bf16.mxu0 0
        %3856 = vmatpush1.bf16.msra.mxu0 0
        %3857 = vmatprep.subr.bf16.mxu0 0
        %3858 = vmatpush1.bf16.msra.mxu0 0
        %3859 = vmatprep.subr.bf16.mxu0 0
        %3860 = vmatpush1.bf16.msra.mxu0 0
        %3861 = vmatprep.subr.bf16.mxu0 0
        %3862 = vmatpush1.bf16.msra.mxu0 0
        %3863 = vmatprep.subr.bf16.mxu0 0
        %3864 = vmatpush1.bf16.msra.mxu0 %v3497
        %3865 = vmatprep.subr.bf16.mxu0 0
        %3866 = vmatpush2.bf16.msra.mxu0 0
        %3867 = vmatprep.subr.bf16.mxu0 0
        %3868 = vmatpush2.bf16.msra.mxu0 0
        %3869 = vmatprep.subr.bf16.mxu0 0
        %3870 = vmatpush2.bf16.msra.mxu0 0
        %3871 = vmatprep.subr.bf16.mxu0 0
        %3872 = vmatpush2.bf16.msra.mxu0 0
        %3873 = vmatprep.subr.bf16.mxu0 0
        %3874 = vmatpush2.bf16.msra.mxu0 0
        %3875 = vmatprep.subr.bf16.mxu0 0
        %3876 = vmatpush2.bf16.msra.mxu0 0
        %3877 = vmatprep.subr.bf16.mxu0 0
        %3878 = vmatpush2.bf16.msra.mxu0 0
        %3879 = vmatprep.subr.bf16.mxu0 0
        %3880 = vmatpush2.bf16.msra.mxu0 0
        %3881 = vmatprep.mubr.bf16.mxu0 0
        %3882 = vmatmul.mubr.bf16.gmra.mxu0 %v3847
        %v3883 = vpop.f32.mrf.mxu0
        %v3884 = vadd.f32 0.0, %v3883
        %v3885 = vpop.f32.mrf.mxu0
        %v3886 = vpop.f32.mrf.mxu0
        %v3887 = vpop.f32.mrf.mxu0
        %3888 = vdwg.mxu0
        %v3890 = vsel %vm3603, %v3845, 0
        %3892 = vmatprep.subr.bf16.mxu0 0
        %3893 = vmatpush1.bf16.msra.mxu0 0
        %3894 = vmatprep.subr.bf16.mxu0 0
        %3895 = vmatpush1.bf16.msra.mxu0 0
        %3896 = vmatprep.subr.bf16.mxu0 0
        %3897 = vmatpush1.bf16.msra.mxu0 0
        %3898 = vmatprep.subr.bf16.mxu0 0
        %3899 = vmatpush1.bf16.msra.mxu0 0
        %3900 = vmatprep.subr.bf16.mxu0 0
        %3901 = vmatpush1.bf16.msra.mxu0 0
        %3902 = vmatprep.subr.bf16.mxu0 0
        %3903 = vmatpush1.bf16.msra.mxu0 0
        %3904 = vmatprep.subr.bf16.mxu0 0
        %3905 = vmatpush1.bf16.msra.mxu0 0
        %3906 = vmatprep.subr.bf16.mxu0 0
        %3907 = vmatpush1.bf16.msra.mxu0 %v3499
        %3908 = vmatprep.subr.bf16.mxu0 0
        %3909 = vmatpush2.bf16.msra.mxu0 0
        %3910 = vmatprep.subr.bf16.mxu0 0
        %3911 = vmatpush2.bf16.msra.mxu0 0
        %3912 = vmatprep.subr.bf16.mxu0 0
        %3913 = vmatpush2.bf16.msra.mxu0 0
        %3914 = vmatprep.subr.bf16.mxu0 0
        %3915 = vmatpush2.bf16.msra.mxu0 0
        %3916 = vmatprep.subr.bf16.mxu0 0
        %3917 = vmatpush2.bf16.msra.mxu0 0
        %3918 = vmatprep.subr.bf16.mxu0 0
        %3919 = vmatpush2.bf16.msra.mxu0 0
        %3920 = vmatprep.subr.bf16.mxu0 0
        %3921 = vmatpush2.bf16.msra.mxu0 0
        %3922 = vmatprep.subr.bf16.mxu0 0
        %3923 = vmatpush2.bf16.msra.mxu0 0
        %3924 = vmatprep.mubr.bf16.mxu0 0
        %3925 = vmatmul.mubr.bf16.gmra.mxu0 %v3890
        %v3926 = vpop.f32.mrf.mxu0
        %v3927 = vadd.f32 0.0, %v3926
        %v3928 = vpop.f32.mrf.mxu0
        %v3929 = vpop.f32.mrf.mxu0
        %v3930 = vpop.f32.mrf.mxu0
        %3931 = vdwg.mxu0
        %v3932 = vpack.c.bf16 %v3927, %v3884
        %s3933 = scalar_lea.vmem %s841, 768 [#allocation17]
        %v3934 = vld [vmem:[%s3933] sm:$0xff]
        %v3935 = vld [vmem:[%s3933 + $0x8] sm:$0xff]
        %v3936 = vld [vmem:[%s3933 + $0x10] sm:$0xff]
        %v3937 = vld [vmem:[%s3933 + $0x18] sm:$0xff]
        %v3938 = vld [vmem:[%s3933 + $0x20] sm:$0xff]
        %v3939 = vld [vmem:[%s3933 + $0x28] sm:$0xff]
        %v3940 = vld [vmem:[%s3933 + $0x30] sm:$0xff]
        %v3941 = vld [vmem:[%s3933 + $0x38] sm:$0xff]
        %v3942 = vld [vmem:[%s3933 + $0x40] sm:$0xff]
        %v3943 = vld [vmem:[%s3933 + $0x48] sm:$0xff]
        %v3944 = vld [vmem:[%s3933 + $0x50] sm:$0xff]
        %v3945 = vld [vmem:[%s3933 + $0x58] sm:$0xff]
        %v3946 = vld [vmem:[%s3933 + $0x60] sm:$0xff]
        %v3947 = vld [vmem:[%s3933 + $0x68] sm:$0xff]
        %v3948 = vld [vmem:[%s3933 + $0x70] sm:$0xff]
        %v3949 = vld [vmem:[%s3933 + $0x78] sm:$0xff]
        %v3950 = vld [vmem:[%s3933 + $0x80] sm:$0xff]
        %v3951 = vld [vmem:[%s3933 + $0x88] sm:$0xff]
        %v3952 = vld [vmem:[%s3933 + $0x90] sm:$0xff]
        %v3953 = vld [vmem:[%s3933 + $0x98] sm:$0xff]
        %v3954 = vld [vmem:[%s3933 + $0xa0] sm:$0xff]
        %v3955 = vld [vmem:[%s3933 + $0xa8] sm:$0xff]
        %v3956 = vld [vmem:[%s3933 + $0xb0] sm:$0xff]
        %v3957 = vld [vmem:[%s3933 + $0xb8] sm:$0xff]
        %v3958 = vld [vmem:[%s3933 + $0xc0] sm:$0xff]
        %v3959 = vld [vmem:[%s3933 + $0xc8] sm:$0xff]
        %v3960 = vld [vmem:[%s3933 + $0xd0] sm:$0xff]
        %v3961 = vld [vmem:[%s3933 + $0xd8] sm:$0xff]
        %v3962 = vld [vmem:[%s3933 + $0xe0] sm:$0xff]
        %v3963 = vld [vmem:[%s3933 + $0xe8] sm:$0xff]
        %v3964 = vld [vmem:[%s3933 + $0xf0] sm:$0xff]
        %v3965 = vld [vmem:[%s3933 + $0xf8] sm:$0xff]
        %v3966 = vlaneseq
        %v3967 = vshrl.u32 %v3966, 7
        %v3968 = vsub.s32 3, %v3967
        %v3969 = vrot.slane %v1002, %v3968
        %v3970 = vlaneseq
        %v3971 = vshrl.u32 %v3970, 7
        %v3972 = vsub.s32 7, %v3971
        %v3973 = vrot.slane %v1002, %v3972
        %v3976 = vlaneseq
        %v3977 = vshrl.u32 %v3976, 7
        %v3978 = vsub.s32 3, %v3977
        %v3979 = vrot.slane %v3969, %v3978
        %v3980 = vlaneseq
        %v3981 = vshrl.u32 %v3980, 7
        %v3982 = vsub.s32 3, %v3981
        %v3983 = vrot.slane %v3973, %v3982
        %v4016 = vunpack.c.l.b16 %v3934
        %v4017 = vunpack.c.h.b16 %v3934
        %v4018 = vunpack.c.l.b16 %v3935
        %v4019 = vunpack.c.h.b16 %v3935
        %v4020 = vunpack.c.l.b16 %v3936
        %v4021 = vunpack.c.h.b16 %v3936
        %v4022 = vunpack.c.l.b16 %v3937
        %v4023 = vunpack.c.h.b16 %v3937
        %v4024 = vunpack.c.l.b16 %v3938
        %v4025 = vunpack.c.h.b16 %v3938
        %v4026 = vunpack.c.l.b16 %v3939
        %v4027 = vunpack.c.h.b16 %v3939
        %v4028 = vunpack.c.l.b16 %v3940
        %v4029 = vunpack.c.h.b16 %v3940
        %v4030 = vunpack.c.l.b16 %v3941
        %v4031 = vunpack.c.h.b16 %v3941
        %v4032 = vunpack.c.l.b16 %v3942
        %v4033 = vunpack.c.h.b16 %v3942
        %v4034 = vunpack.c.l.b16 %v3943
        %v4035 = vunpack.c.h.b16 %v3943
        %v4036 = vunpack.c.l.b16 %v3944
        %v4037 = vunpack.c.h.b16 %v3944
        %v4038 = vunpack.c.l.b16 %v3945
        %v4039 = vunpack.c.h.b16 %v3945
        %v4040 = vunpack.c.l.b16 %v3946
        %v4041 = vunpack.c.h.b16 %v3946
        %v4042 = vunpack.c.l.b16 %v3947
        %v4043 = vunpack.c.h.b16 %v3947
        %v4044 = vunpack.c.l.b16 %v3948
        %v4045 = vunpack.c.h.b16 %v3948
        %v4046 = vunpack.c.l.b16 %v3949
        %v4047 = vunpack.c.h.b16 %v3949
        %v4048 = vunpack.c.l.b16 %v3950
        %v4049 = vunpack.c.h.b16 %v3950
        %v4050 = vunpack.c.l.b16 %v3951
        %v4051 = vunpack.c.h.b16 %v3951
        %v4052 = vunpack.c.l.b16 %v3952
        %v4053 = vunpack.c.h.b16 %v3952
        %v4054 = vunpack.c.l.b16 %v3953
        %v4055 = vunpack.c.h.b16 %v3953
        %v4056 = vunpack.c.l.b16 %v3954
        %v4057 = vunpack.c.h.b16 %v3954
        %v4058 = vunpack.c.l.b16 %v3955
        %v4059 = vunpack.c.h.b16 %v3955
        %v4060 = vunpack.c.l.b16 %v3956
        %v4061 = vunpack.c.h.b16 %v3956
        %v4062 = vunpack.c.l.b16 %v3957
        %v4063 = vunpack.c.h.b16 %v3957
        %v4064 = vunpack.c.l.b16 %v3958
        %v4065 = vunpack.c.h.b16 %v3958
        %v4066 = vunpack.c.l.b16 %v3959
        %v4067 = vunpack.c.h.b16 %v3959
        %v4068 = vunpack.c.l.b16 %v3960
        %v4069 = vunpack.c.h.b16 %v3960
        %v4070 = vunpack.c.l.b16 %v3961
        %v4071 = vunpack.c.h.b16 %v3961
        %v4072 = vunpack.c.l.b16 %v3962
        %v4073 = vunpack.c.h.b16 %v3962
        %v4074 = vunpack.c.l.b16 %v3963
        %v4075 = vunpack.c.h.b16 %v3963
        %v4076 = vunpack.c.l.b16 %v3964
        %v4077 = vunpack.c.h.b16 %v3964
        %v4078 = vunpack.c.l.b16 %v3965
        %v4079 = vunpack.c.h.b16 %v3965
        %v4080 = vpack.c.b16 %v4018, %v4016
        %v4081 = vpack.c.b16 %v4019, %v4017
        %v4082 = vpack.c.b16 %v4022, %v4020
        %v4083 = vpack.c.b16 %v4023, %v4021
        %v4084 = vpack.c.b16 %v4026, %v4024
        %v4085 = vpack.c.b16 %v4027, %v4025
        %v4086 = vpack.c.b16 %v4030, %v4028
        %v4087 = vpack.c.b16 %v4031, %v4029
        %v4088 = vpack.c.b16 %v4034, %v4032
        %v4089 = vpack.c.b16 %v4035, %v4033
        %v4090 = vpack.c.b16 %v4038, %v4036
        %v4091 = vpack.c.b16 %v4039, %v4037
        %v4092 = vpack.c.b16 %v4042, %v4040
        %v4093 = vpack.c.b16 %v4043, %v4041
        %v4094 = vpack.c.b16 %v4046, %v4044
        %v4095 = vpack.c.b16 %v4047, %v4045
        %v4096 = vpack.c.b16 %v4050, %v4048
        %v4097 = vpack.c.b16 %v4051, %v4049
        %v4098 = vpack.c.b16 %v4054, %v4052
        %v4099 = vpack.c.b16 %v4055, %v4053
        %v4100 = vpack.c.b16 %v4058, %v4056
        %v4101 = vpack.c.b16 %v4059, %v4057
        %v4102 = vpack.c.b16 %v4062, %v4060
        %v4103 = vpack.c.b16 %v4063, %v4061
        %v4104 = vpack.c.b16 %v4066, %v4064
        %v4105 = vpack.c.b16 %v4067, %v4065
        %v4106 = vpack.c.b16 %v4070, %v4068
        %v4107 = vpack.c.b16 %v4071, %v4069
        %v4108 = vpack.c.b16 %v4074, %v4072
        %v4109 = vpack.c.b16 %v4075, %v4073
        %v4110 = vpack.c.b16 %v4078, %v4076
        %v4111 = vpack.c.b16 %v4079, %v4077
        %4144 = vmatprep.subr.bf16.mxu0 %v4095
        %4145 = vmatpush1.bf16.msra.mxu0 %v4094
        %4146 = vmatprep.subr.bf16.mxu0 %v4093
        %4147 = vmatpush1.bf16.msra.mxu0 %v4092
        %4148 = vmatprep.subr.bf16.mxu0 %v4091
        %4149 = vmatpush1.bf16.msra.mxu0 %v4090
        %4150 = vmatprep.subr.bf16.mxu0 %v4089
        %4151 = vmatpush1.bf16.msra.mxu0 %v4088
        %4152 = vmatprep.subr.bf16.mxu0 %v4087
        %4153 = vmatpush1.bf16.msra.mxu0 %v4086
        %4154 = vmatprep.subr.bf16.mxu0 %v4085
        %4155 = vmatpush1.bf16.msra.mxu0 %v4084
        %4156 = vmatprep.subr.bf16.mxu0 %v4083
        %4157 = vmatpush1.bf16.msra.mxu0 %v4082
        %4158 = vmatprep.subr.bf16.mxu0 %v4081
        %4159 = vmatpush1.bf16.msra.mxu0 %v4080
        %4160 = vmatprep.subr.bf16.mxu0 %v4111
        %4161 = vmatpush2.bf16.msra.mxu0 %v4110
        %4162 = vmatprep.subr.bf16.mxu0 %v4109
        %4163 = vmatpush2.bf16.msra.mxu0 %v4108
        %4164 = vmatprep.subr.bf16.mxu0 %v4107
        %4165 = vmatpush2.bf16.msra.mxu0 %v4106
        %4166 = vmatprep.subr.bf16.mxu0 %v4105
        %4167 = vmatpush2.bf16.msra.mxu0 %v4104
        %4168 = vmatprep.subr.bf16.mxu0 %v4103
        %4169 = vmatpush2.bf16.msra.mxu0 %v4102
        %4170 = vmatprep.subr.bf16.mxu0 %v4101
        %4171 = vmatpush2.bf16.msra.mxu0 %v4100
        %4172 = vmatprep.subr.bf16.mxu0 %v4099
        %4173 = vmatpush2.bf16.msra.mxu0 %v4098
        %4174 = vmatprep.subr.bf16.mxu0 %v4097
        %4175 = vmatpush2.bf16.msra.mxu0 %v4096
        %4176 = vmatprep.mubr.bf16.mxu0 %v3932
        %4177 = vmatmul.mubr.bf16.gmra.mxu0 %v3728
        %v4178 = vpop.f32.mrf.mxu0
        %v4179 = vadd.f32 %v3979, %v4178
        %v4180 = vpop.f32.mrf.mxu0
        %v4181 = vadd.f32 %v3983, %v4180
        %v4182 = vpop.f32.mrf.mxu0
        %v4183 = vadd.f32 %v3979, %v4182
        %v4184 = vpop.f32.mrf.mxu0
        %v4185 = vadd.f32 %v3983, %v4184
        %4186 = vdwg.mxu0
        %v4187 = vadd.f32 %v2591, %v4179
        %v4188 = vadd.f32 %v2592, %v4181
        %v4189 = vadd.f32 %v2593, %v4183
        %v4190 = vadd.f32 %v2594, %v4185
        %v4191 = vadd.f32 %v4187, %v4188
        %4192 = vadd.xlane.f32.xlu0 %v4191
        %v4193 = vpop.xlane.xlu0 %4192
        %v4194 = vadd.f32 %v4189, %v4190
        %4195 = vadd.xlane.f32.xlu0 %v4194
        %v4196 = vpop.xlane.xlu0 %4195
        %v4197 = vmul.f32 %v4193, %v1011
        %v4198 = vmul.f32 %v4196, %v1011
        %v4199 = vsub.f32 %v4187, %v4197
        %v4200 = vsub.f32 %v4188, %v4197
        %v4201 = vsub.f32 %v4189, %v4198
        %v4202 = vsub.f32 %v4190, %v4198
        %v4203 = vmul.f32 %v4199, %v4199
        %v4204 = vmul.f32 %v4200, %v4200
        %v4205 = vmul.f32 %v4201, %v4201
        %v4206 = vmul.f32 %v4202, %v4202
        %v4207 = vadd.f32 %v4203, %v4204
        %4208 = vadd.xlane.f32.xlu0 %v4207
        %v4209 = vpop.xlane.xlu0 %4208
        %v4210 = vadd.f32 %v4205, %v4206
        %4211 = vadd.xlane.f32.xlu0 %v4210
        %v4212 = vpop.xlane.xlu0 %4211
        %v4213 = vmul.f32 %v4209, %v1011
        %v4214 = vmul.f32 %v4212, %v1011
        %v4215 = vadd.f32 %v4213, 1e-12
        %v4216 = vadd.f32 %v4214, 1e-12
        %v4217 = vrsqrt.pop %v4215
        %v4218 = vrsqrt.pop %v4216
        %v4219 = vmul.f32 %v4199, %v4217
        %v4220 = vmul.f32 %v4200, %v4217
        %v4221 = vmul.f32 %v4201, %v4218
        %v4222 = vmul.f32 %v4202, %v4218
        %v4224 = vlaneseq
        %v4225 = vshrl.u32 %v4224, 7
        %v4226 = vsub.s32 0, %v4225
        %v4227 = vrot.slane %v1000, %v4226
        %v4228 = vlaneseq
        %v4229 = vshrl.u32 %v4228, 7
        %v4230 = vsub.s32 2, %v4229
        %v4231 = vrot.slane %v1000, %v4230
        %v4234 = vlaneseq
        %v4235 = vshrl.u32 %v4234, 7
        %v4236 = vsub.s32 0, %v4235
        %v4237 = vrot.slane %v4227, %v4236
        %v4238 = vlaneseq
        %v4239 = vshrl.u32 %v4238, 7
        %v4240 = vsub.s32 0, %v4239
        %v4241 = vrot.slane %v4231, %v4240
        %v4242 = vmul.f32 %v4219, %v4237
        %v4243 = vmul.f32 %v4220, %v4241
        %v4244 = vmul.f32 %v4221, %v4237
        %v4245 = vmul.f32 %v4222, %v4241
        %v4246 = vlaneseq
        %v4247 = vshrl.u32 %v4246, 7
        %v4248 = vsub.s32 1, %v4247
        %v4249 = vrot.slane %v1000, %v4248
        %v4250 = vlaneseq
        %v4251 = vshrl.u32 %v4250, 7
        %v4252 = vsub.s32 3, %v4251
        %v4253 = vrot.slane %v1000, %v4252
        %v4256 = vlaneseq
        %v4257 = vshrl.u32 %v4256, 7
        %v4258 = vsub.s32 1, %v4257
        %v4259 = vrot.slane %v4249, %v4258
        %v4260 = vlaneseq
        %v4261 = vshrl.u32 %v4260, 7
        %v4262 = vsub.s32 1, %v4261
        %v4263 = vrot.slane %v4253, %v4262
        %v4264 = vadd.f32 %v4242, %v4259
        %v4265 = vadd.f32 %v4243, %v4263
        %v4266 = vadd.f32 %v4244, %v4259
        %v4267 = vadd.f32 %v4245, %v4263
        %v4268 = vpack.c.bf16 %v4264, %v4264
        %v4269 = vpack.c.bf16 %v4265, %v4265
        %v4270 = vpack.c.bf16 %v4266, %v4266
        %v4271 = vpack.c.bf16 %v4267, %v4267
        %v4276 = vunpack.c.l.b16 %v4268
        %v4277 = vunpack.c.l.b16 %v4269
        %v4278 = vunpack.c.l.b16 %v4270
        %v4279 = vunpack.c.l.b16 %v4271
        %v4280 = vld [vmem:[%s850] sm:$0xff]
        %v4281 = vld [vmem:[%s850 + $0x8] sm:$0xff]
        %v4282 = vld [vmem:[%s850 + $0x10] sm:$0xff]
        %v4283 = vld [vmem:[%s850 + $0x18] sm:$0xff]
        %v4284 = vld [vmem:[%s850 + $0x20] sm:$0xff]
        %v4285 = vld [vmem:[%s850 + $0x28] sm:$0xff]
        %v4286 = vld [vmem:[%s850 + $0x30] sm:$0xff]
        %v4287 = vld [vmem:[%s850 + $0x38] sm:$0xff]
        %v4288 = vld [vmem:[%s850 + $0x40] sm:$0xff]
        %v4289 = vld [vmem:[%s850 + $0x48] sm:$0xff]
        %v4290 = vld [vmem:[%s850 + $0x50] sm:$0xff]
        %v4291 = vld [vmem:[%s850 + $0x58] sm:$0xff]
        %v4292 = vld [vmem:[%s850 + $0x60] sm:$0xff]
        %v4293 = vld [vmem:[%s850 + $0x68] sm:$0xff]
        %v4294 = vld [vmem:[%s850 + $0x70] sm:$0xff]
        %v4295 = vld [vmem:[%s850 + $0x78] sm:$0xff]
        %v4296 = vld [vmem:[%s850 + $0x80] sm:$0xff]
        %v4297 = vld [vmem:[%s850 + $0x88] sm:$0xff]
        %v4298 = vld [vmem:[%s850 + $0x90] sm:$0xff]
        %v4299 = vld [vmem:[%s850 + $0x98] sm:$0xff]
        %v4300 = vld [vmem:[%s850 + $0xa0] sm:$0xff]
        %v4301 = vld [vmem:[%s850 + $0xa8] sm:$0xff]
        %v4302 = vld [vmem:[%s850 + $0xb0] sm:$0xff]
        %v4303 = vld [vmem:[%s850 + $0xb8] sm:$0xff]
        %v4304 = vld [vmem:[%s850 + $0xc0] sm:$0xff]
        %v4305 = vld [vmem:[%s850 + $0xc8] sm:$0xff]
        %v4306 = vld [vmem:[%s850 + $0xd0] sm:$0xff]
        %v4307 = vld [vmem:[%s850 + $0xd8] sm:$0xff]
        %v4308 = vld [vmem:[%s850 + $0xe0] sm:$0xff]
        %v4309 = vld [vmem:[%s850 + $0xe8] sm:$0xff]
        %v4310 = vld [vmem:[%s850 + $0xf0] sm:$0xff]
        %v4311 = vld [vmem:[%s850 + $0xf8] sm:$0xff]
        %v4312 = vld [vmem:[%s850 + $0x100] sm:$0xff]
        %v4313 = vld [vmem:[%s850 + $0x108] sm:$0xff]
        %v4314 = vld [vmem:[%s850 + $0x110] sm:$0xff]
        %v4315 = vld [vmem:[%s850 + $0x118] sm:$0xff]
        %v4316 = vld [vmem:[%s850 + $0x120] sm:$0xff]
        %v4317 = vld [vmem:[%s850 + $0x128] sm:$0xff]
        %v4318 = vld [vmem:[%s850 + $0x130] sm:$0xff]
        %v4319 = vld [vmem:[%s850 + $0x138] sm:$0xff]
        %v4320 = vld [vmem:[%s850 + $0x140] sm:$0xff]
        %v4321 = vld [vmem:[%s850 + $0x148] sm:$0xff]
        %v4322 = vld [vmem:[%s850 + $0x150] sm:$0xff]
        %v4323 = vld [vmem:[%s850 + $0x158] sm:$0xff]
        %v4324 = vld [vmem:[%s850 + $0x160] sm:$0xff]
        %v4325 = vld [vmem:[%s850 + $0x168] sm:$0xff]
        %v4326 = vld [vmem:[%s850 + $0x170] sm:$0xff]
        %v4327 = vld [vmem:[%s850 + $0x178] sm:$0xff]
        %v4328 = vld [vmem:[%s850 + $0x180] sm:$0xff]
        %v4329 = vld [vmem:[%s850 + $0x188] sm:$0xff]
        %v4330 = vld [vmem:[%s850 + $0x190] sm:$0xff]
        %v4331 = vld [vmem:[%s850 + $0x198] sm:$0xff]
        %v4332 = vld [vmem:[%s850 + $0x1a0] sm:$0xff]
        %v4333 = vld [vmem:[%s850 + $0x1a8] sm:$0xff]
        %v4334 = vld [vmem:[%s850 + $0x1b0] sm:$0xff]
        %v4335 = vld [vmem:[%s850 + $0x1b8] sm:$0xff]
        %v4336 = vld [vmem:[%s850 + $0x1c0] sm:$0xff]
        %v4337 = vld [vmem:[%s850 + $0x1c8] sm:$0xff]
        %v4338 = vld [vmem:[%s850 + $0x1d0] sm:$0xff]
        %v4339 = vld [vmem:[%s850 + $0x1d8] sm:$0xff]
        %v4340 = vld [vmem:[%s850 + $0x1e0] sm:$0xff]
        %v4341 = vld [vmem:[%s850 + $0x1e8] sm:$0xff]
        %v4342 = vld [vmem:[%s850 + $0x1f0] sm:$0xff]
        %v4343 = vld [vmem:[%s850 + $0x1f8] sm:$0xff]
        %v4345 = vlaneseq
        %v4346 = vshrl.u32 %v4345, 7
        %v4347 = vsub.s32 0, %v4346
        %v4348 = vrot.slane %v1003, %v4347
        %v4349 = vlaneseq
        %v4350 = vshrl.u32 %v4349, 7
        %v4351 = vsub.s32 1, %v4350
        %v4352 = vrot.slane %v1003, %v4351
        %v4353 = vlaneseq
        %v4354 = vshrl.u32 %v4353, 7
        %v4355 = vsub.s32 2, %v4354
        %v4356 = vrot.slane %v1003, %v4355
        %v4357 = vlaneseq
        %v4358 = vshrl.u32 %v4357, 7
        %v4359 = vsub.s32 3, %v4358
        %v4360 = vrot.slane %v1003, %v4359
        %v4365 = vpack.c.b16 %v4278, %v4276
        %v4366 = vpack.c.b16 %v4279, %v4277
        %v4433 = vunpack.c.l.b16 %v4280
        %v4434 = vunpack.c.h.b16 %v4280
        %v4435 = vunpack.c.l.b16 %v4281
        %v4436 = vunpack.c.h.b16 %v4281
        %v4437 = vunpack.c.l.b16 %v4282
        %v4438 = vunpack.c.h.b16 %v4282
        %v4439 = vunpack.c.l.b16 %v4283
        %v4440 = vunpack.c.h.b16 %v4283
        %v4441 = vunpack.c.l.b16 %v4284
        %v4442 = vunpack.c.h.b16 %v4284
        %v4443 = vunpack.c.l.b16 %v4285
        %v4444 = vunpack.c.h.b16 %v4285
        %v4445 = vunpack.c.l.b16 %v4286
        %v4446 = vunpack.c.h.b16 %v4286
        %v4447 = vunpack.c.l.b16 %v4287
        %v4448 = vunpack.c.h.b16 %v4287
        %v4449 = vunpack.c.l.b16 %v4288
        %v4450 = vunpack.c.h.b16 %v4288
        %v4451 = vunpack.c.l.b16 %v4289
        %v4452 = vunpack.c.h.b16 %v4289
        %v4453 = vunpack.c.l.b16 %v4290
        %v4454 = vunpack.c.h.b16 %v4290
        %v4455 = vunpack.c.l.b16 %v4291
        %v4456 = vunpack.c.h.b16 %v4291
        %v4457 = vunpack.c.l.b16 %v4292
        %v4458 = vunpack.c.h.b16 %v4292
        %v4459 = vunpack.c.l.b16 %v4293
        %v4460 = vunpack.c.h.b16 %v4293
        %v4461 = vunpack.c.l.b16 %v4294
        %v4462 = vunpack.c.h.b16 %v4294
        %v4463 = vunpack.c.l.b16 %v4295
        %v4464 = vunpack.c.h.b16 %v4295
        %v4465 = vunpack.c.l.b16 %v4296
        %v4466 = vunpack.c.h.b16 %v4296
        %v4467 = vunpack.c.l.b16 %v4297
        %v4468 = vunpack.c.h.b16 %v4297
        %v4469 = vunpack.c.l.b16 %v4298
        %v4470 = vunpack.c.h.b16 %v4298
        %v4471 = vunpack.c.l.b16 %v4299
        %v4472 = vunpack.c.h.b16 %v4299
        %v4473 = vunpack.c.l.b16 %v4300
        %v4474 = vunpack.c.h.b16 %v4300
        %v4475 = vunpack.c.l.b16 %v4301
        %v4476 = vunpack.c.h.b16 %v4301
        %v4477 = vunpack.c.l.b16 %v4302
        %v4478 = vunpack.c.h.b16 %v4302
        %v4479 = vunpack.c.l.b16 %v4303
        %v4480 = vunpack.c.h.b16 %v4303
        %v4481 = vunpack.c.l.b16 %v4304
        %v4482 = vunpack.c.h.b16 %v4304
        %v4483 = vunpack.c.l.b16 %v4305
        %v4484 = vunpack.c.h.b16 %v4305
        %v4485 = vunpack.c.l.b16 %v4306
        %v4486 = vunpack.c.h.b16 %v4306
        %v4487 = vunpack.c.l.b16 %v4307
        %v4488 = vunpack.c.h.b16 %v4307
        %v4489 = vunpack.c.l.b16 %v4308
        %v4490 = vunpack.c.h.b16 %v4308
        %v4491 = vunpack.c.l.b16 %v4309
        %v4492 = vunpack.c.h.b16 %v4309
        %v4493 = vunpack.c.l.b16 %v4310
        %v4494 = vunpack.c.h.b16 %v4310
        %v4495 = vunpack.c.l.b16 %v4311
        %v4496 = vunpack.c.h.b16 %v4311
        %v4497 = vunpack.c.l.b16 %v4312
        %v4498 = vunpack.c.h.b16 %v4312
        %v4499 = vunpack.c.l.b16 %v4313
        %v4500 = vunpack.c.h.b16 %v4313
        %v4501 = vunpack.c.l.b16 %v4314
        %v4502 = vunpack.c.h.b16 %v4314
        %v4503 = vunpack.c.l.b16 %v4315
        %v4504 = vunpack.c.h.b16 %v4315
        %v4505 = vunpack.c.l.b16 %v4316
        %v4506 = vunpack.c.h.b16 %v4316
        %v4507 = vunpack.c.l.b16 %v4317
        %v4508 = vunpack.c.h.b16 %v4317
        %v4509 = vunpack.c.l.b16 %v4318
        %v4510 = vunpack.c.h.b16 %v4318
        %v4511 = vunpack.c.l.b16 %v4319
        %v4512 = vunpack.c.h.b16 %v4319
        %v4513 = vunpack.c.l.b16 %v4320
        %v4514 = vunpack.c.h.b16 %v4320
        %v4515 = vunpack.c.l.b16 %v4321
        %v4516 = vunpack.c.h.b16 %v4321
        %v4517 = vunpack.c.l.b16 %v4322
        %v4518 = vunpack.c.h.b16 %v4322
        %v4519 = vunpack.c.l.b16 %v4323
        %v4520 = vunpack.c.h.b16 %v4323
        %v4521 = vunpack.c.l.b16 %v4324
        %v4522 = vunpack.c.h.b16 %v4324
        %v4523 = vunpack.c.l.b16 %v4325
        %v4524 = vunpack.c.h.b16 %v4325
        %v4525 = vunpack.c.l.b16 %v4326
        %v4526 = vunpack.c.h.b16 %v4326
        %v4527 = vunpack.c.l.b16 %v4327
        %v4528 = vunpack.c.h.b16 %v4327
        %v4529 = vunpack.c.l.b16 %v4328
        %v4530 = vunpack.c.h.b16 %v4328
        %v4531 = vunpack.c.l.b16 %v4329
        %v4532 = vunpack.c.h.b16 %v4329
        %v4533 = vunpack.c.l.b16 %v4330
        %v4534 = vunpack.c.h.b16 %v4330
        %v4535 = vunpack.c.l.b16 %v4331
        %v4536 = vunpack.c.h.b16 %v4331
        %v4537 = vunpack.c.l.b16 %v4332
        %v4538 = vunpack.c.h.b16 %v4332
        %v4539 = vunpack.c.l.b16 %v4333
        %v4540 = vunpack.c.h.b16 %v4333
        %v4541 = vunpack.c.l.b16 %v4334
        %v4542 = vunpack.c.h.b16 %v4334
        %v4543 = vunpack.c.l.b16 %v4335
        %v4544 = vunpack.c.h.b16 %v4335
        %v4545 = vunpack.c.l.b16 %v4336
        %v4546 = vunpack.c.h.b16 %v4336
        %v4547 = vunpack.c.l.b16 %v4337
        %v4548 = vunpack.c.h.b16 %v4337
        %v4549 = vunpack.c.l.b16 %v4338
        %v4550 = vunpack.c.h.b16 %v4338
        %v4551 = vunpack.c.l.b16 %v4339
        %v4552 = vunpack.c.h.b16 %v4339
        %v4553 = vunpack.c.l.b16 %v4340
        %v4554 = vunpack.c.h.b16 %v4340
        %v4555 = vunpack.c.l.b16 %v4341
        %v4556 = vunpack.c.h.b16 %v4341
        %v4557 = vunpack.c.l.b16 %v4342
        %v4558 = vunpack.c.h.b16 %v4342
        %v4559 = vunpack.c.l.b16 %v4343
        %v4560 = vunpack.c.h.b16 %v4343
        %v4561 = vpack.c.b16 %v4437, %v4433
        %v4562 = vpack.c.b16 %v4438, %v4434
        %v4563 = vpack.c.b16 %v4439, %v4435
        %v4564 = vpack.c.b16 %v4440, %v4436
        %v4565 = vpack.c.b16 %v4445, %v4441
        %v4566 = vpack.c.b16 %v4446, %v4442
        %v4567 = vpack.c.b16 %v4447, %v4443
        %v4568 = vpack.c.b16 %v4448, %v4444
        %v4569 = vpack.c.b16 %v4453, %v4449
        %v4570 = vpack.c.b16 %v4454, %v4450
        %v4571 = vpack.c.b16 %v4455, %v4451
        %v4572 = vpack.c.b16 %v4456, %v4452
        %v4573 = vpack.c.b16 %v4461, %v4457
        %v4574 = vpack.c.b16 %v4462, %v4458
        %v4575 = vpack.c.b16 %v4463, %v4459
        %v4576 = vpack.c.b16 %v4464, %v4460
        %v4577 = vpack.c.b16 %v4469, %v4465
        %v4578 = vpack.c.b16 %v4470, %v4466
        %v4579 = vpack.c.b16 %v4471, %v4467
        %v4580 = vpack.c.b16 %v4472, %v4468
        %v4581 = vpack.c.b16 %v4477, %v4473
        %v4582 = vpack.c.b16 %v4478, %v4474
        %v4583 = vpack.c.b16 %v4479, %v4475
        %v4584 = vpack.c.b16 %v4480, %v4476
        %v4585 = vpack.c.b16 %v4485, %v4481
        %v4586 = vpack.c.b16 %v4486, %v4482
        %v4587 = vpack.c.b16 %v4487, %v4483
        %v4588 = vpack.c.b16 %v4488, %v4484
        %v4589 = vpack.c.b16 %v4493, %v4489
        %v4590 = vpack.c.b16 %v4494, %v4490
        %v4591 = vpack.c.b16 %v4495, %v4491
        %v4592 = vpack.c.b16 %v4496, %v4492
        %v4593 = vpack.c.b16 %v4501, %v4497
        %v4594 = vpack.c.b16 %v4502, %v4498
        %v4595 = vpack.c.b16 %v4503, %v4499
        %v4596 = vpack.c.b16 %v4504, %v4500
        %v4597 = vpack.c.b16 %v4509, %v4505
        %v4598 = vpack.c.b16 %v4510, %v4506
        %v4599 = vpack.c.b16 %v4511, %v4507
        %v4600 = vpack.c.b16 %v4512, %v4508
        %v4601 = vpack.c.b16 %v4517, %v4513
        %v4602 = vpack.c.b16 %v4518, %v4514
        %v4603 = vpack.c.b16 %v4519, %v4515
        %v4604 = vpack.c.b16 %v4520, %v4516
        %v4605 = vpack.c.b16 %v4525, %v4521
        %v4606 = vpack.c.b16 %v4526, %v4522
        %v4607 = vpack.c.b16 %v4527, %v4523
        %v4608 = vpack.c.b16 %v4528, %v4524
        %v4609 = vpack.c.b16 %v4533, %v4529
        %v4610 = vpack.c.b16 %v4534, %v4530
        %v4611 = vpack.c.b16 %v4535, %v4531
        %v4612 = vpack.c.b16 %v4536, %v4532
        %v4613 = vpack.c.b16 %v4541, %v4537
        %v4614 = vpack.c.b16 %v4542, %v4538
        %v4615 = vpack.c.b16 %v4543, %v4539
        %v4616 = vpack.c.b16 %v4544, %v4540
        %v4617 = vpack.c.b16 %v4549, %v4545
        %v4618 = vpack.c.b16 %v4550, %v4546
        %v4619 = vpack.c.b16 %v4551, %v4547
        %v4620 = vpack.c.b16 %v4552, %v4548
        %v4621 = vpack.c.b16 %v4557, %v4553
        %v4622 = vpack.c.b16 %v4558, %v4554
        %v4623 = vpack.c.b16 %v4559, %v4555
        %v4624 = vpack.c.b16 %v4560, %v4556
        %4689 = vmatprep.subr.bf16.mxu0 %v4590
        %4690 = vmatpush1.bf16.msra.mxu0 %v4589
        %4691 = vmatprep.subr.bf16.mxu0 %v4586
        %4692 = vmatpush1.bf16.msra.mxu0 %v4585
        %4693 = vmatprep.subr.bf16.mxu0 %v4582
        %4694 = vmatpush1.bf16.msra.mxu0 %v4581
        %4695 = vmatprep.subr.bf16.mxu0 %v4578
        %4696 = vmatpush1.bf16.msra.mxu0 %v4577
        %4697 = vmatprep.subr.bf16.mxu0 %v4574
        %4698 = vmatpush1.bf16.msra.mxu0 %v4573
        %4699 = vmatprep.subr.bf16.mxu0 %v4570
        %4700 = vmatpush1.bf16.msra.mxu0 %v4569
        %4701 = vmatprep.subr.bf16.mxu0 %v4566
        %4702 = vmatpush1.bf16.msra.mxu0 %v4565
        %4703 = vmatprep.subr.bf16.mxu0 %v4562
        %4704 = vmatpush1.bf16.msra.mxu0 %v4561
        %4705 = vmatprep.subr.bf16.mxu0 %v4622
        %4706 = vmatpush2.bf16.msra.mxu0 %v4621
        %4707 = vmatprep.subr.bf16.mxu0 %v4618
        %4708 = vmatpush2.bf16.msra.mxu0 %v4617
        %4709 = vmatprep.subr.bf16.mxu0 %v4614
        %4710 = vmatpush2.bf16.msra.mxu0 %v4613
        %4711 = vmatprep.subr.bf16.mxu0 %v4610
        %4712 = vmatpush2.bf16.msra.mxu0 %v4609
        %4713 = vmatprep.subr.bf16.mxu0 %v4606
        %4714 = vmatpush2.bf16.msra.mxu0 %v4605
        %4715 = vmatprep.subr.bf16.mxu0 %v4602
        %4716 = vmatpush2.bf16.msra.mxu0 %v4601
        %4717 = vmatprep.subr.bf16.mxu0 %v4598
        %4718 = vmatpush2.bf16.msra.mxu0 %v4597
        %4719 = vmatprep.subr.bf16.mxu0 %v4594
        %4720 = vmatpush2.bf16.msra.mxu0 %v4593
        %4721 = vmatprep.mubr.bf16.mxu0 %v4366
        %4722 = vmatmul.mubr.bf16.gmra.mxu0 %v4365
        %v4723 = vpop.f32.mrf.mxu0
        %v4724 = vadd.f32 %v4348, %v4723
        %v4725 = vpop.f32.mrf.mxu0
        %v4726 = vadd.f32 %v4352, %v4725
        %v4727 = vpop.f32.mrf.mxu0
        %v4728 = vadd.f32 %v4348, %v4727
        %v4729 = vpop.f32.mrf.mxu0
        %v4730 = vadd.f32 %v4352, %v4729
        %4731 = vdwg.mxu0
        %4732 = vmatprep.subr.bf16.mxu0 %v4592
        %4733 = vmatpush1.bf16.msra.mxu0 %v4591
        %4734 = vmatprep.subr.bf16.mxu0 %v4588
        %4735 = vmatpush1.bf16.msra.mxu0 %v4587
        %4736 = vmatprep.subr.bf16.mxu0 %v4584
        %4737 = vmatpush1.bf16.msra.mxu0 %v4583
        %4738 = vmatprep.subr.bf16.mxu0 %v4580
        %4739 = vmatpush1.bf16.msra.mxu0 %v4579
        %4740 = vmatprep.subr.bf16.mxu0 %v4576
        %4741 = vmatpush1.bf16.msra.mxu0 %v4575
        %4742 = vmatprep.subr.bf16.mxu0 %v4572
        %4743 = vmatpush1.bf16.msra.mxu0 %v4571
        %4744 = vmatprep.subr.bf16.mxu0 %v4568
        %4745 = vmatpush1.bf16.msra.mxu0 %v4567
        %4746 = vmatprep.subr.bf16.mxu0 %v4564
        %4747 = vmatpush1.bf16.msra.mxu0 %v4563
        %4748 = vmatprep.subr.bf16.mxu0 %v4624
        %4749 = vmatpush2.bf16.msra.mxu0 %v4623
        %4750 = vmatprep.subr.bf16.mxu0 %v4620
        %4751 = vmatpush2.bf16.msra.mxu0 %v4619
        %4752 = vmatprep.subr.bf16.mxu0 %v4616
        %4753 = vmatpush2.bf16.msra.mxu0 %v4615
        %4754 = vmatprep.subr.bf16.mxu0 %v4612
        %4755 = vmatpush2.bf16.msra.mxu0 %v4611
        %4756 = vmatprep.subr.bf16.mxu0 %v4608
        %4757 = vmatpush2.bf16.msra.mxu0 %v4607
        %4758 = vmatprep.subr.bf16.mxu0 %v4604
        %4759 = vmatpush2.bf16.msra.mxu0 %v4603
        %4760 = vmatprep.subr.bf16.mxu0 %v4600
        %4761 = vmatpush2.bf16.msra.mxu0 %v4599
        %4762 = vmatprep.subr.bf16.mxu0 %v4596
        %4763 = vmatpush2.bf16.msra.mxu0 %v4595
        %4764 = vmatprep.mubr.bf16.mxu0 %v4366
        %4765 = vmatmul.mubr.bf16.gmra.mxu0 %v4365
        %v4766 = vpop.f32.mrf.mxu0
        %v4767 = vadd.f32 %v4356, %v4766
        %v4768 = vpop.f32.mrf.mxu0
        %v4769 = vadd.f32 %v4360, %v4768
        %v4770 = vpop.f32.mrf.mxu0
        %v4771 = vadd.f32 %v4356, %v4770
        %v4772 = vpop.f32.mrf.mxu0
        %v4773 = vadd.f32 %v4360, %v4772
        %4774 = vdwg.mxu0
        %v4775 = vmax.f32 %v4724, 0.0
        %v4776 = vmax.f32 %v4726, 0.0
        %v4777 = vmax.f32 %v4767, 0.0
        %v4778 = vmax.f32 %v4769, 0.0
        %v4779 = vmax.f32 %v4728, 0.0
        %v4780 = vmax.f32 %v4730, 0.0
        %v4781 = vmax.f32 %v4771, 0.0
        %v4782 = vmax.f32 %v4773, 0.0
        %v4783 = vpack.c.bf16 %v4779, %v4775
        %v4784 = vpack.c.bf16 %v4780, %v4776
        %v4785 = vpack.c.bf16 %v4781, %v4777
        %v4786 = vpack.c.bf16 %v4782, %v4778
        %v4787 = vld [vmem:[%s868] sm:$0xff]
        %v4788 = vld [vmem:[%s868 + $0x8] sm:$0xff]
        %v4789 = vld [vmem:[%s868 + $0x10] sm:$0xff]
        %v4790 = vld [vmem:[%s868 + $0x18] sm:$0xff]
        %v4791 = vld [vmem:[%s868 + $0x20] sm:$0xff]
        %v4792 = vld [vmem:[%s868 + $0x28] sm:$0xff]
        %v4793 = vld [vmem:[%s868 + $0x30] sm:$0xff]
        %v4794 = vld [vmem:[%s868 + $0x38] sm:$0xff]
        %v4795 = vld [vmem:[%s868 + $0x40] sm:$0xff]
        %v4796 = vld [vmem:[%s868 + $0x48] sm:$0xff]
        %v4797 = vld [vmem:[%s868 + $0x50] sm:$0xff]
        %v4798 = vld [vmem:[%s868 + $0x58] sm:$0xff]
        %v4799 = vld [vmem:[%s868 + $0x60] sm:$0xff]
        %v4800 = vld [vmem:[%s868 + $0x68] sm:$0xff]
        %v4801 = vld [vmem:[%s868 + $0x70] sm:$0xff]
        %v4802 = vld [vmem:[%s868 + $0x78] sm:$0xff]
        %v4803 = vld [vmem:[%s868 + $0x80] sm:$0xff]
        %v4804 = vld [vmem:[%s868 + $0x88] sm:$0xff]
        %v4805 = vld [vmem:[%s868 + $0x90] sm:$0xff]
        %v4806 = vld [vmem:[%s868 + $0x98] sm:$0xff]
        %v4807 = vld [vmem:[%s868 + $0xa0] sm:$0xff]
        %v4808 = vld [vmem:[%s868 + $0xa8] sm:$0xff]
        %v4809 = vld [vmem:[%s868 + $0xb0] sm:$0xff]
        %v4810 = vld [vmem:[%s868 + $0xb8] sm:$0xff]
        %v4811 = vld [vmem:[%s868 + $0xc0] sm:$0xff]
        %v4812 = vld [vmem:[%s868 + $0xc8] sm:$0xff]
        %v4813 = vld [vmem:[%s868 + $0xd0] sm:$0xff]
        %v4814 = vld [vmem:[%s868 + $0xd8] sm:$0xff]
        %v4815 = vld [vmem:[%s868 + $0xe0] sm:$0xff]
        %v4816 = vld [vmem:[%s868 + $0xe8] sm:$0xff]
        %v4817 = vld [vmem:[%s868 + $0xf0] sm:$0xff]
        %v4818 = vld [vmem:[%s868 + $0xf8] sm:$0xff]
        %v4819 = vld [vmem:[%s868 + $0x100] sm:$0xff]
        %v4820 = vld [vmem:[%s868 + $0x108] sm:$0xff]
        %v4821 = vld [vmem:[%s868 + $0x110] sm:$0xff]
        %v4822 = vld [vmem:[%s868 + $0x118] sm:$0xff]
        %v4823 = vld [vmem:[%s868 + $0x120] sm:$0xff]
        %v4824 = vld [vmem:[%s868 + $0x128] sm:$0xff]
        %v4825 = vld [vmem:[%s868 + $0x130] sm:$0xff]
        %v4826 = vld [vmem:[%s868 + $0x138] sm:$0xff]
        %v4827 = vld [vmem:[%s868 + $0x140] sm:$0xff]
        %v4828 = vld [vmem:[%s868 + $0x148] sm:$0xff]
        %v4829 = vld [vmem:[%s868 + $0x150] sm:$0xff]
        %v4830 = vld [vmem:[%s868 + $0x158] sm:$0xff]
        %v4831 = vld [vmem:[%s868 + $0x160] sm:$0xff]
        %v4832 = vld [vmem:[%s868 + $0x168] sm:$0xff]
        %v4833 = vld [vmem:[%s868 + $0x170] sm:$0xff]
        %v4834 = vld [vmem:[%s868 + $0x178] sm:$0xff]
        %v4835 = vld [vmem:[%s868 + $0x180] sm:$0xff]
        %v4836 = vld [vmem:[%s868 + $0x188] sm:$0xff]
        %v4837 = vld [vmem:[%s868 + $0x190] sm:$0xff]
        %v4838 = vld [vmem:[%s868 + $0x198] sm:$0xff]
        %v4839 = vld [vmem:[%s868 + $0x1a0] sm:$0xff]
        %v4840 = vld [vmem:[%s868 + $0x1a8] sm:$0xff]
        %v4841 = vld [vmem:[%s868 + $0x1b0] sm:$0xff]
        %v4842 = vld [vmem:[%s868 + $0x1b8] sm:$0xff]
        %v4843 = vld [vmem:[%s868 + $0x1c0] sm:$0xff]
        %v4844 = vld [vmem:[%s868 + $0x1c8] sm:$0xff]
        %v4845 = vld [vmem:[%s868 + $0x1d0] sm:$0xff]
        %v4846 = vld [vmem:[%s868 + $0x1d8] sm:$0xff]
        %v4847 = vld [vmem:[%s868 + $0x1e0] sm:$0xff]
        %v4848 = vld [vmem:[%s868 + $0x1e8] sm:$0xff]
        %v4849 = vld [vmem:[%s868 + $0x1f0] sm:$0xff]
        %v4850 = vld [vmem:[%s868 + $0x1f8] sm:$0xff]
        %v4852 = vlaneseq
        %v4853 = vshrl.u32 %v4852, 7
        %v4854 = vsub.s32 0, %v4853
        %v4855 = vrot.slane %v1004, %v4854
        %v4856 = vlaneseq
        %v4857 = vshrl.u32 %v4856, 7
        %v4858 = vsub.s32 1, %v4857
        %v4859 = vrot.slane %v1004, %v4858
        %v4926 = vunpack.c.l.b16 %v4787
        %v4927 = vunpack.c.h.b16 %v4787
        %v4928 = vunpack.c.l.b16 %v4788
        %v4929 = vunpack.c.h.b16 %v4788
        %v4930 = vunpack.c.l.b16 %v4789
        %v4931 = vunpack.c.h.b16 %v4789
        %v4932 = vunpack.c.l.b16 %v4790
        %v4933 = vunpack.c.h.b16 %v4790
        %v4934 = vunpack.c.l.b16 %v4791
        %v4935 = vunpack.c.h.b16 %v4791
        %v4936 = vunpack.c.l.b16 %v4792
        %v4937 = vunpack.c.h.b16 %v4792
        %v4938 = vunpack.c.l.b16 %v4793
        %v4939 = vunpack.c.h.b16 %v4793
        %v4940 = vunpack.c.l.b16 %v4794
        %v4941 = vunpack.c.h.b16 %v4794
        %v4942 = vunpack.c.l.b16 %v4795
        %v4943 = vunpack.c.h.b16 %v4795
        %v4944 = vunpack.c.l.b16 %v4796
        %v4945 = vunpack.c.h.b16 %v4796
        %v4946 = vunpack.c.l.b16 %v4797
        %v4947 = vunpack.c.h.b16 %v4797
        %v4948 = vunpack.c.l.b16 %v4798
        %v4949 = vunpack.c.h.b16 %v4798
        %v4950 = vunpack.c.l.b16 %v4799
        %v4951 = vunpack.c.h.b16 %v4799
        %v4952 = vunpack.c.l.b16 %v4800
        %v4953 = vunpack.c.h.b16 %v4800
        %v4954 = vunpack.c.l.b16 %v4801
        %v4955 = vunpack.c.h.b16 %v4801
        %v4956 = vunpack.c.l.b16 %v4802
        %v4957 = vunpack.c.h.b16 %v4802
        %v4958 = vunpack.c.l.b16 %v4803
        %v4959 = vunpack.c.h.b16 %v4803
        %v4960 = vunpack.c.l.b16 %v4804
        %v4961 = vunpack.c.h.b16 %v4804
        %v4962 = vunpack.c.l.b16 %v4805
        %v4963 = vunpack.c.h.b16 %v4805
        %v4964 = vunpack.c.l.b16 %v4806
        %v4965 = vunpack.c.h.b16 %v4806
        %v4966 = vunpack.c.l.b16 %v4807
        %v4967 = vunpack.c.h.b16 %v4807
        %v4968 = vunpack.c.l.b16 %v4808
        %v4969 = vunpack.c.h.b16 %v4808
        %v4970 = vunpack.c.l.b16 %v4809
        %v4971 = vunpack.c.h.b16 %v4809
        %v4972 = vunpack.c.l.b16 %v4810
        %v4973 = vunpack.c.h.b16 %v4810
        %v4974 = vunpack.c.l.b16 %v4811
        %v4975 = vunpack.c.h.b16 %v4811
        %v4976 = vunpack.c.l.b16 %v4812
        %v4977 = vunpack.c.h.b16 %v4812
        %v4978 = vunpack.c.l.b16 %v4813
        %v4979 = vunpack.c.h.b16 %v4813
        %v4980 = vunpack.c.l.b16 %v4814
        %v4981 = vunpack.c.h.b16 %v4814
        %v4982 = vunpack.c.l.b16 %v4815
        %v4983 = vunpack.c.h.b16 %v4815
        %v4984 = vunpack.c.l.b16 %v4816
        %v4985 = vunpack.c.h.b16 %v4816
        %v4986 = vunpack.c.l.b16 %v4817
        %v4987 = vunpack.c.h.b16 %v4817
        %v4988 = vunpack.c.l.b16 %v4818
        %v4989 = vunpack.c.h.b16 %v4818
        %v4990 = vunpack.c.l.b16 %v4819
        %v4991 = vunpack.c.h.b16 %v4819
        %v4992 = vunpack.c.l.b16 %v4820
        %v4993 = vunpack.c.h.b16 %v4820
        %v4994 = vunpack.c.l.b16 %v4821
        %v4995 = vunpack.c.h.b16 %v4821
        %v4996 = vunpack.c.l.b16 %v4822
        %v4997 = vunpack.c.h.b16 %v4822
        %v4998 = vunpack.c.l.b16 %v4823
        %v4999 = vunpack.c.h.b16 %v4823
        %v5000 = vunpack.c.l.b16 %v4824
        %v5001 = vunpack.c.h.b16 %v4824
        %v5002 = vunpack.c.l.b16 %v4825
        %v5003 = vunpack.c.h.b16 %v4825
        %v5004 = vunpack.c.l.b16 %v4826
        %v5005 = vunpack.c.h.b16 %v4826
        %v5006 = vunpack.c.l.b16 %v4827
        %v5007 = vunpack.c.h.b16 %v4827
        %v5008 = vunpack.c.l.b16 %v4828
        %v5009 = vunpack.c.h.b16 %v4828
        %v5010 = vunpack.c.l.b16 %v4829
        %v5011 = vunpack.c.h.b16 %v4829
        %v5012 = vunpack.c.l.b16 %v4830
        %v5013 = vunpack.c.h.b16 %v4830
        %v5014 = vunpack.c.l.b16 %v4831
        %v5015 = vunpack.c.h.b16 %v4831
        %v5016 = vunpack.c.l.b16 %v4832
        %v5017 = vunpack.c.h.b16 %v4832
        %v5018 = vunpack.c.l.b16 %v4833
        %v5019 = vunpack.c.h.b16 %v4833
        %v5020 = vunpack.c.l.b16 %v4834
        %v5021 = vunpack.c.h.b16 %v4834
        %v5022 = vunpack.c.l.b16 %v4835
        %v5023 = vunpack.c.h.b16 %v4835
        %v5024 = vunpack.c.l.b16 %v4836
        %v5025 = vunpack.c.h.b16 %v4836
        %v5026 = vunpack.c.l.b16 %v4837
        %v5027 = vunpack.c.h.b16 %v4837
        %v5028 = vunpack.c.l.b16 %v4838
        %v5029 = vunpack.c.h.b16 %v4838
        %v5030 = vunpack.c.l.b16 %v4839
        %v5031 = vunpack.c.h.b16 %v4839
        %v5032 = vunpack.c.l.b16 %v4840
        %v5033 = vunpack.c.h.b16 %v4840
        %v5034 = vunpack.c.l.b16 %v4841
        %v5035 = vunpack.c.h.b16 %v4841
        %v5036 = vunpack.c.l.b16 %v4842
        %v5037 = vunpack.c.h.b16 %v4842
        %v5038 = vunpack.c.l.b16 %v4843
        %v5039 = vunpack.c.h.b16 %v4843
        %v5040 = vunpack.c.l.b16 %v4844
        %v5041 = vunpack.c.h.b16 %v4844
        %v5042 = vunpack.c.l.b16 %v4845
        %v5043 = vunpack.c.h.b16 %v4845
        %v5044 = vunpack.c.l.b16 %v4846
        %v5045 = vunpack.c.h.b16 %v4846
        %v5046 = vunpack.c.l.b16 %v4847
        %v5047 = vunpack.c.h.b16 %v4847
        %v5048 = vunpack.c.l.b16 %v4848
        %v5049 = vunpack.c.h.b16 %v4848
        %v5050 = vunpack.c.l.b16 %v4849
        %v5051 = vunpack.c.h.b16 %v4849
        %v5052 = vunpack.c.l.b16 %v4850
        %v5053 = vunpack.c.h.b16 %v4850
        %v5054 = vpack.c.b16 %v4928, %v4926
        %v5055 = vpack.c.b16 %v4929, %v4927
        %v5056 = vpack.c.b16 %v4932, %v4930
        %v5057 = vpack.c.b16 %v4933, %v4931
        %v5058 = vpack.c.b16 %v4936, %v4934
        %v5059 = vpack.c.b16 %v4937, %v4935
        %v5060 = vpack.c.b16 %v4940, %v4938
        %v5061 = vpack.c.b16 %v4941, %v4939
        %v5062 = vpack.c.b16 %v4944, %v4942
        %v5063 = vpack.c.b16 %v4945, %v4943
        %v5064 = vpack.c.b16 %v4948, %v4946
        %v5065 = vpack.c.b16 %v4949, %v4947
        %v5066 = vpack.c.b16 %v4952, %v4950
        %v5067 = vpack.c.b16 %v4953, %v4951
        %v5068 = vpack.c.b16 %v4956, %v4954
        %v5069 = vpack.c.b16 %v4957, %v4955
        %v5070 = vpack.c.b16 %v4960, %v4958
        %v5071 = vpack.c.b16 %v4961, %v4959
        %v5072 = vpack.c.b16 %v4964, %v4962
        %v5073 = vpack.c.b16 %v4965, %v4963
        %v5074 = vpack.c.b16 %v4968, %v4966
        %v5075 = vpack.c.b16 %v4969, %v4967
        %v5076 = vpack.c.b16 %v4972, %v4970
        %v5077 = vpack.c.b16 %v4973, %v4971
        %v5078 = vpack.c.b16 %v4976, %v4974
        %v5079 = vpack.c.b16 %v4977, %v4975
        %v5080 = vpack.c.b16 %v4980, %v4978
        %v5081 = vpack.c.b16 %v4981, %v4979
        %v5082 = vpack.c.b16 %v4984, %v4982
        %v5083 = vpack.c.b16 %v4985, %v4983
        %v5084 = vpack.c.b16 %v4988, %v4986
        %v5085 = vpack.c.b16 %v4989, %v4987
        %v5086 = vpack.c.b16 %v4992, %v4990
        %v5087 = vpack.c.b16 %v4993, %v4991
        %v5088 = vpack.c.b16 %v4996, %v4994
        %v5089 = vpack.c.b16 %v4997, %v4995
        %v5090 = vpack.c.b16 %v5000, %v4998
        %v5091 = vpack.c.b16 %v5001, %v4999
        %v5092 = vpack.c.b16 %v5004, %v5002
        %v5093 = vpack.c.b16 %v5005, %v5003
        %v5094 = vpack.c.b16 %v5008, %v5006
        %v5095 = vpack.c.b16 %v5009, %v5007
        %v5096 = vpack.c.b16 %v5012, %v5010
        %v5097 = vpack.c.b16 %v5013, %v5011
        %v5098 = vpack.c.b16 %v5016, %v5014
        %v5099 = vpack.c.b16 %v5017, %v5015
        %v5100 = vpack.c.b16 %v5020, %v5018
        %v5101 = vpack.c.b16 %v5021, %v5019
        %v5102 = vpack.c.b16 %v5024, %v5022
        %v5103 = vpack.c.b16 %v5025, %v5023
        %v5104 = vpack.c.b16 %v5028, %v5026
        %v5105 = vpack.c.b16 %v5029, %v5027
        %v5106 = vpack.c.b16 %v5032, %v5030
        %v5107 = vpack.c.b16 %v5033, %v5031
        %v5108 = vpack.c.b16 %v5036, %v5034
        %v5109 = vpack.c.b16 %v5037, %v5035
        %v5110 = vpack.c.b16 %v5040, %v5038
        %v5111 = vpack.c.b16 %v5041, %v5039
        %v5112 = vpack.c.b16 %v5044, %v5042
        %v5113 = vpack.c.b16 %v5045, %v5043
        %v5114 = vpack.c.b16 %v5048, %v5046
        %v5115 = vpack.c.b16 %v5049, %v5047
        %v5116 = vpack.c.b16 %v5052, %v5050
        %v5117 = vpack.c.b16 %v5053, %v5051
        %5182 = vmatprep.subr.bf16.mxu0 %v5069
        %5183 = vmatpush1.bf16.msra.mxu0 %v5068
        %5184 = vmatprep.subr.bf16.mxu0 %v5067
        %5185 = vmatpush1.bf16.msra.mxu0 %v5066
        %5186 = vmatprep.subr.bf16.mxu0 %v5065
        %5187 = vmatpush1.bf16.msra.mxu0 %v5064
        %5188 = vmatprep.subr.bf16.mxu0 %v5063
        %5189 = vmatpush1.bf16.msra.mxu0 %v5062
        %5190 = vmatprep.subr.bf16.mxu0 %v5061
        %5191 = vmatpush1.bf16.msra.mxu0 %v5060
        %5192 = vmatprep.subr.bf16.mxu0 %v5059
        %5193 = vmatpush1.bf16.msra.mxu0 %v5058
        %5194 = vmatprep.subr.bf16.mxu0 %v5057
        %5195 = vmatpush1.bf16.msra.mxu0 %v5056
        %5196 = vmatprep.subr.bf16.mxu0 %v5055
        %5197 = vmatpush1.bf16.msra.mxu0 %v5054
        %5198 = vmatprep.subr.bf16.mxu0 %v5085
        %5199 = vmatpush2.bf16.msra.mxu0 %v5084
        %5200 = vmatprep.subr.bf16.mxu0 %v5083
        %5201 = vmatpush2.bf16.msra.mxu0 %v5082
        %5202 = vmatprep.subr.bf16.mxu0 %v5081
        %5203 = vmatpush2.bf16.msra.mxu0 %v5080
        %5204 = vmatprep.subr.bf16.mxu0 %v5079
        %5205 = vmatpush2.bf16.msra.mxu0 %v5078
        %5206 = vmatprep.subr.bf16.mxu0 %v5077
        %5207 = vmatpush2.bf16.msra.mxu0 %v5076
        %5208 = vmatprep.subr.bf16.mxu0 %v5075
        %5209 = vmatpush2.bf16.msra.mxu0 %v5074
        %5210 = vmatprep.subr.bf16.mxu0 %v5073
        %5211 = vmatpush2.bf16.msra.mxu0 %v5072
        %5212 = vmatprep.subr.bf16.mxu0 %v5071
        %5213 = vmatpush2.bf16.msra.mxu0 %v5070
        %5214 = vmatprep.mubr.bf16.mxu0 %v4784
        %5215 = vmatmul.mubr.bf16.gmra.mxu0 %v4783
        %v5216 = vpop.f32.mrf.mxu0
        %v5217 = vadd.f32 %v4855, %v5216
        %v5218 = vpop.f32.mrf.mxu0
        %v5219 = vadd.f32 %v4859, %v5218
        %v5220 = vpop.f32.mrf.mxu0
        %v5221 = vadd.f32 %v4855, %v5220
        %v5222 = vpop.f32.mrf.mxu0
        %v5223 = vadd.f32 %v4859, %v5222
        %5224 = vdwg.mxu0
        %5225 = vmatprep.subr.bf16.mxu0 %v5101
        %5226 = vmatpush1.bf16.msra.mxu0 %v5100
        %5227 = vmatprep.subr.bf16.mxu0 %v5099
        %5228 = vmatpush1.bf16.msra.mxu0 %v5098
        %5229 = vmatprep.subr.bf16.mxu0 %v5097
        %5230 = vmatpush1.bf16.msra.mxu0 %v5096
        %5231 = vmatprep.subr.bf16.mxu0 %v5095
        %5232 = vmatpush1.bf16.msra.mxu0 %v5094
        %5233 = vmatprep.subr.bf16.mxu0 %v5093
        %5234 = vmatpush1.bf16.msra.mxu0 %v5092
        %5235 = vmatprep.subr.bf16.mxu0 %v5091
        %5236 = vmatpush1.bf16.msra.mxu0 %v5090
        %5237 = vmatprep.subr.bf16.mxu0 %v5089
        %5238 = vmatpush1.bf16.msra.mxu0 %v5088
        %5239 = vmatprep.subr.bf16.mxu0 %v5087
        %5240 = vmatpush1.bf16.msra.mxu0 %v5086
        %5241 = vmatprep.subr.bf16.mxu0 %v5117
        %5242 = vmatpush2.bf16.msra.mxu0 %v5116
        %5243 = vmatprep.subr.bf16.mxu0 %v5115
        %5244 = vmatpush2.bf16.msra.mxu0 %v5114
        %5245 = vmatprep.subr.bf16.mxu0 %v5113
        %5246 = vmatpush2.bf16.msra.mxu0 %v5112
        %5247 = vmatprep.subr.bf16.mxu0 %v5111
        %5248 = vmatpush2.bf16.msra.mxu0 %v5110
        %5249 = vmatprep.subr.bf16.mxu0 %v5109
        %5250 = vmatpush2.bf16.msra.mxu0 %v5108
        %5251 = vmatprep.subr.bf16.mxu0 %v5107
        %5252 = vmatpush2.bf16.msra.mxu0 %v5106
        %5253 = vmatprep.subr.bf16.mxu0 %v5105
        %5254 = vmatpush2.bf16.msra.mxu0 %v5104
        %5255 = vmatprep.subr.bf16.mxu0 %v5103
        %5256 = vmatpush2.bf16.msra.mxu0 %v5102
        %5257 = vmatprep.mubr.bf16.mxu0 %v4786
        %5258 = vmatmul.mubr.bf16.gmra.mxu0 %v4785
        %v5259 = vpop.f32.mrf.mxu0
        %v5260 = vadd.f32 %v5217, %v5259
        %v5261 = vpop.f32.mrf.mxu0
        %v5262 = vadd.f32 %v5219, %v5261
        %v5263 = vpop.f32.mrf.mxu0
        %v5264 = vadd.f32 %v5221, %v5263
        %v5265 = vpop.f32.mrf.mxu0
        %v5266 = vadd.f32 %v5223, %v5265
        %5267 = vdwg.mxu0
        %v5268 = vadd.f32 %v4187, %v5260
        %v5269 = vadd.f32 %v4188, %v5262
        %v5270 = vadd.f32 %v4189, %v5264
        %v5271 = vadd.f32 %v4190, %v5266
        %5272 = vst [vmem:[#allocation2] sm:$0xff] %v5268
        %5273 = vst [vmem:[#allocation2 + $0x8] sm:$0xff] %v5269
        %5274 = vst [vmem:[#allocation2 + $0x10] sm:$0xff] %v5270
        %5275 = vst [vmem:[#allocation2 + $0x18] sm:$0xff] %v5271
        %p5276 = scmp.eq.s32.totalorder %s38, 1
        // Predicated region
        $region145: #{tpu_custom_call.1} parent=87 // pred_check
          %p5277 = pneg %p5276
        $region146: #{tpu_custom_call.1} parent=87 // pred_check_branch
          %5279 = sbr.rel (%p5277) target = $region148
        $region147: #{tpu_custom_call.1} parent=87 // pred_region
          %v5280 = vld [vmem:[%s15] sm:$0x3]
          %v5281 = vld [vmem:[%s16] sm:$0x3]
          %v5282 = vadd.f32 %v5268, %v5269
          %5283 = vadd.xlane.f32.xlu0 %v5282
          %v5284 = vpop.xlane.xlu0 %5283
          %v5285 = vadd.f32 %v5270, %v5271
          %5286 = vadd.xlane.f32.xlu0 %v5285
          %v5287 = vpop.xlane.xlu0 %5286
          %v5288 = vmul.f32 %v5284, %v1011
          %v5289 = vmul.f32 %v5287, %v1011
          %v5290 = vsub.f32 %v5268, %v5288
          %v5291 = vsub.f32 %v5269, %v5288
          %v5292 = vsub.f32 %v5270, %v5289
          %v5293 = vsub.f32 %v5271, %v5289
          %v5294 = vmul.f32 %v5290, %v5290
          %v5295 = vmul.f32 %v5291, %v5291
          %v5296 = vmul.f32 %v5292, %v5292
          %v5297 = vmul.f32 %v5293, %v5293
          %v5298 = vadd.f32 %v5294, %v5295
          %5299 = vadd.xlane.f32.xlu0 %v5298
          %v5300 = vpop.xlane.xlu0 %5299
          %v5301 = vadd.f32 %v5296, %v5297
          %5302 = vadd.xlane.f32.xlu0 %v5301
          %v5303 = vpop.xlane.xlu0 %5302
          %v5304 = vmul.f32 %v5300, %v1011
          %v5305 = vmul.f32 %v5303, %v1011
          %v5306 = vadd.f32 %v5304, 1e-12
          %v5307 = vadd.f32 %v5305, 1e-12
          %v5308 = vrsqrt.pop %v5306
          %v5309 = vrsqrt.pop %v5307
          %v5310 = vmul.f32 %v5290, %v5308
          %v5311 = vmul.f32 %v5291, %v5308
          %v5312 = vmul.f32 %v5292, %v5309
          %v5313 = vmul.f32 %v5293, %v5309
          %v5315 = vlaneseq
          %v5316 = vshrl.u32 %v5315, 7
          %v5317 = vsub.s32 0, %v5316
          %v5318 = vrot.slane %v5280, %v5317
          %v5319 = vlaneseq
          %v5320 = vshrl.u32 %v5319, 7
          %v5321 = vsub.s32 1, %v5320
          %v5322 = vrot.slane %v5280, %v5321
          %v5325 = vmul.f32 %v5310, %v5318
          %v5326 = vmul.f32 %v5311, %v5322
          %v5327 = vmul.f32 %v5312, %v5318
          %v5328 = vmul.f32 %v5313, %v5322
          %v5330 = vlaneseq
          %v5331 = vshrl.u32 %v5330, 7
          %v5332 = vsub.s32 0, %v5331
          %v5333 = vrot.slane %v5281, %v5332
          %v5334 = vlaneseq
          %v5335 = vshrl.u32 %v5334, 7
          %v5336 = vsub.s32 1, %v5335
          %v5337 = vrot.slane %v5281, %v5336
          %v5340 = vadd.f32 %v5325, %v5333
          %v5341 = vadd.f32 %v5326, %v5337
          %v5342 = vadd.f32 %v5327, %v5333
          %v5343 = vadd.f32 %v5328, %v5337
          %v5344 = vpack.c.bf16 %v5340, %v5340
          %v5345 = vpack.c.bf16 %v5341, %v5341
          %v5346 = vpack.c.bf16 %v5342, %v5342
          %v5347 = vpack.c.bf16 %v5343, %v5343
          %v5352 = vunpack.c.l.b16 %v5344
          %v5353 = vunpack.c.l.b16 %v5345
          %v5354 = vunpack.c.l.b16 %v5346
          %v5355 = vunpack.c.l.b16 %v5347
          %v5356 = vpack.c.b16 %v5353, %v5352
          %v5357 = vpack.c.b16 %v5355, %v5354
          %5360 = vst [vmem:[#allocation21] sm:$0xff] %v5356
          %5361 = vst [vmem:[#allocation21 + $0x8] sm:$0xff] %v5357
        $region148: #{tpu_custom_call.1} parent=87 // pred_fallthru
          _
        // Predicated region
        $region149: #{tpu_custom_call.1} parent=87 // pred_check
          %p5362 = pneg %p495
        $region150: #{tpu_custom_call.1} parent=87 // pred_check_branch
          %5364 = sbr.rel (%p5362) target = $region152
        $region151: #{tpu_custom_call.1} parent=87 // pred_region
          %s5365 = smul.u32 2, %s37
          %s5367 = ssub.s32 256, 256
          %5368 = vsyncadd [#allocation5], %s5367
          %s5369 = smul.addr %s5365, 2
          %s5370 = smul.addr %s5369, 64
          %s5371 = scalar_lea.hbm %s17, %s5370
          %s5372 = sshll.u32 [#allocation21], 4
          %s5373 = int_to_ptr.vmem [resolvable:$true] %s5372
          %5378 = dma.vmem_to_hbm [thread:$0]  %s5373, 256, %s5371, [#allocation5], 128, 128, 8
        $region152: #{tpu_custom_call.1} parent=87 // pred_fallthru
          _
        // Predicated region
        $region153: #{tpu_custom_call.1} parent=87 // pred_check
          %p5379 = pneg %p495
        $region154: #{tpu_custom_call.1} parent=87 // pred_check_branch
          %5381 = sbr.rel (%p5379) target = $region156
        $region155: #{tpu_custom_call.1} parent=87 // pred_region
          %5382 = dma.done [#allocation5], 256
        $region156: #{tpu_custom_call.1} parent=87 // pred_fallthru
          _
      $region88: #{tpu_custom_call.1} parent=5 // pred_fallthru
        _
      %p5383 = scmp.le.s32.totalorder 2, %s28
      // Predicated region
      $region157: #{tpu_custom_call.1} parent=5 // pred_check
        %p5384 = pneg %p5383
      $region158: #{tpu_custom_call.1} parent=5 // pred_check_branch
        %5386 = sbr.rel (%p5384) target = $region160
      $region159: #{tpu_custom_call.1} parent=5 // pred_region
        %s5387 = ssub.s32 %s28, 2
      $region160: #{tpu_custom_call.1} parent=5 // pred_fallthru
        _
    $region6: #{tpu_custom_call.1} parent=1 // loop_footer
      %s32 = sadd.s32 1, %s28
    $region7: #{tpu_custom_call.1} parent=1 // loop_footer_branch
      %27 = sbr.rel target = $region3
    $region8: #{tpu_custom_call.1} parent=1 // loop_exit
      _
    %5388 = vsyncpa [#allocation4], 1
    %s5389 = scalar_lea.sflag [#allocation4], 1
    %5390 = vsyncpa %s5389, 1
    %5391 = vsyncpa [#allocation7], 1
    %5392 = vsyncpa [#allocation10], 1
    %5393 = vsyncpa [#allocation13], 1
    %5394 = vsyncpa [#allocation5], 1
    %s5395 = scalar_lea.sflag [#allocation5], 1
    %5396 = vsyncpa %s5395, 1

</llo_original>
